<compile_context>
chip_gen: v7x
topology: tpu7x:2x2x1
jax: 0.10.0
libtpu: 0.0.40
codegen_flags: <defaults>
</compile_context>

<pallas_src>
import jax
import jax.numpy as jnp
from jax.experimental import pallas as pl
from jax.experimental.pallas import tpu as pltpu

LAYER_NAMES = ("encoder1", "encoder3", "encoder5")
LAYER_WEIGHTS = {"encoder1": 0.2, "encoder3": 0.3, "encoder5": 0.5}


# ---------------------------------------------------------------------------
# Pallas kernels
# ---------------------------------------------------------------------------
def _conv_matmul_kernel(w_ref, p_ref, b_ref, o_ref):
    """Lane-dense fused conv matmul + bias + ReLU.

    w_ref: (F, K) bf16   p_ref: (K, TM) bf16   b_ref: (F, 1) f32
    o_ref: (F, TM) f32   -- spatial M tile on the 128 lanes (unmasked stores).
    """
    acc = jnp.dot(w_ref[...], p_ref[...], preferred_element_type=jnp.float32)
    o_ref[...] = jnp.maximum(acc + b_ref[...], 0.0)


def _make_lpips_kernel(weights):
    """Fused LPIPS distance: 3 layers, weighted sum + batch mean, one call.

    Each f*_ref is a [C, B*S] feature slab (channels on sublanes, spatial on
    lanes).  Per-batch mean over (C, S) followed by batch mean equals a global
    mean over all elements, so each layer reduces to sum(sq) / size.
    """
    def kernel(f1a_ref, f2a_ref, f1b_ref, f2b_ref, f1c_ref, f2c_ref, o_ref):
        eps = 1e-10
        total = None
        pairs = ((f1a_ref, f2a_ref), (f1b_ref, f2b_ref), (f1c_ref, f2c_ref))
        for (r1, r2), w in zip(pairs, weights):
            x1 = r1[...]
            x2 = r2[...]
            n1 = x1 * jax.lax.rsqrt(jnp.sum(x1 * x1, axis=0, keepdims=True) + eps)
            n2 = x2 * jax.lax.rsqrt(jnp.sum(x2 * x2, axis=0, keepdims=True) + eps)
            sq = (n1 - n2) * (n1 - n2)
            s = jnp.sum(jnp.sum(sq, axis=1, keepdims=True), axis=0, keepdims=True)
            d = (w / float(sq.shape[0] * sq.shape[1])) * s          # [1, 1]
            total = d if total is None else total + d
        o_ref[...] = jnp.broadcast_to(total, o_ref.shape)
    return kernel


# ---------------------------------------------------------------------------
# im2col + conv wrapper (channel-major)
# ---------------------------------------------------------------------------
def _im2col_3d(x_cm, k=3, stride=1, pad=1):
    """x_cm: [C, N, D, H, W] -> patches [C*27, N*Do*Ho*Wo] (K-major, M on lanes)."""
    c, n, d, h, w = x_cm.shape
    xp = jnp.pad(x_cm, ((0, 0), (0, 0), (pad, pad), (pad, pad), (pad, pad)))
    do = (d + 2 * pad - k) // stride + 1
    ho = (h + 2 * pad - k) // stride + 1
    wo = (w + 2 * pad - k) // stride + 1
    cols = []
    for kd in range(k):
        for kh in range(k):
            for kw in range(k):
                cols.append(
                    xp[:, :,
                       kd:kd + (do - 1) * stride + 1:stride,
                       kh:kh + (ho - 1) * stride + 1:stride,
                       kw:kw + (wo - 1) * stride + 1:stride])
    cols = jnp.stack(cols, axis=1)                       # [C, 27, N, Do, Ho, Wo]
    patches = cols.reshape(c * k * k * k, n * do * ho * wo)
    return patches, (do, ho, wo)


def _pick_tm(m_pad, k_dim, f, budget_bytes=16 * 1024 * 1024):
    """Largest lane-aligned row tile whose double-buffered tiles fit the budget."""
    for tm in (2048, 1024, 512, 256, 128):
        if m_pad % tm:
            continue
        need = 2 * (k_dim * tm * 2) + 2 * (f * tm * 4) + f * k_dim * 2 + f * 4
        if need <= budget_bytes:
            return tm
    return m_pad


def conv3d_relu(x_cm, weight, bias, stride):
    """3D conv (kernel=3, pad=1) + ReLU on channel-major input.

    x_cm: [Cin, N, D, H, W];  weight: [F, Cin, 3, 3, 3] (torch layout).
    Returns [F, N, Do, Ho, Wo] (channel-major, ready for the next im2col).
    """
    # TODO(synk): for realistic MRI volumes, fold the 27-tap gather into the
    # kernel (manual DMA of the padded tile) instead of materializing im2col in
    # HBM; also pack the K=27 encoder1 contraction to better fill the MXU.
    f = weight.shape[0]
    n = x_cm.shape[1]
    patches, (do, ho, wo) = _im2col_3d(x_cm, k=3, stride=stride, pad=1)
    k_dim, m = patches.shape

    # Lane alignment: pad spatial M up to a multiple of 128 so every row tile
    # gets unmasked full-width loads/stores (padded columns are discarded).
    m_pad = ((m + 127) // 128) * 128
    if m_pad != m:
        patches = jnp.pad(patches, ((0, 0), (0, m_pad - m)))

    patches = patches.astype(jnp.bfloat16)                 # bf16 operands,
    w_mat = weight.reshape(f, k_dim).astype(jnp.bfloat16)  # f32 accumulation
    b_mat = bias.reshape(f, 1).astype(jnp.float32)

    tm = _pick_tm(m_pad, k_dim, f)
    cost = pl.CostEstimate(
        flops=2 * m_pad * k_dim * f,
        transcendentals=0,
        bytes_accessed=m_pad * k_dim * 2 + f * k_dim * 2 + f * 4 + m_pad * f * 4)

    out = pl.pallas_call(
        _conv_matmul_kernel,
        out_shape=jax.ShapeDtypeStruct((f, m_pad), jnp.float32),
        grid=(m_pad // tm,),
        in_specs=[pl.BlockSpec((f, k_dim), lambda i: (0, 0)),   # resident weights
                  pl.BlockSpec((k_dim, tm), lambda i: (0, i)),
                  pl.BlockSpec((f, 1), lambda i: (0, 0))],      # resident bias
        out_specs=pl.BlockSpec((f, tm), lambda i: (0, i)),
        compiler_params=pltpu.CompilerParams(
            dimension_semantics=("parallel",),            # independent row tiles
            vmem_limit_bytes=32 * 1024 * 1024),           # portable v5e/v6e/v7x
        cost_estimate=cost,
    )(w_mat, patches, b_mat)

    if m_pad != m:
        out = out[:, :m]
    return out.reshape(f, n, do, ho, wo)


# ---------------------------------------------------------------------------
# Encoder + LPIPS
# ---------------------------------------------------------------------------
def init_params(key):
    chans = {"encoder1": (1, 16), "encoder3": (16, 32), "encoder5": (32, 64)}
    params = {}
    for name, (cin, cout) in chans.items():
        key, kw, kb = jax.random.split(key, 3)
        fan_in = cin * 27
        w = jax.random.normal(kw, (cout, cin, 3, 3, 3), jnp.float32) * \
            (2.0 / fan_in) ** 0.5
        b = jax.random.normal(kb, (cout,), jnp.float32) * 0.01
        params[name] = (w, b)
    return params


def extract_features(x_cm, params):
    """x_cm: [C, N, D, H, W] with N = 2*B (both image streams batched)."""
    feats = {}
    h = x_cm
    for name, stride in (("encoder1", 1), ("encoder3", 2), ("encoder5", 2)):
        h = conv3d_relu(h, *params[name], stride=stride)   # [F, N, Do, Ho, Wo]
        feats[name] = h.reshape(h.shape[0], -1)            # [F, N*S], no copy
    return feats


def lpips_fused_distance(feats):
    """Single fused Pallas call over all three layers; returns scalar score."""
    # TODO(synk): for realistic volumes, block this kernel over the spatial
    # axis with a grid + VMEM accumulator instead of whole-array VMEM inputs.
    ins = []
    total_elems = 0
    total_cols = 0
    for name in LAYER_NAMES:
        fm = feats[name]                     # [C, 2B*S]; first half = img1
        bs = fm.shape[1] // 2
        ins.append(fm[:, :bs])
        ins.append(fm[:, bs:])
        total_elems += fm.shape[0] * fm.shape[1]
        total_cols += fm.shape[1]
    kernel = _make_lpips_kernel(tuple(LAYER_WEIGHTS[n] for n in LAYER_NAMES))
    cost = pl.CostEstimate(
        flops=8 * total_elems,               # normalize + sq-diff + reductions
        transcendentals=total_cols,          # one rsqrt per column
        bytes_accessed=4 * total_elems + 128 * 4)
    out = pl.pallas_call(
        kernel,
        out_shape=jax.ShapeDtypeStruct((1, 128), jnp.float32),
        in_specs=[pl.BlockSpec(memory_space=pltpu.MemorySpace.VMEM)] * 6,
        out_specs=pl.BlockSpec(memory_space=pltpu.MemorySpace.VMEM),
        compiler_params=pltpu.CompilerParams(
            vmem_limit_bytes=32 * 1024 * 1024),
        cost_estimate=cost,
    )(*ins)
    return out[0, 0]


def lpips(img1, img2, params):
    """LPIPS score (lower is better). Inputs: [B, C, D, H, W] float32."""
    # TODO(synk): _resize_if_needed (trilinear interpolate) omitted — example
    # shapes are below the max_size threshold, so the PyTorch module would not
    # resize either.
    x = jnp.concatenate([img1, img2], axis=0)          # [2B, C, D, H, W]
    x_cm = jnp.transpose(x, (1, 0, 2, 3, 4))           # [C, 2B, D, H, W]
    feats = extract_features(x_cm, params)
    return lpips_fused_distance(feats)


if __name__ == "__main__":
    key = jax.random.PRNGKey(0)
    kp, k1, k2 = jax.random.split(key, 3)
    params = init_params(kp)

    # Small prostate-MRI-like volumes: [B=2, C=1, D=8, H=16, W=16]
    img1 = jax.random.uniform(k1, (2, 1, 8, 16, 16), jnp.float32)
    img2 = jax.random.uniform(k2, (2, 1, 8, 16, 16), jnp.float32)

    score = jax.jit(lpips)(img1, img2, params)
    jax.block_until_ready(score)
    assert score.shape == () and jnp.isfinite(score)
    print("KERNEL_OK")
</pallas_src>

<mosaic_0001>
module attributes {stable_mosaic.version = 11 : i64} {
  func.func @_conv_matmul_kernel(%arg0: i32, %arg1: memref<16x27xbf16, #tpu.memory_space<vmem>>, %arg2: memref<27x2048xbf16, #tpu.memory_space<vmem>>, %arg3: memref<16x1xf32, #tpu.memory_space<vmem>>, %arg4: memref<16x2048xf32, #tpu.memory_space<vmem>>) attributes {dimension_semantics = [#tpu.dimension_semantics<parallel>], iteration_bounds = array<i64: 4>, scalar_prefetch = 0 : i64, scratch_operands = 0 : i64, tpu.core_type = #tpu.core_type<tc>, window_params = [{pipeline_mode = #tpu.pipeline_mode<synchronous>, transform_indices = @transform_0, window_bounds = array<i64: 16, 27>}, {transform_indices = @transform_1, window_bounds = array<i64: 27, 2048>}, {pipeline_mode = #tpu.pipeline_mode<synchronous>, transform_indices = @transform_2, window_bounds = array<i64: 16, 1>}, {transform_indices = @transform_3, window_bounds = array<i64: 16, 2048>}]} {
    %c0 = arith.constant 0 : index
    %c0_0 = arith.constant 0 : index
    %0 = vector.load %arg1[%c0, %c0_0] : memref<16x27xbf16, #tpu.memory_space<vmem>>, vector<16x27xbf16>
    %c0_1 = arith.constant 0 : index
    %c0_2 = arith.constant 0 : index
    %1 = vector.load %arg2[%c0_1, %c0_2] : memref<27x2048xbf16, #tpu.memory_space<vmem>>, vector<27x2048xbf16>
    %cst = arith.constant dense<0.000000e+00> : vector<16x2048xf32>
    %2 = tpu.matmul %0, %1, %cst {dimension_numbers = #tpu.dot_dimension_numbers<[1], [0], [0], [1], [0, 0, 1, 1], [], []>} : vector<16x27xbf16>, vector<27x2048xbf16>, vector<16x2048xf32> -> vector<16x2048xf32>
    %c0_3 = arith.constant 0 : index
    %c0_4 = arith.constant 0 : index
    %3 = vector.load %arg3[%c0_3, %c0_4] : memref<16x1xf32, #tpu.memory_space<vmem>>, vector<16x1xf32>
    %4 = vector.broadcast %3 : vector<16x1xf32> to vector<16x2048xf32>
    %5 = arith.addf %2, %4 : vector<16x2048xf32>
    %cst_5 = arith.constant 0.000000e+00 : f32
    %6 = vector.broadcast %cst_5 : f32 to vector<16x2048xf32>
    %7 = arith.maximumf %5, %6 : vector<16x2048xf32>
    %c0_6 = arith.constant 0 : index
    %c0_7 = arith.constant 0 : index
    %8 = vector.load %arg4[%c0_6, %c0_7] : memref<16x2048xf32, #tpu.memory_space<vmem>>, vector<16x2048xf32>
    tpu.vector_store %arg4[%c0_6, %c0_7], %7 {strides = array<i32>} : memref<16x2048xf32, #tpu.memory_space<vmem>>, vector<16x2048xf32>,
    return
  }
  func.func @transform_0(%arg0: i32) -> (i32, i32) {
    %c0_i32 = arith.constant 0 : i32
    %c0_i32_0 = arith.constant 0 : i32
    %c0_i32_1 = arith.constant 0 : i32
    return %c0_i32, %c0_i32_0 : i32, i32
  }
  func.func @transform_1(%arg0: i32) -> (i32, i32) {
    %c0_i32 = arith.constant 0 : i32
    %c0_i32_0 = arith.constant 0 : i32
    return %c0_i32, %arg0 : i32, i32
  }
  func.func @transform_2(%arg0: i32) -> (i32, i32) {
    %c0_i32 = arith.constant 0 : i32
    %c0_i32_0 = arith.constant 0 : i32
    %c0_i32_1 = arith.constant 0 : i32
    return %c0_i32, %c0_i32_0 : i32, i32
  }
  func.func @transform_3(%arg0: i32) -> (i32, i32) {
    %c0_i32 = arith.constant 0 : i32
    %c0_i32_0 = arith.constant 0 : i32
    return %c0_i32, %arg0 : i32, i32
  }
}

module attributes {stable_mosaic.version = 11 : i64} {
  func.func @_conv_matmul_kernel(%arg0: i32, %arg1: memref<32x432xbf16, #tpu.memory_space<vmem>>, %arg2: memref<432x1024xbf16, #tpu.memory_space<vmem>>, %arg3: memref<32x1xf32, #tpu.memory_space<vmem>>, %arg4: memref<32x1024xf32, #tpu.memory_space<vmem>>) attributes {dimension_semantics = [#tpu.dimension_semantics<parallel>], iteration_bounds = array<i64: 1>, scalar_prefetch = 0 : i64, scratch_operands = 0 : i64, tpu.core_type = #tpu.core_type<tc>, window_params = [{pipeline_mode = #tpu.pipeline_mode<synchronous>, transform_indices = @transform_0, window_bounds = array<i64: 32, 432>}, {transform_indices = @transform_1, window_bounds = array<i64: 432, 1024>}, {pipeline_mode = #tpu.pipeline_mode<synchronous>, transform_indices = @transform_2, window_bounds = array<i64: 32, 1>}, {transform_indices = @transform_3, window_bounds = array<i64: 32, 1024>}]} {
    %c0 = arith.constant 0 : index
    %c0_0 = arith.constant 0 : index
    %0 = vector.load %arg1[%c0, %c0_0] : memref<32x432xbf16, #tpu.memory_space<vmem>>, vector<32x432xbf16>
    %c0_1 = arith.constant 0 : index
    %c0_2 = arith.constant 0 : index
    %1 = vector.load %arg2[%c0_1, %c0_2] : memref<432x1024xbf16, #tpu.memory_space<vmem>>, vector<432x1024xbf16>
    %cst = arith.constant dense<0.000000e+00> : vector<32x1024xf32>
    %2 = tpu.matmul %0, %1, %cst {dimension_numbers = #tpu.dot_dimension_numbers<[1], [0], [0], [1], [0, 0, 1, 1], [], []>} : vector<32x432xbf16>, vector<432x1024xbf16>, vector<32x1024xf32> -> vector<32x1024xf32>
    %c0_3 = arith.constant 0 : index
    %c0_4 = arith.constant 0 : index
    %3 = vector.load %arg3[%c0_3, %c0_4] : memref<32x1xf32, #tpu.memory_space<vmem>>, vector<32x1xf32>
    %4 = vector.broadcast %3 : vector<32x1xf32> to vector<32x1024xf32>
    %5 = arith.addf %2, %4 : vector<32x1024xf32>
    %cst_5 = arith.constant 0.000000e+00 : f32
    %6 = vector.broadcast %cst_5 : f32 to vector<32x1024xf32>
    %7 = arith.maximumf %5, %6 : vector<32x1024xf32>
    %c0_6 = arith.constant 0 : index
    %c0_7 = arith.constant 0 : index
    %8 = vector.load %arg4[%c0_6, %c0_7] : memref<32x1024xf32, #tpu.memory_space<vmem>>, vector<32x1024xf32>
    tpu.vector_store %arg4[%c0_6, %c0_7], %7 {strides = array<i32>} : memref<32x1024xf32, #tpu.memory_space<vmem>>, vector<32x1024xf32>,
    return
  }
  func.func @transform_0(%arg0: i32) -> (i32, i32) {
    %c0_i32 = arith.constant 0 : i32
    %c0_i32_0 = arith.constant 0 : i32
    %c0_i32_1 = arith.constant 0 : i32
    return %c0_i32, %c0_i32_0 : i32, i32
  }
  func.func @transform_1(%arg0: i32) -> (i32, i32) {
    %c0_i32 = arith.constant 0 : i32
    %c0_i32_0 = arith.constant 0 : i32
    return %c0_i32, %arg0 : i32, i32
  }
  func.func @transform_2(%arg0: i32) -> (i32, i32) {
    %c0_i32 = arith.constant 0 : i32
    %c0_i32_0 = arith.constant 0 : i32
    %c0_i32_1 = arith.constant 0 : i32
    return %c0_i32, %c0_i32_0 : i32, i32
  }
  func.func @transform_3(%arg0: i32) -> (i32, i32) {
    %c0_i32 = arith.constant 0 : i32
    %c0_i32_0 = arith.constant 0 : i32
    return %c0_i32, %arg0 : i32, i32
  }
}

module attributes {stable_mosaic.version = 11 : i64} {
  func.func @_conv_matmul_kernel(%arg0: i32, %arg1: memref<64x864xbf16, #tpu.memory_space<vmem>>, %arg2: memref<864x128xbf16, #tpu.memory_space<vmem>>, %arg3: memref<64x1xf32, #tpu.memory_space<vmem>>, %arg4: memref<64x128xf32, #tpu.memory_space<vmem>>) attributes {dimension_semantics = [#tpu.dimension_semantics<parallel>], iteration_bounds = array<i64: 1>, scalar_prefetch = 0 : i64, scratch_operands = 0 : i64, tpu.core_type = #tpu.core_type<tc>, window_params = [{pipeline_mode = #tpu.pipeline_mode<synchronous>, transform_indices = @transform_0, window_bounds = array<i64: 64, 864>}, {transform_indices = @transform_1, window_bounds = array<i64: 864, 128>}, {pipeline_mode = #tpu.pipeline_mode<synchronous>, transform_indices = @transform_2, window_bounds = array<i64: 64, 1>}, {transform_indices = @transform_3, window_bounds = array<i64: 64, 128>}]} {
    %c0 = arith.constant 0 : index
    %c0_0 = arith.constant 0 : index
    %0 = vector.load %arg1[%c0, %c0_0] : memref<64x864xbf16, #tpu.memory_space<vmem>>, vector<64x864xbf16>
    %c0_1 = arith.constant 0 : index
    %c0_2 = arith.constant 0 : index
    %1 = vector.load %arg2[%c0_1, %c0_2] : memref<864x128xbf16, #tpu.memory_space<vmem>>, vector<864x128xbf16>
    %cst = arith.constant dense<0.000000e+00> : vector<64x128xf32>
    %2 = tpu.matmul %0, %1, %cst {dimension_numbers = #tpu.dot_dimension_numbers<[1], [0], [0], [1], [0, 0, 1, 1], [], []>} : vector<64x864xbf16>, vector<864x128xbf16>, vector<64x128xf32> -> vector<64x128xf32>
    %c0_3 = arith.constant 0 : index
    %c0_4 = arith.constant 0 : index
    %3 = vector.load %arg3[%c0_3, %c0_4] : memref<64x1xf32, #tpu.memory_space<vmem>>, vector<64x1xf32>
    %4 = vector.broadcast %3 : vector<64x1xf32> to vector<64x128xf32>
    %5 = arith.addf %2, %4 : vector<64x128xf32>
    %cst_5 = arith.constant 0.000000e+00 : f32
    %6 = vector.broadcast %cst_5 : f32 to vector<64x128xf32>
    %7 = arith.maximumf %5, %6 : vector<64x128xf32>
    %c0_6 = arith.constant 0 : index
    %c0_7 = arith.constant 0 : index
    %8 = vector.load %arg4[%c0_6, %c0_7] : memref<64x128xf32, #tpu.memory_space<vmem>>, vector<64x128xf32>
    tpu.vector_store %arg4[%c0_6, %c0_7], %7 {strides = array<i32>} : memref<64x128xf32, #tpu.memory_space<vmem>>, vector<64x128xf32>,
    return
  }
  func.func @transform_0(%arg0: i32) -> (i32, i32) {
    %c0_i32 = arith.constant 0 : i32
    %c0_i32_0 = arith.constant 0 : i32
    %c0_i32_1 = arith.constant 0 : i32
    return %c0_i32, %c0_i32_0 : i32, i32
  }
  func.func @transform_1(%arg0: i32) -> (i32, i32) {
    %c0_i32 = arith.constant 0 : i32
    %c0_i32_0 = arith.constant 0 : i32
    return %c0_i32, %arg0 : i32, i32
  }
  func.func @transform_2(%arg0: i32) -> (i32, i32) {
    %c0_i32 = arith.constant 0 : i32
    %c0_i32_0 = arith.constant 0 : i32
    %c0_i32_1 = arith.constant 0 : i32
    return %c0_i32, %c0_i32_0 : i32, i32
  }
  func.func @transform_3(%arg0: i32) -> (i32, i32) {
    %c0_i32 = arith.constant 0 : i32
    %c0_i32_0 = arith.constant 0 : i32
    return %c0_i32, %arg0 : i32, i32
  }
}

module attributes {stable_mosaic.version = 11 : i64} {
  func.func @kernel(%arg0: memref<16x4096xf32, #tpu.memory_space<vmem>>, %arg1: memref<16x4096xf32, #tpu.memory_space<vmem>>, %arg2: memref<32x512xf32, #tpu.memory_space<vmem>>, %arg3: memref<32x512xf32, #tpu.memory_space<vmem>>, %arg4: memref<64x64xf32, #tpu.memory_space<vmem>>, %arg5: memref<64x64xf32, #tpu.memory_space<vmem>>, %arg6: memref<1x128xf32, #tpu.memory_space<vmem>>) attributes {dimension_semantics = [], scalar_prefetch = 0 : i64, scratch_operands = 0 : i64, tpu.core_type = #tpu.core_type<tc>} {
    %c0 = arith.constant 0 : index
    %c0_0 = arith.constant 0 : index
    %0 = vector.load %arg0[%c0, %c0_0] : memref<16x4096xf32, #tpu.memory_space<vmem>>, vector<16x4096xf32>
    %c0_1 = arith.constant 0 : index
    %c0_2 = arith.constant 0 : index
    %1 = vector.load %arg1[%c0_1, %c0_2] : memref<16x4096xf32, #tpu.memory_space<vmem>>, vector<16x4096xf32>
    %2 = arith.mulf %0, %0 : vector<16x4096xf32>
    %cst = arith.constant dense<0.000000e+00> : vector<4096xf32>
    %3 = vector.multi_reduction <add>, %2, %cst [0] : vector<16x4096xf32> to vector<4096xf32>
    %4 = vector.shape_cast %3 : vector<4096xf32> to vector<1x4096xf32>
    %cst_3 = arith.constant 1.000000e-10 : f32
    %5 = vector.broadcast %cst_3 : f32 to vector<1x4096xf32>
    %6 = arith.addf %4, %5 : vector<1x4096xf32>
    %7 = math.rsqrt %6 : vector<1x4096xf32>
    %8 = vector.broadcast %7 : vector<1x4096xf32> to vector<16x4096xf32>
    %9 = arith.mulf %0, %8 : vector<16x4096xf32>
    %10 = arith.mulf %1, %1 : vector<16x4096xf32>
    %cst_4 = arith.constant dense<0.000000e+00> : vector<4096xf32>
    %11 = vector.multi_reduction <add>, %10, %cst_4 [0] : vector<16x4096xf32> to vector<4096xf32>
    %12 = vector.shape_cast %11 : vector<4096xf32> to vector<1x4096xf32>
    %cst_5 = arith.constant 1.000000e-10 : f32
    %13 = vector.broadcast %cst_5 : f32 to vector<1x4096xf32>
    %14 = arith.addf %12, %13 : vector<1x4096xf32>
    %15 = math.rsqrt %14 : vector<1x4096xf32>
    %16 = vector.broadcast %15 : vector<1x4096xf32> to vector<16x4096xf32>
    %17 = arith.mulf %1, %16 : vector<16x4096xf32>
    %18 = arith.subf %9, %17 : vector<16x4096xf32>
    %19 = arith.subf %9, %17 : vector<16x4096xf32>
    %20 = arith.mulf %18, %19 : vector<16x4096xf32>
    %cst_6 = arith.constant dense<0.000000e+00> : vector<16xf32>
    %21 = vector.multi_reduction <add>, %20, %cst_6 [1] : vector<16x4096xf32> to vector<16xf32>
    %22 = vector.shape_cast %21 : vector<16xf32> to vector<16x1xf32>
    %cst_7 = arith.constant dense<0.000000e+00> : vector<1xf32>
    %23 = vector.multi_reduction <add>, %22, %cst_7 [0] : vector<16x1xf32> to vector<1xf32>
    %24 = vector.shape_cast %23 : vector<1xf32> to vector<1x1xf32>
    %cst_8 = arith.constant 3.05175786E-6 : f32
    %25 = vector.broadcast %cst_8 : f32 to vector<1x1xf32>
    %26 = arith.mulf %25, %24 : vector<1x1xf32>
    %c0_9 = arith.constant 0 : index
    %c0_10 = arith.constant 0 : index
    %27 = vector.load %arg2[%c0_9, %c0_10] : memref<32x512xf32, #tpu.memory_space<vmem>>, vector<32x512xf32>
    %c0_11 = arith.constant 0 : index
    %c0_12 = arith.constant 0 : index
    %28 = vector.load %arg3[%c0_11, %c0_12] : memref<32x512xf32, #tpu.memory_space<vmem>>, vector<32x512xf32>
    %29 = arith.mulf %27, %27 : vector<32x512xf32>
    %cst_13 = arith.constant dense<0.000000e+00> : vector<512xf32>
    %30 = vector.multi_reduction <add>, %29, %cst_13 [0] : vector<32x512xf32> to vector<512xf32>
    %31 = vector.shape_cast %30 : vector<512xf32> to vector<1x512xf32>
    %cst_14 = arith.constant 1.000000e-10 : f32
    %32 = vector.broadcast %cst_14 : f32 to vector<1x512xf32>
    %33 = arith.addf %31, %32 : vector<1x512xf32>
    %34 = math.rsqrt %33 : vector<1x512xf32>
    %35 = vector.broadcast %34 : vector<1x512xf32> to vector<32x512xf32>
    %36 = arith.mulf %27, %35 : vector<32x512xf32>
    %37 = arith.mulf %28, %28 : vector<32x512xf32>
    %cst_15 = arith.constant dense<0.000000e+00> : vector<512xf32>
    %38 = vector.multi_reduction <add>, %37, %cst_15 [0] : vector<32x512xf32> to vector<512xf32>
    %39 = vector.shape_cast %38 : vector<512xf32> to vector<1x512xf32>
    %cst_16 = arith.constant 1.000000e-10 : f32
    %40 = vector.broadcast %cst_16 : f32 to vector<1x512xf32>
    %41 = arith.addf %39, %40 : vector<1x512xf32>
    %42 = math.rsqrt %41 : vector<1x512xf32>
    %43 = vector.broadcast %42 : vector<1x512xf32> to vector<32x512xf32>
    %44 = arith.mulf %28, %43 : vector<32x512xf32>
    %45 = arith.subf %36, %44 : vector<32x512xf32>
    %46 = arith.subf %36, %44 : vector<32x512xf32>
    %47 = arith.mulf %45, %46 : vector<32x512xf32>
    %cst_17 = arith.constant dense<0.000000e+00> : vector<32xf32>
    %48 = vector.multi_reduction <add>, %47, %cst_17 [1] : vector<32x512xf32> to vector<32xf32>
    %49 = vector.shape_cast %48 : vector<32xf32> to vector<32x1xf32>
    %cst_18 = arith.constant dense<0.000000e+00> : vector<1xf32>
    %50 = vector.multi_reduction <add>, %49, %cst_18 [0] : vector<32x1xf32> to vector<1xf32>
    %51 = vector.shape_cast %50 : vector<1xf32> to vector<1x1xf32>
    %cst_19 = arith.constant 1.83105476E-5 : f32
    %52 = vector.broadcast %cst_19 : f32 to vector<1x1xf32>
    %53 = arith.mulf %52, %51 : vector<1x1xf32>
    %54 = arith.addf %26, %53 : vector<1x1xf32>
    %c0_20 = arith.constant 0 : index
    %c0_21 = arith.constant 0 : index
    %55 = vector.load %arg4[%c0_20, %c0_21] : memref<64x64xf32, #tpu.memory_space<vmem>>, vector<64x64xf32>
    %c0_22 = arith.constant 0 : index
    %c0_23 = arith.constant 0 : index
    %56 = vector.load %arg5[%c0_22, %c0_23] : memref<64x64xf32, #tpu.memory_space<vmem>>, vector<64x64xf32>
    %57 = arith.mulf %55, %55 : vector<64x64xf32>
    %cst_24 = arith.constant dense<0.000000e+00> : vector<64xf32>
    %58 = vector.multi_reduction <add>, %57, %cst_24 [0] : vector<64x64xf32> to vector<64xf32>
    %59 = vector.shape_cast %58 : vector<64xf32> to vector<1x64xf32>
    %cst_25 = arith.constant 1.000000e-10 : f32
    %60 = vector.broadcast %cst_25 : f32 to vector<1x64xf32>
    %61 = arith.addf %59, %60 : vector<1x64xf32>
    %62 = math.rsqrt %61 : vector<1x64xf32>
    %63 = vector.broadcast %62 : vector<1x64xf32> to vector<64x64xf32>
    %64 = arith.mulf %55, %63 : vector<64x64xf32>
    %65 = arith.mulf %56, %56 : vector<64x64xf32>
    %cst_26 = arith.constant dense<0.000000e+00> : vector<64xf32>
    %66 = vector.multi_reduction <add>, %65, %cst_26 [0] : vector<64x64xf32> to vector<64xf32>
    %67 = vector.shape_cast %66 : vector<64xf32> to vector<1x64xf32>
    %cst_27 = arith.constant 1.000000e-10 : f32
    %68 = vector.broadcast %cst_27 : f32 to vector<1x64xf32>
    %69 = arith.addf %67, %68 : vector<1x64xf32>
    %70 = math.rsqrt %69 : vector<1x64xf32>
    %71 = vector.broadcast %70 : vector<1x64xf32> to vector<64x64xf32>
    %72 = arith.mulf %56, %71 : vector<64x64xf32>
    %73 = arith.subf %64, %72 : vector<64x64xf32>
    %74 = arith.subf %64, %72 : vector<64x64xf32>
    %75 = arith.mulf %73, %74 : vector<64x64xf32>
    %cst_28 = arith.constant dense<0.000000e+00> : vector<64xf32>
    %76 = vector.multi_reduction <add>, %75, %cst_28 [1] : vector<64x64xf32> to vector<64xf32>
    %77 = vector.shape_cast %76 : vector<64xf32> to vector<64x1xf32>
    %cst_29 = arith.constant dense<0.000000e+00> : vector<1xf32>
    %78 = vector.multi_reduction <add>, %77, %cst_29 [0] : vector<64x1xf32> to vector<1xf32>
    %79 = vector.shape_cast %78 : vector<1xf32> to vector<1x1xf32>
    %cst_30 = arith.constant 1.22070313E-4 : f32
    %80 = vector.broadcast %cst_30 : f32 to vector<1x1xf32>
    %81 = arith.mulf %80, %79 : vector<1x1xf32>
    %82 = arith.addf %54, %81 : vector<1x1xf32>
    %83 = vector.shape_cast %82 : vector<1x1xf32> to vector<1x1xf32>
    %84 = vector.broadcast %83 : vector<1x1xf32> to vector<1x128xf32>
    %c0_31 = arith.constant 0 : index
    %c0_32 = arith.constant 0 : index
    %85 = vector.load %arg6[%c0_31, %c0_32] : memref<1x128xf32, #tpu.memory_space<vmem>>, vector<1x128xf32>
    tpu.vector_store %arg6[%c0_31, %c0_32], %84 {strides = array<i32>} : memref<1x128xf32, #tpu.memory_space<vmem>>, vector<1x128xf32>,
    return
  }
}

</mosaic_0001>

<llo_original>
// kernel: lpips.4
$region0: #{lpips.4}
  #allocation0 [shape = 'u32[]', space=smem, size = 0x4, offset = 0x4, fixed_abs, tag = 'smem constant byte address 0x4 - core index']
  #allocation1 [shape = 'u32[144,128]{1,0:T(1,128)}', space=vmem, size = 0x12000, scoped, tag = 'internal scratch']
  %s0 = inlined_call_operand.vmem [shape: bf16[16,27], index: 0, kind: input, shape index: {}]
  %s1 = inlined_call_operand.vmem [shape: bf16[27,8192], index: 1, kind: input, shape index: {}]
  %s2 = inlined_call_operand.vmem [shape: f32[16,1], index: 2, kind: input, shape index: {}]
  %s3 = inlined_call_operand.vmem [shape: f32[16,8192], index: 3, kind: output, shape index: {}]
  %s4 = sld [smem:[#allocation0]]
  $region87: #{lpips.4} parent=0
    _
  %s6 = ssub.s32 1, %s4
  %s7 = scalar_select 0, %s6, %s4
  $region1: #{lpips.4} parent=0
    #allocation2 [shape = 'u8[262144]{0}', space=vmem, size = 0x40000, scoped, tag = 'input window, operand 1']
    #allocation3 [shape = 'u8[262144]{0}', space=vmem, size = 0x40000, scoped, tag = 'output window, operand 0']
    loop: start=0, step=1, limit=6
    $region2: #{lpips.4} parent=1 // loop_pre_header
      _
    $region3: #{lpips.4} parent=1 // loop_header
      %s9 = sphi 0, %s13
      %p10 = scmp.ge.s32.totalorder %s9, 6
      %s17 = sphi 0, %s17
      %s19 = sphi 0, %s17
      %s20 = sphi 0, %s19
      %s34 = sphi 0, %s20
      %s40 = sphi 0, %s42
      %s43 = sphi 0, %s40
      %s44 = sphi 0, %s43
      %s60 = sphi 0, %s44
      %s64 = sphi 0, %s64
      %s66 = sphi 0, %s64
      %s67 = sphi 0, %s66
      %s81 = sphi 0, %s67
      %s87 = sphi 0, %s89
      %s90 = sphi 0, %s87
      %s91 = sphi 0, %s90
      %s107 = sphi 0, %s91
    $region4: #{lpips.4} parent=1 // loop_header_branch
      %12 = sbr.rel (%p10) target = $region8
    $region5: #{lpips.4} parent=1 // loop_body
      %s14 = ssub.s32 %s9, 1
      %s15 = ssub.s32 %s9, 2
      %s16 = sadd.s32 %s9, 1
      %s18 = sadd.s32 %s17, 1
      %p21 = scmp.eq.s32.totalorder %s9, 3
      %p22 = scmp.ne.s32.totalorder %s17, %s19
      %p23 = scmp.eq.s32.totalorder %s9, 0
      %p24 = por %p22, %p23
      %p25 = scmp.ne.s32.totalorder %s17, %s19
      %p26 = scmp.eq.s32.totalorder %s14, 3
      %p27 = por %p25, %p26
      %p28 = scmp.ne.s32.totalorder %s19, %s20
      %p29 = scmp.eq.s32.totalorder %s14, 0
      %p30 = por %p28, %p29
      %p31 = scmp.ne.s32.totalorder %s19, %s20
      %p32 = scmp.eq.s32.totalorder %s15, 3
      %p33 = por %p31, %p32
      %p35 = scmp.ne.s32.totalorder %s20, %s34
      %p36 = scmp.eq.s32.totalorder %s15, 0
      %p37 = por %p35, %p36
      %s38 = ssub.s32 %s9, %s16
      %p39 = scmp.eq.s32.totalorder %s38, 0
      %s41 = sadd.s32 %s40, 1
      %s42 = scalar_select %p39, %s40, %s41
      %p45 = pneg %p39
      %p46 = scmp.eq.s32.totalorder %s9, 3
      %p47 = por %p45, %p46
      %p48 = scmp.ne.s32.totalorder %s40, %s43
      %p49 = scmp.eq.s32.totalorder %s9, 0
      %p50 = por %p48, %p49
      %p51 = scmp.ne.s32.totalorder %s40, %s43
      %p52 = scmp.eq.s32.totalorder %s14, 3
      %p53 = por %p51, %p52
      %p54 = scmp.ne.s32.totalorder %s43, %s44
      %p55 = scmp.eq.s32.totalorder %s14, 0
      %p56 = por %p54, %p55
      %p57 = scmp.ne.s32.totalorder %s43, %s44
      %p58 = scmp.eq.s32.totalorder %s15, 3
      %p59 = por %p57, %p58
      %p61 = scmp.ne.s32.totalorder %s44, %s60
      %p62 = scmp.eq.s32.totalorder %s15, 0
      %p63 = por %p61, %p62
      %s65 = sadd.s32 %s64, 1
      %p68 = scmp.eq.s32.totalorder %s9, 3
      %p69 = scmp.ne.s32.totalorder %s64, %s66
      %p70 = scmp.eq.s32.totalorder %s9, 0
      %p71 = por %p69, %p70
      %p72 = scmp.ne.s32.totalorder %s64, %s66
      %p73 = scmp.eq.s32.totalorder %s14, 3
      %p74 = por %p72, %p73
      %p75 = scmp.ne.s32.totalorder %s66, %s67
      %p76 = scmp.eq.s32.totalorder %s14, 0
      %p77 = por %p75, %p76
      %p78 = scmp.ne.s32.totalorder %s66, %s67
      %p79 = scmp.eq.s32.totalorder %s15, 3
      %p80 = por %p78, %p79
      %p82 = scmp.ne.s32.totalorder %s67, %s81
      %p83 = scmp.eq.s32.totalorder %s15, 0
      %p84 = por %p82, %p83
      %s85 = ssub.s32 %s9, %s16
      %p86 = scmp.eq.s32.totalorder %s85, 0
      %s88 = sadd.s32 %s87, 1
      %s89 = scalar_select %p86, %s87, %s88
      %p92 = pneg %p86
      %p93 = scmp.eq.s32.totalorder %s9, 3
      %p94 = por %p92, %p93
      %p95 = scmp.ne.s32.totalorder %s87, %s90
      %p96 = scmp.eq.s32.totalorder %s9, 0
      %p97 = por %p95, %p96
      %p98 = scmp.ne.s32.totalorder %s87, %s90
      %p99 = scmp.eq.s32.totalorder %s14, 3
      %p100 = por %p98, %p99
      %p101 = scmp.ne.s32.totalorder %s90, %s91
      %p102 = scmp.eq.s32.totalorder %s14, 0
      %p103 = por %p101, %p102
      %p104 = scmp.ne.s32.totalorder %s90, %s91
      %p105 = scmp.eq.s32.totalorder %s15, 3
      %p106 = por %p104, %p105
      %p108 = scmp.ne.s32.totalorder %s91, %s107
      %p109 = scmp.eq.s32.totalorder %s15, 0
      %p110 = por %p108, %p109
      %p111 = scmp.le.s32.totalorder 1, %s9
      %p112 = scmp.lt.s32.totalorder %s9, 5
      %p113 = pnand %p111, %p112
      %p114 = pneg %p113
      // Predicated region
      $region9: #{lpips.4} parent=5 // pred_check
        _
      $region10: #{lpips.4} parent=5 // pred_check_branch
        %116 = sbr.rel (%p113) target = $region12
      $region11: #{lpips.4} parent=5 // pred_region
        %s117 = ssub.s32 %s9, 1
        // Predicated region
        $region13: #{lpips.4} parent=11 // pred_check
          %p118 = pneg %p30
        $region14: #{lpips.4} parent=11 // pred_check_branch
          %120 = sbr.rel (%p118) target = $region16
        $region15: #{lpips.4} parent=11 // pred_region
          _
        $region16: #{lpips.4} parent=11 // pred_fallthru
          _
        // Predicated region
        $region17: #{lpips.4} parent=11 // pred_check
          %p121 = pneg %p77
        $region18: #{lpips.4} parent=11 // pred_check_branch
          %123 = sbr.rel (%p121) target = $region20
        $region19: #{lpips.4} parent=11 // pred_region
          _
        $region20: #{lpips.4} parent=11 // pred_fallthru
          _
      $region12: #{lpips.4} parent=5 // pred_fallthru
        _
      %p124 = scmp.lt.s32.totalorder %s9, 4
      // Predicated region
      $region21: #{lpips.4} parent=5 // pred_check
        %p125 = pneg %p124
      $region22: #{lpips.4} parent=5 // pred_check_branch
        %127 = sbr.rel (%p125) target = $region24
      $region23: #{lpips.4} parent=5 // pred_region
        // Predicated region
        $region25: #{lpips.4} parent=23 // pred_check
          %p128 = pneg %p50
        $region26: #{lpips.4} parent=23 // pred_check_branch
          %130 = sbr.rel (%p128) target = $region28
        $region27: #{lpips.4} parent=23 // pred_region
          %s131 = sand.u32 %s40, 1
          %s132 = sand.u32 %s40, 1
          %s133 = smul.addr %s132, 256
          %s134 = scalar_lea.vmem [#allocation2], %s133
          %s135 = smul.u32 16, %s9
          %s136 = smul.addr %s135, 4
          %s137 = scalar_lea.vmem %s1, %s136
          // Predicated region
          $region29: #{lpips.4} parent=27 // pred_check
            _
          $region30: #{lpips.4} parent=27 // pred_check_branch
            %139 = sbr.rel (0) target = $region32
          $region31: #{lpips.4} parent=27 // pred_region
            // Predicated region
            $region33: #{lpips.4} parent=31 // pred_check
              _
            $region34: #{lpips.4} parent=31 // pred_check_branch
              %141 = sbr.rel (0) target = $region36
            $region35: #{lpips.4} parent=31 // pred_region
              loop: start=0, step=1, limit=1
              $region37: #{lpips.4} parent=35 // loop_pre_header
                _
              $region38: #{lpips.4} parent=35 // loop_header
                %s143 = sphi 0, %s147
                %p144 = scmp.ge.s32.totalorder %s143, 1
                %s148 = sphi %s137, %s137
                %s149 = sphi %s134, %s134
              $region39: #{lpips.4} parent=35 // loop_header_branch
                %146 = sbr.rel (%p144) target = $region43
              $region40: #{lpips.4} parent=35 // loop_body
                %v150 = vld [vmem:[%s148] sm:$0xff]
                %151 = vst [vmem:[%s149] sm:$0xff] %v150
                %v152 = vld [vmem:[%s148 + $0x8] sm:$0xff]
                %153 = vst [vmem:[%s149 + $0x8] sm:$0xff] %v152
                %v154 = vld [vmem:[%s148 + $0x10] sm:$0xff]
                %155 = vst [vmem:[%s149 + $0x10] sm:$0xff] %v154
                %v156 = vld [vmem:[%s148 + $0x18] sm:$0xff]
                %157 = vst [vmem:[%s149 + $0x18] sm:$0xff] %v156
                %v158 = vld [vmem:[%s148 + $0x20] sm:$0xff]
                %159 = vst [vmem:[%s149 + $0x20] sm:$0xff] %v158
                %v160 = vld [vmem:[%s148 + $0x28] sm:$0xff]
                %161 = vst [vmem:[%s149 + $0x28] sm:$0xff] %v160
                %v162 = vld [vmem:[%s148 + $0x30] sm:$0xff]
                %163 = vst [vmem:[%s149 + $0x30] sm:$0xff] %v162
                %v164 = vld [vmem:[%s148 + $0x38] sm:$0xff]
                %165 = vst [vmem:[%s149 + $0x38] sm:$0xff] %v164
                %v166 = vld [vmem:[%s148 + $0x100] sm:$0xff]
                %167 = vst [vmem:[%s149 + $0x40] sm:$0xff] %v166
                %v168 = vld [vmem:[%s148 + $0x108] sm:$0xff]
                %169 = vst [vmem:[%s149 + $0x48] sm:$0xff] %v168
                %v170 = vld [vmem:[%s148 + $0x110] sm:$0xff]
                %171 = vst [vmem:[%s149 + $0x50] sm:$0xff] %v170
                %v172 = vld [vmem:[%s148 + $0x118] sm:$0xff]
                %173 = vst [vmem:[%s149 + $0x58] sm:$0xff] %v172
                %v174 = vld [vmem:[%s148 + $0x120] sm:$0xff]
                %175 = vst [vmem:[%s149 + $0x60] sm:$0xff] %v174
                %v176 = vld [vmem:[%s148 + $0x128] sm:$0xff]
                %177 = vst [vmem:[%s149 + $0x68] sm:$0xff] %v176
                %v178 = vld [vmem:[%s148 + $0x130] sm:$0xff]
                %179 = vst [vmem:[%s149 + $0x70] sm:$0xff] %v178
                %v180 = vld [vmem:[%s148 + $0x138] sm:$0xff]
                %181 = vst [vmem:[%s149 + $0x78] sm:$0xff] %v180
                %v182 = vld [vmem:[%s148 + $0x200] sm:$0xff]
                %183 = vst [vmem:[%s149 + $0x80] sm:$0xff] %v182
                %v184 = vld [vmem:[%s148 + $0x208] sm:$0xff]
                %185 = vst [vmem:[%s149 + $0x88] sm:$0xff] %v184
                %v186 = vld [vmem:[%s148 + $0x210] sm:$0xff]
                %187 = vst [vmem:[%s149 + $0x90] sm:$0xff] %v186
                %v188 = vld [vmem:[%s148 + $0x218] sm:$0xff]
                %189 = vst [vmem:[%s149 + $0x98] sm:$0xff] %v188
                %v190 = vld [vmem:[%s148 + $0x220] sm:$0xff]
                %191 = vst [vmem:[%s149 + $0xa0] sm:$0xff] %v190
                %v192 = vld [vmem:[%s148 + $0x228] sm:$0xff]
                %193 = vst [vmem:[%s149 + $0xa8] sm:$0xff] %v192
                %v194 = vld [vmem:[%s148 + $0x230] sm:$0xff]
                %195 = vst [vmem:[%s149 + $0xb0] sm:$0xff] %v194
                %v196 = vld [vmem:[%s148 + $0x238] sm:$0xff]
                %197 = vst [vmem:[%s149 + $0xb8] sm:$0xff] %v196
                %v198 = vld [vmem:[%s148 + $0x300] sm:$0xff]
                %199 = vst [vmem:[%s149 + $0xc0] sm:$0xff] %v198
                %v200 = vld [vmem:[%s148 + $0x308] sm:$0xff]
                %201 = vst [vmem:[%s149 + $0xc8] sm:$0xff] %v200
                %v202 = vld [vmem:[%s148 + $0x310] sm:$0xff]
                %203 = vst [vmem:[%s149 + $0xd0] sm:$0xff] %v202
                %v204 = vld [vmem:[%s148 + $0x318] sm:$0xff]
                %205 = vst [vmem:[%s149 + $0xd8] sm:$0xff] %v204
                %v206 = vld [vmem:[%s148 + $0x320] sm:$0xff]
                %207 = vst [vmem:[%s149 + $0xe0] sm:$0xff] %v206
                %v208 = vld [vmem:[%s148 + $0x328] sm:$0xff]
                %209 = vst [vmem:[%s149 + $0xe8] sm:$0xff] %v208
                %v210 = vld [vmem:[%s148 + $0x330] sm:$0xff]
                %211 = vst [vmem:[%s149 + $0xf0] sm:$0xff] %v210
                %v212 = vld [vmem:[%s148 + $0x338] sm:$0xff]
                %213 = vst [vmem:[%s149 + $0xf8] sm:$0xff] %v212
              $region41: #{lpips.4} parent=35 // loop_footer
                %s147 = sadd.s32 1, %s143
              $region42: #{lpips.4} parent=35 // loop_footer_branch
                %142 = sbr.rel target = $region38
              $region43: #{lpips.4} parent=35 // loop_exit
                _
            $region36: #{lpips.4} parent=31 // pred_fallthru
              _
            // Predicated region
            $region44: #{lpips.4} parent=31 // pred_check
              _
            $region45: #{lpips.4} parent=31 // pred_check_branch
              %215 = sbr.rel target = $region47
            $region46: #{lpips.4} parent=31 // pred_region
              _
            $region47: #{lpips.4} parent=31 // pred_fallthru
              _
          $region32: #{lpips.4} parent=27 // pred_fallthru
            _
          %216 = vnop
        $region28: #{lpips.4} parent=23 // pred_fallthru
          _
      $region24: #{lpips.4} parent=5 // pred_fallthru
        _
      %p217 = scmp.le.s32.totalorder 1, %s9
      %p218 = scmp.lt.s32.totalorder %s9, 5
      %p219 = pnand %p217, %p218
      %p220 = pneg %p219
      // Predicated region
      $region48: #{lpips.4} parent=5 // pred_check
        _
      $region49: #{lpips.4} parent=5 // pred_check_branch
        %222 = sbr.rel (%p219) target = $region51
      $region50: #{lpips.4} parent=5 // pred_region
        %s223 = ssub.s32 %s9, 1
        %s224 = sand.u32 %s43, 1
        %s225 = sand.u32 %s43, 1
        %s226 = smul.addr %s225, 256
        %s227 = scalar_lea.vmem [#allocation2], %s226
        // Predicated region
        $region52: #{lpips.4} parent=50 // pred_check
          %p228 = pneg %p56
        $region53: #{lpips.4} parent=50 // pred_check_branch
          %230 = sbr.rel (%p228) target = $region55
        $region54: #{lpips.4} parent=50 // pred_region
          _
        $region55: #{lpips.4} parent=50 // pred_fallthru
          _
        %p231 = pneg %p30
        %p232 = pneg %p27
        %s233 = sand.u32 %s43, 1
        %s234 = sand.u32 %s43, 1
        %s235 = smul.addr %s234, 256
        %s236 = scalar_lea.vmem [#allocation2], %s235
        %p237 = pneg %p56
        %p238 = pneg %p53
        %p239 = pneg %p77
        %p240 = pneg %p74
        %p241 = pneg %p103
        %p242 = pneg %p100
        %s243 = sand.u32 %s90, 1
        %s244 = sand.u32 %s90, 1
        %s245 = smul.addr %s244, 256
        %s246 = scalar_lea.vmem [#allocation3], %s245
        %s247 = smul.u32 16, %s14
        %s248 = smul.u32 16, %s14
        %v250 = vld [vmem:[%s0] sm:$0xf]
        %v251 = vld [vmem:[%s0 + $0x4] sm:$0xf]
        %v252 = vld [vmem:[%s227] sm:$0xff]
        %v253 = vld [vmem:[%s227 + $0x8] sm:$0xff]
        %v254 = vld [vmem:[%s227 + $0x10] sm:$0xff]
        %v255 = vld [vmem:[%s227 + $0x18] sm:$0xff]
        %v256 = vld [vmem:[%s227 + $0x20] sm:$0xff]
        %v257 = vld [vmem:[%s227 + $0x28] sm:$0xff]
        %v258 = vld [vmem:[%s227 + $0x30] sm:$0xff]
        %v259 = vld [vmem:[%s227 + $0x38] sm:$0xff]
        %v260 = vld [vmem:[%s227 + $0x40] sm:$0xff]
        %v261 = vld [vmem:[%s227 + $0x48] sm:$0xff]
        %v262 = vld [vmem:[%s227 + $0x50] sm:$0xff]
        %v263 = vld [vmem:[%s227 + $0x58] sm:$0xff]
        %v264 = vld [vmem:[%s227 + $0x60] sm:$0xff]
        %v265 = vld [vmem:[%s227 + $0x68] sm:$0xff]
        %v266 = vld [vmem:[%s227 + $0x70] sm:$0xff]
        %v267 = vld [vmem:[%s227 + $0x78] sm:$0xff]
        %v268 = vld [vmem:[%s227 + $0x80] sm:$0xff]
        %v269 = vld [vmem:[%s227 + $0x88] sm:$0xff]
        %v270 = vld [vmem:[%s227 + $0x90] sm:$0xff]
        %v271 = vld [vmem:[%s227 + $0x98] sm:$0xff]
        %v272 = vld [vmem:[%s227 + $0xa0] sm:$0xff]
        %v273 = vld [vmem:[%s227 + $0xa8] sm:$0xff]
        %v274 = vld [vmem:[%s227 + $0xb0] sm:$0xff]
        %v275 = vld [vmem:[%s227 + $0xb8] sm:$0xff]
        %v276 = vld [vmem:[%s227 + $0xc0] sm:$0x33]
        %v277 = vld [vmem:[%s227 + $0xc8] sm:$0x33]
        %v278 = vld [vmem:[%s227 + $0xd0] sm:$0x33]
        %v279 = vld [vmem:[%s227 + $0xd8] sm:$0x33]
        %v280 = vld [vmem:[%s227 + $0xe0] sm:$0x33]
        %v281 = vld [vmem:[%s227 + $0xe8] sm:$0x33]
        %v282 = vld [vmem:[%s227 + $0xf0] sm:$0x33]
        %v283 = vld [vmem:[%s227 + $0xf8] sm:$0x33]
        %v284 = vld [vmem:[%s2] sm:$0xff]
        %v285 = vld [vmem:[%s2 + $0x8] sm:$0xff]
        %287 = vset.pattern.permute.xlu0 0
        %288 = vperm.xlu0 %287, %v284
        %v289 = vpop.permute.xlu0 %288
        %292 = vset.pattern.permute.xlu0 0
        %293 = vperm.xlu0 %292, %v285
        %v294 = vpop.permute.xlu0 %293
        %v298 = vunpack.c.l.b16 %v250
        %v299 = vunpack.c.l.b16 %v251
        %v300 = vpack.c.b16 %v299, %v298
        %v333 = vunpack.c.l.b16 %v252
        %v334 = vunpack.c.h.b16 %v252
        %v335 = vunpack.c.l.b16 %v253
        %v336 = vunpack.c.h.b16 %v253
        %v337 = vunpack.c.l.b16 %v254
        %v338 = vunpack.c.h.b16 %v254
        %v339 = vunpack.c.l.b16 %v255
        %v340 = vunpack.c.h.b16 %v255
        %v341 = vunpack.c.l.b16 %v256
        %v342 = vunpack.c.h.b16 %v256
        %v343 = vunpack.c.l.b16 %v257
        %v344 = vunpack.c.h.b16 %v257
        %v345 = vunpack.c.l.b16 %v258
        %v346 = vunpack.c.h.b16 %v258
        %v347 = vunpack.c.l.b16 %v259
        %v348 = vunpack.c.h.b16 %v259
        %v349 = vunpack.c.l.b16 %v260
        %v350 = vunpack.c.h.b16 %v260
        %v351 = vunpack.c.l.b16 %v261
        %v352 = vunpack.c.h.b16 %v261
        %v353 = vunpack.c.l.b16 %v262
        %v354 = vunpack.c.h.b16 %v262
        %v355 = vunpack.c.l.b16 %v263
        %v356 = vunpack.c.h.b16 %v263
        %v357 = vunpack.c.l.b16 %v264
        %v358 = vunpack.c.h.b16 %v264
        %v359 = vunpack.c.l.b16 %v265
        %v360 = vunpack.c.h.b16 %v265
        %v361 = vunpack.c.l.b16 %v266
        %v362 = vunpack.c.h.b16 %v266
        %v363 = vunpack.c.l.b16 %v267
        %v364 = vunpack.c.h.b16 %v267
        %v365 = vunpack.c.l.b16 %v268
        %v366 = vunpack.c.h.b16 %v268
        %v367 = vunpack.c.l.b16 %v269
        %v368 = vunpack.c.h.b16 %v269
        %v369 = vunpack.c.l.b16 %v270
        %v370 = vunpack.c.h.b16 %v270
        %v371 = vunpack.c.l.b16 %v271
        %v372 = vunpack.c.h.b16 %v271
        %v373 = vunpack.c.l.b16 %v272
        %v374 = vunpack.c.h.b16 %v272
        %v375 = vunpack.c.l.b16 %v273
        %v376 = vunpack.c.h.b16 %v273
        %v377 = vunpack.c.l.b16 %v274
        %v378 = vunpack.c.h.b16 %v274
        %v379 = vunpack.c.l.b16 %v275
        %v380 = vunpack.c.h.b16 %v275
        %v381 = vunpack.c.l.b16 %v276
        %v382 = vunpack.c.h.b16 %v276
        %v383 = vunpack.c.l.b16 %v277
        %v384 = vunpack.c.h.b16 %v277
        %v385 = vunpack.c.l.b16 %v278
        %v386 = vunpack.c.h.b16 %v278
        %v387 = vunpack.c.l.b16 %v279
        %v388 = vunpack.c.h.b16 %v279
        %v389 = vunpack.c.l.b16 %v280
        %v390 = vunpack.c.h.b16 %v280
        %v391 = vunpack.c.l.b16 %v281
        %v392 = vunpack.c.h.b16 %v281
        %v393 = vunpack.c.l.b16 %v282
        %v394 = vunpack.c.h.b16 %v282
        %v395 = vunpack.c.l.b16 %v283
        %v396 = vunpack.c.h.b16 %v283
        %v397 = vpack.c.b16 %v349, %v333
        %v398 = vpack.c.b16 %v350, %v334
        %v399 = vpack.c.b16 %v351, %v335
        %v400 = vpack.c.b16 %v352, %v336
        %v401 = vpack.c.b16 %v353, %v337
        %v402 = vpack.c.b16 %v354, %v338
        %v403 = vpack.c.b16 %v355, %v339
        %v404 = vpack.c.b16 %v356, %v340
        %v405 = vpack.c.b16 %v357, %v341
        %v406 = vpack.c.b16 %v358, %v342
        %v407 = vpack.c.b16 %v359, %v343
        %v408 = vpack.c.b16 %v360, %v344
        %v409 = vpack.c.b16 %v361, %v345
        %v410 = vpack.c.b16 %v362, %v346
        %v411 = vpack.c.b16 %v363, %v347
        %v412 = vpack.c.b16 %v364, %v348
        %v413 = vpack.c.b16 %v381, %v365
        %v414 = vpack.c.b16 %v382, %v366
        %v415 = vpack.c.b16 %v383, %v367
        %v416 = vpack.c.b16 %v384, %v368
        %v417 = vpack.c.b16 %v385, %v369
        %v418 = vpack.c.b16 %v386, %v370
        %v419 = vpack.c.b16 %v387, %v371
        %v420 = vpack.c.b16 %v388, %v372
        %v421 = vpack.c.b16 %v389, %v373
        %v422 = vpack.c.b16 %v390, %v374
        %v423 = vpack.c.b16 %v391, %v375
        %v424 = vpack.c.b16 %v392, %v376
        %v425 = vpack.c.b16 %v393, %v377
        %v426 = vpack.c.b16 %v394, %v378
        %v427 = vpack.c.b16 %v395, %v379
        %v428 = vpack.c.b16 %v396, %v380
        %vm445 = vcmask 220160
        %v447 = vsel %vm445, %v300, 0
        %vm449 = vcmask 1044480
        %vm450 = vcmask 1045504
        %v451 = vsel %vm449, 4294967295, 65535
        %v452 = vsel %vm450, %v451, 0
        %v454 = vand.u32 %v413, %v452
        %v457 = vand.u32 %v414, %v452
        %v460 = vand.u32 %v415, %v452
        %v463 = vand.u32 %v416, %v452
        %v466 = vand.u32 %v417, %v452
        %v469 = vand.u32 %v418, %v452
        %v472 = vand.u32 %v419, %v452
        %v475 = vand.u32 %v420, %v452
        %v478 = vand.u32 %v421, %v452
        %v481 = vand.u32 %v422, %v452
        %v484 = vand.u32 %v423, %v452
        %v487 = vand.u32 %v424, %v452
        %v490 = vand.u32 %v425, %v452
        %v493 = vand.u32 %v426, %v452
        %v496 = vand.u32 %v427, %v452
        %v499 = vand.u32 %v428, %v452
        %501 = vmatprep.subr.bf16.mxu0 %v398
        %502 = vmatpush1.bf16.msra.mxu0 %v397
        %503 = vmatprep.subr.bf16.mxu0 %v457
        %504 = vmatpush1.bf16.msra.mxu0 %v454
        %505 = vmatprep.subr.bf16.mxu0 0
        %506 = vmatpush1.bf16.msra.mxu0 0
        %507 = vmatprep.subr.bf16.mxu0 0
        %508 = vmatpush1.bf16.msra.mxu0 0
        %509 = vmatprep.subr.bf16.mxu0 0
        %510 = vmatpush1.bf16.msra.mxu0 0
        %511 = vmatprep.subr.bf16.mxu0 0
        %512 = vmatpush1.bf16.msra.mxu0 0
        %513 = vmatprep.subr.bf16.mxu0 0
        %514 = vmatpush1.bf16.msra.mxu0 0
        %515 = vmatprep.subr.bf16.mxu0 0
        %516 = vmatpush1.bf16.msra.mxu0 0
        %517 = vmatprep.subr.bf16.mxu0 0
        %518 = vmatpush1.bf16.msra.mxu0 0
        %519 = vmatprep.subr.bf16.mxu0 0
        %520 = vmatpush1.bf16.msra.mxu0 0
        %521 = vmatprep.subr.bf16.mxu0 0
        %522 = vmatpush1.bf16.msra.mxu0 0
        %523 = vmatprep.subr.bf16.mxu0 0
        %524 = vmatpush1.bf16.msra.mxu0 0
        %525 = vmatprep.subr.bf16.mxu0 0
        %526 = vmatpush1.bf16.msra.mxu0 0
        %527 = vmatprep.subr.bf16.mxu0 0
        %528 = vmatpush1.bf16.msra.mxu0 0
        %529 = vmatprep.subr.bf16.mxu0 0
        %530 = vmatpush1.bf16.msra.mxu0 0
        %531 = vmatprep.subr.bf16.mxu0 0
        %532 = vmatpush1.bf16.msra.mxu0 0
        %533 = vmatprep.mubr.bf16.mxu0 0
        %534 = vmatmul.mubr.bf16.gmra.mrb[0].mxu0 %v447
        %v535 = vpop.f32.mrb[0].mxu0
        %v536 = vadd.f32 %v289, %v535
        %v537 = vpop.f32.mrb[0].mxu0
        %v538 = vadd.f32 %v289, %v537
        %v539 = vpop.f32.mrb[0].mxu0
        %v540 = vadd.f32 %v294, %v539
        %v541 = vpop.f32.mrb[0].mxu0
        %v542 = vadd.f32 %v294, %v541
        %543 = vdwg.mxu0
        %544 = vmatprep.subr.bf16.mxu0 %v400
        %545 = vmatpush1.bf16.msra.mxu0 %v399
        %546 = vmatprep.subr.bf16.mxu0 %v463
        %547 = vmatpush1.bf16.msra.mxu0 %v460
        %548 = vmatprep.subr.bf16.mxu0 0
        %549 = vmatpush1.bf16.msra.mxu0 0
        %550 = vmatprep.subr.bf16.mxu0 0
        %551 = vmatpush1.bf16.msra.mxu0 0
        %552 = vmatprep.subr.bf16.mxu0 0
        %553 = vmatpush1.bf16.msra.mxu0 0
        %554 = vmatprep.subr.bf16.mxu0 0
        %555 = vmatpush1.bf16.msra.mxu0 0
        %556 = vmatprep.subr.bf16.mxu0 0
        %557 = vmatpush1.bf16.msra.mxu0 0
        %558 = vmatprep.subr.bf16.mxu0 0
        %559 = vmatpush1.bf16.msra.mxu0 0
        %560 = vmatprep.subr.bf16.mxu0 0
        %561 = vmatpush1.bf16.msra.mxu0 0
        %562 = vmatprep.subr.bf16.mxu0 0
        %563 = vmatpush1.bf16.msra.mxu0 0
        %564 = vmatprep.subr.bf16.mxu0 0
        %565 = vmatpush1.bf16.msra.mxu0 0
        %566 = vmatprep.subr.bf16.mxu0 0
        %567 = vmatpush1.bf16.msra.mxu0 0
        %568 = vmatprep.subr.bf16.mxu0 0
        %569 = vmatpush1.bf16.msra.mxu0 0
        %570 = vmatprep.subr.bf16.mxu0 0
        %571 = vmatpush1.bf16.msra.mxu0 0
        %572 = vmatprep.subr.bf16.mxu0 0
        %573 = vmatpush1.bf16.msra.mxu0 0
        %574 = vmatprep.subr.bf16.mxu0 0
        %575 = vmatpush1.bf16.msra.mxu0 0
        %576 = vmatprep.mubr.bf16.mxu0 0
        %577 = vmatmul.mubr.bf16.gmra.mrb[0].mxu0 %v447
        %v578 = vpop.f32.mrb[0].mxu0
        %v579 = vadd.f32 %v289, %v578
        %v580 = vpop.f32.mrb[0].mxu0
        %v581 = vadd.f32 %v289, %v580
        %v582 = vpop.f32.mrb[0].mxu0
        %v583 = vadd.f32 %v294, %v582
        %v584 = vpop.f32.mrb[0].mxu0
        %v585 = vadd.f32 %v294, %v584
        %586 = vdwg.mxu0
        %587 = vmatprep.subr.bf16.mxu0 %v402
        %588 = vmatpush1.bf16.msra.mxu0 %v401
        %589 = vmatprep.subr.bf16.mxu0 %v469
        %590 = vmatpush1.bf16.msra.mxu0 %v466
        %591 = vmatprep.subr.bf16.mxu0 0
        %592 = vmatpush1.bf16.msra.mxu0 0
        %593 = vmatprep.subr.bf16.mxu0 0
        %594 = vmatpush1.bf16.msra.mxu0 0
        %595 = vmatprep.subr.bf16.mxu0 0
        %596 = vmatpush1.bf16.msra.mxu0 0
        %597 = vmatprep.subr.bf16.mxu0 0
        %598 = vmatpush1.bf16.msra.mxu0 0
        %599 = vmatprep.subr.bf16.mxu0 0
        %600 = vmatpush1.bf16.msra.mxu0 0
        %601 = vmatprep.subr.bf16.mxu0 0
        %602 = vmatpush1.bf16.msra.mxu0 0
        %603 = vmatprep.subr.bf16.mxu0 0
        %604 = vmatpush1.bf16.msra.mxu0 0
        %605 = vmatprep.subr.bf16.mxu0 0
        %606 = vmatpush1.bf16.msra.mxu0 0
        %607 = vmatprep.subr.bf16.mxu0 0
        %608 = vmatpush1.bf16.msra.mxu0 0
        %609 = vmatprep.subr.bf16.mxu0 0
        %610 = vmatpush1.bf16.msra.mxu0 0
        %611 = vmatprep.subr.bf16.mxu0 0
        %612 = vmatpush1.bf16.msra.mxu0 0
        %613 = vmatprep.subr.bf16.mxu0 0
        %614 = vmatpush1.bf16.msra.mxu0 0
        %615 = vmatprep.subr.bf16.mxu0 0
        %616 = vmatpush1.bf16.msra.mxu0 0
        %617 = vmatprep.subr.bf16.mxu0 0
        %618 = vmatpush1.bf16.msra.mxu0 0
        %619 = vmatprep.mubr.bf16.mxu0 0
        %620 = vmatmul.mubr.bf16.gmra.mrb[0].mxu0 %v447
        %v621 = vpop.f32.mrb[0].mxu0
        %v622 = vadd.f32 %v289, %v621
        %v623 = vpop.f32.mrb[0].mxu0
        %v624 = vadd.f32 %v289, %v623
        %v625 = vpop.f32.mrb[0].mxu0
        %v626 = vadd.f32 %v294, %v625
        %v627 = vpop.f32.mrb[0].mxu0
        %v628 = vadd.f32 %v294, %v627
        %629 = vdwg.mxu0
        %630 = vmatprep.subr.bf16.mxu0 %v404
        %631 = vmatpush1.bf16.msra.mxu0 %v403
        %632 = vmatprep.subr.bf16.mxu0 %v475
        %633 = vmatpush1.bf16.msra.mxu0 %v472
        %634 = vmatprep.subr.bf16.mxu0 0
        %635 = vmatpush1.bf16.msra.mxu0 0
        %636 = vmatprep.subr.bf16.mxu0 0
        %637 = vmatpush1.bf16.msra.mxu0 0
        %638 = vmatprep.subr.bf16.mxu0 0
        %639 = vmatpush1.bf16.msra.mxu0 0
        %640 = vmatprep.subr.bf16.mxu0 0
        %641 = vmatpush1.bf16.msra.mxu0 0
        %642 = vmatprep.subr.bf16.mxu0 0
        %643 = vmatpush1.bf16.msra.mxu0 0
        %644 = vmatprep.subr.bf16.mxu0 0
        %645 = vmatpush1.bf16.msra.mxu0 0
        %646 = vmatprep.subr.bf16.mxu0 0
        %647 = vmatpush1.bf16.msra.mxu0 0
        %648 = vmatprep.subr.bf16.mxu0 0
        %649 = vmatpush1.bf16.msra.mxu0 0
        %650 = vmatprep.subr.bf16.mxu0 0
        %651 = vmatpush1.bf16.msra.mxu0 0
        %652 = vmatprep.subr.bf16.mxu0 0
        %653 = vmatpush1.bf16.msra.mxu0 0
        %654 = vmatprep.subr.bf16.mxu0 0
        %655 = vmatpush1.bf16.msra.mxu0 0
        %656 = vmatprep.subr.bf16.mxu0 0
        %657 = vmatpush1.bf16.msra.mxu0 0
        %658 = vmatprep.subr.bf16.mxu0 0
        %659 = vmatpush1.bf16.msra.mxu0 0
        %660 = vmatprep.subr.bf16.mxu0 0
        %661 = vmatpush1.bf16.msra.mxu0 0
        %662 = vmatprep.mubr.bf16.mxu0 0
        %663 = vmatmul.mubr.bf16.gmra.mrb[0].mxu0 %v447
        %v664 = vpop.f32.mrb[0].mxu0
        %v665 = vadd.f32 %v289, %v664
        %v666 = vpop.f32.mrb[0].mxu0
        %v667 = vadd.f32 %v289, %v666
        %v668 = vpop.f32.mrb[0].mxu0
        %v669 = vadd.f32 %v294, %v668
        %v670 = vpop.f32.mrb[0].mxu0
        %v671 = vadd.f32 %v294, %v670
        %672 = vdwg.mxu0
        %673 = vmatprep.subr.bf16.mxu0 %v406
        %674 = vmatpush1.bf16.msra.mxu0 %v405
        %675 = vmatprep.subr.bf16.mxu0 %v481
        %676 = vmatpush1.bf16.msra.mxu0 %v478
        %677 = vmatprep.subr.bf16.mxu0 0
        %678 = vmatpush1.bf16.msra.mxu0 0
        %679 = vmatprep.subr.bf16.mxu0 0
        %680 = vmatpush1.bf16.msra.mxu0 0
        %681 = vmatprep.subr.bf16.mxu0 0
        %682 = vmatpush1.bf16.msra.mxu0 0
        %683 = vmatprep.subr.bf16.mxu0 0
        %684 = vmatpush1.bf16.msra.mxu0 0
        %685 = vmatprep.subr.bf16.mxu0 0
        %686 = vmatpush1.bf16.msra.mxu0 0
        %687 = vmatprep.subr.bf16.mxu0 0
        %688 = vmatpush1.bf16.msra.mxu0 0
        %689 = vmatprep.subr.bf16.mxu0 0
        %690 = vmatpush1.bf16.msra.mxu0 0
        %691 = vmatprep.subr.bf16.mxu0 0
        %692 = vmatpush1.bf16.msra.mxu0 0
        %693 = vmatprep.subr.bf16.mxu0 0
        %694 = vmatpush1.bf16.msra.mxu0 0
        %695 = vmatprep.subr.bf16.mxu0 0
        %696 = vmatpush1.bf16.msra.mxu0 0
        %697 = vmatprep.subr.bf16.mxu0 0
        %698 = vmatpush1.bf16.msra.mxu0 0
        %699 = vmatprep.subr.bf16.mxu0 0
        %700 = vmatpush1.bf16.msra.mxu0 0
        %701 = vmatprep.subr.bf16.mxu0 0
        %702 = vmatpush1.bf16.msra.mxu0 0
        %703 = vmatprep.subr.bf16.mxu0 0
        %704 = vmatpush1.bf16.msra.mxu0 0
        %705 = vmatprep.mubr.bf16.mxu0 0
        %706 = vmatmul.mubr.bf16.gmra.mrb[0].mxu0 %v447
        %v707 = vpop.f32.mrb[0].mxu0
        %v708 = vadd.f32 %v289, %v707
        %v709 = vpop.f32.mrb[0].mxu0
        %v710 = vadd.f32 %v289, %v709
        %v711 = vpop.f32.mrb[0].mxu0
        %v712 = vadd.f32 %v294, %v711
        %v713 = vpop.f32.mrb[0].mxu0
        %v714 = vadd.f32 %v294, %v713
        %715 = vdwg.mxu0
        %716 = vmatprep.subr.bf16.mxu0 %v408
        %717 = vmatpush1.bf16.msra.mxu0 %v407
        %718 = vmatprep.subr.bf16.mxu0 %v487
        %719 = vmatpush1.bf16.msra.mxu0 %v484
        %720 = vmatprep.subr.bf16.mxu0 0
        %721 = vmatpush1.bf16.msra.mxu0 0
        %722 = vmatprep.subr.bf16.mxu0 0
        %723 = vmatpush1.bf16.msra.mxu0 0
        %724 = vmatprep.subr.bf16.mxu0 0
        %725 = vmatpush1.bf16.msra.mxu0 0
        %726 = vmatprep.subr.bf16.mxu0 0
        %727 = vmatpush1.bf16.msra.mxu0 0
        %728 = vmatprep.subr.bf16.mxu0 0
        %729 = vmatpush1.bf16.msra.mxu0 0
        %730 = vmatprep.subr.bf16.mxu0 0
        %731 = vmatpush1.bf16.msra.mxu0 0
        %732 = vmatprep.subr.bf16.mxu0 0
        %733 = vmatpush1.bf16.msra.mxu0 0
        %734 = vmatprep.subr.bf16.mxu0 0
        %735 = vmatpush1.bf16.msra.mxu0 0
        %736 = vmatprep.subr.bf16.mxu0 0
        %737 = vmatpush1.bf16.msra.mxu0 0
        %738 = vmatprep.subr.bf16.mxu0 0
        %739 = vmatpush1.bf16.msra.mxu0 0
        %740 = vmatprep.subr.bf16.mxu0 0
        %741 = vmatpush1.bf16.msra.mxu0 0
        %742 = vmatprep.subr.bf16.mxu0 0
        %743 = vmatpush1.bf16.msra.mxu0 0
        %744 = vmatprep.subr.bf16.mxu0 0
        %745 = vmatpush1.bf16.msra.mxu0 0
        %746 = vmatprep.subr.bf16.mxu0 0
        %747 = vmatpush1.bf16.msra.mxu0 0
        %748 = vmatprep.mubr.bf16.mxu0 0
        %749 = vmatmul.mubr.bf16.gmra.mrb[0].mxu0 %v447
        %v750 = vpop.f32.mrb[0].mxu0
        %v751 = vadd.f32 %v289, %v750
        %v752 = vpop.f32.mrb[0].mxu0
        %v753 = vadd.f32 %v289, %v752
        %v754 = vpop.f32.mrb[0].mxu0
        %v755 = vadd.f32 %v294, %v754
        %v756 = vpop.f32.mrb[0].mxu0
        %v757 = vadd.f32 %v294, %v756
        %758 = vdwg.mxu0
        %759 = vmatprep.subr.bf16.mxu0 %v410
        %760 = vmatpush1.bf16.msra.mxu0 %v409
        %761 = vmatprep.subr.bf16.mxu0 %v493
        %762 = vmatpush1.bf16.msra.mxu0 %v490
        %763 = vmatprep.subr.bf16.mxu0 0
        %764 = vmatpush1.bf16.msra.mxu0 0
        %765 = vmatprep.subr.bf16.mxu0 0
        %766 = vmatpush1.bf16.msra.mxu0 0
        %767 = vmatprep.subr.bf16.mxu0 0
        %768 = vmatpush1.bf16.msra.mxu0 0
        %769 = vmatprep.subr.bf16.mxu0 0
        %770 = vmatpush1.bf16.msra.mxu0 0
        %771 = vmatprep.subr.bf16.mxu0 0
        %772 = vmatpush1.bf16.msra.mxu0 0
        %773 = vmatprep.subr.bf16.mxu0 0
        %774 = vmatpush1.bf16.msra.mxu0 0
        %775 = vmatprep.subr.bf16.mxu0 0
        %776 = vmatpush1.bf16.msra.mxu0 0
        %777 = vmatprep.subr.bf16.mxu0 0
        %778 = vmatpush1.bf16.msra.mxu0 0
        %779 = vmatprep.subr.bf16.mxu0 0
        %780 = vmatpush1.bf16.msra.mxu0 0
        %781 = vmatprep.subr.bf16.mxu0 0
        %782 = vmatpush1.bf16.msra.mxu0 0
        %783 = vmatprep.subr.bf16.mxu0 0
        %784 = vmatpush1.bf16.msra.mxu0 0
        %785 = vmatprep.subr.bf16.mxu0 0
        %786 = vmatpush1.bf16.msra.mxu0 0
        %787 = vmatprep.subr.bf16.mxu0 0
        %788 = vmatpush1.bf16.msra.mxu0 0
        %789 = vmatprep.subr.bf16.mxu0 0
        %790 = vmatpush1.bf16.msra.mxu0 0
        %791 = vmatprep.mubr.bf16.mxu0 0
        %792 = vmatmul.mubr.bf16.gmra.mrb[0].mxu0 %v447
        %v793 = vpop.f32.mrb[0].mxu0
        %v794 = vadd.f32 %v289, %v793
        %v795 = vpop.f32.mrb[0].mxu0
        %v796 = vadd.f32 %v289, %v795
        %v797 = vpop.f32.mrb[0].mxu0
        %v798 = vadd.f32 %v294, %v797
        %v799 = vpop.f32.mrb[0].mxu0
        %v800 = vadd.f32 %v294, %v799
        %801 = vdwg.mxu0
        %802 = vmatprep.subr.bf16.mxu0 %v412
        %803 = vmatpush1.bf16.msra.mxu0 %v411
        %804 = vmatprep.subr.bf16.mxu0 %v499
        %805 = vmatpush1.bf16.msra.mxu0 %v496
        %806 = vmatprep.subr.bf16.mxu0 0
        %807 = vmatpush1.bf16.msra.mxu0 0
        %808 = vmatprep.subr.bf16.mxu0 0
        %809 = vmatpush1.bf16.msra.mxu0 0
        %810 = vmatprep.subr.bf16.mxu0 0
        %811 = vmatpush1.bf16.msra.mxu0 0
        %812 = vmatprep.subr.bf16.mxu0 0
        %813 = vmatpush1.bf16.msra.mxu0 0
        %814 = vmatprep.subr.bf16.mxu0 0
        %815 = vmatpush1.bf16.msra.mxu0 0
        %816 = vmatprep.subr.bf16.mxu0 0
        %817 = vmatpush1.bf16.msra.mxu0 0
        %818 = vmatprep.subr.bf16.mxu0 0
        %819 = vmatpush1.bf16.msra.mxu0 0
        %820 = vmatprep.subr.bf16.mxu0 0
        %821 = vmatpush1.bf16.msra.mxu0 0
        %822 = vmatprep.subr.bf16.mxu0 0
        %823 = vmatpush1.bf16.msra.mxu0 0
        %824 = vmatprep.subr.bf16.mxu0 0
        %825 = vmatpush1.bf16.msra.mxu0 0
        %826 = vmatprep.subr.bf16.mxu0 0
        %827 = vmatpush1.bf16.msra.mxu0 0
        %828 = vmatprep.subr.bf16.mxu0 0
        %829 = vmatpush1.bf16.msra.mxu0 0
        %830 = vmatprep.subr.bf16.mxu0 0
        %831 = vmatpush1.bf16.msra.mxu0 0
        %832 = vmatprep.subr.bf16.mxu0 0
        %833 = vmatpush1.bf16.msra.mxu0 0
        %834 = vmatprep.mubr.bf16.mxu0 0
        %835 = vmatmul.mubr.bf16.gmra.mrb[0].mxu0 %v447
        %v836 = vpop.f32.mrb[0].mxu0
        %v837 = vadd.f32 %v289, %v836
        %v838 = vpop.f32.mrb[0].mxu0
        %v839 = vadd.f32 %v289, %v838
        %v840 = vpop.f32.mrb[0].mxu0
        %v841 = vadd.f32 %v294, %v840
        %v842 = vpop.f32.mrb[0].mxu0
        %v843 = vadd.f32 %v294, %v842
        %844 = vdwg.mxu0
        %v845 = vmax.f32 %v536, 0.0
        %v846 = vmax.f32 %v538, 0.0
        %v847 = vmax.f32 %v579, 0.0
        %v848 = vmax.f32 %v581, 0.0
        %v849 = vmax.f32 %v622, 0.0
        %v850 = vmax.f32 %v624, 0.0
        %v851 = vmax.f32 %v665, 0.0
        %v852 = vmax.f32 %v667, 0.0
        %v853 = vmax.f32 %v708, 0.0
        %v854 = vmax.f32 %v710, 0.0
        %v855 = vmax.f32 %v751, 0.0
        %v856 = vmax.f32 %v753, 0.0
        %v857 = vmax.f32 %v794, 0.0
        %v858 = vmax.f32 %v796, 0.0
        %v859 = vmax.f32 %v837, 0.0
        %v860 = vmax.f32 %v839, 0.0
        %v861 = vmax.f32 %v540, 0.0
        %v862 = vmax.f32 %v542, 0.0
        %v863 = vmax.f32 %v583, 0.0
        %v864 = vmax.f32 %v585, 0.0
        %v865 = vmax.f32 %v626, 0.0
        %v866 = vmax.f32 %v628, 0.0
        %v867 = vmax.f32 %v669, 0.0
        %v868 = vmax.f32 %v671, 0.0
        %v869 = vmax.f32 %v712, 0.0
        %v870 = vmax.f32 %v714, 0.0
        %v871 = vmax.f32 %v755, 0.0
        %v872 = vmax.f32 %v757, 0.0
        %v873 = vmax.f32 %v798, 0.0
        %v874 = vmax.f32 %v800, 0.0
        %v875 = vmax.f32 %v841, 0.0
        %v876 = vmax.f32 %v843, 0.0
        %877 = vst [vmem:[%s246] sm:$0xff] %v845
        %878 = vst [vmem:[%s246 + $0x8] sm:$0xff] %v846
        %879 = vst [vmem:[%s246 + $0x10] sm:$0xff] %v847
        %880 = vst [vmem:[%s246 + $0x18] sm:$0xff] %v848
        %881 = vst [vmem:[%s246 + $0x20] sm:$0xff] %v849
        %882 = vst [vmem:[%s246 + $0x28] sm:$0xff] %v850
        %883 = vst [vmem:[%s246 + $0x30] sm:$0xff] %v851
        %884 = vst [vmem:[%s246 + $0x38] sm:$0xff] %v852
        %885 = vst [vmem:[%s246 + $0x40] sm:$0xff] %v853
        %886 = vst [vmem:[%s246 + $0x48] sm:$0xff] %v854
        %887 = vst [vmem:[%s246 + $0x50] sm:$0xff] %v855
        %888 = vst [vmem:[%s246 + $0x58] sm:$0xff] %v856
        %889 = vst [vmem:[%s246 + $0x60] sm:$0xff] %v857
        %890 = vst [vmem:[%s246 + $0x68] sm:$0xff] %v858
        %891 = vst [vmem:[%s246 + $0x70] sm:$0xff] %v859
        %892 = vst [vmem:[%s246 + $0x78] sm:$0xff] %v860
        %893 = vst [vmem:[%s246 + $0x80] sm:$0xff] %v861
        %894 = vst [vmem:[%s246 + $0x88] sm:$0xff] %v862
        %895 = vst [vmem:[%s246 + $0x90] sm:$0xff] %v863
        %896 = vst [vmem:[%s246 + $0x98] sm:$0xff] %v864
        %897 = vst [vmem:[%s246 + $0xa0] sm:$0xff] %v865
        %898 = vst [vmem:[%s246 + $0xa8] sm:$0xff] %v866
        %899 = vst [vmem:[%s246 + $0xb0] sm:$0xff] %v867
        %900 = vst [vmem:[%s246 + $0xb8] sm:$0xff] %v868
        %901 = vst [vmem:[%s246 + $0xc0] sm:$0xff] %v869
        %902 = vst [vmem:[%s246 + $0xc8] sm:$0xff] %v870
        %903 = vst [vmem:[%s246 + $0xd0] sm:$0xff] %v871
        %904 = vst [vmem:[%s246 + $0xd8] sm:$0xff] %v872
        %905 = vst [vmem:[%s246 + $0xe0] sm:$0xff] %v873
        %906 = vst [vmem:[%s246 + $0xe8] sm:$0xff] %v874
        %907 = vst [vmem:[%s246 + $0xf0] sm:$0xff] %v875
        %908 = vst [vmem:[%s246 + $0xf8] sm:$0xff] %v876
        %s909 = sand.u32 %s90, 1
        %s910 = sand.u32 %s90, 1
        %s911 = smul.addr %s910, 256
        %s912 = scalar_lea.vmem [#allocation3], %s911
        // Predicated region
        $region56: #{lpips.4} parent=50 // pred_check
          %p913 = pneg %p100
        $region57: #{lpips.4} parent=50 // pred_check_branch
          %915 = sbr.rel (%p913) target = $region59
        $region58: #{lpips.4} parent=50 // pred_region
          %s916 = smul.u32 16, %s14
          %s917 = smul.addr %s916, 8
          %s918 = scalar_lea.vmem %s3, %s917
          // Predicated region
          $region60: #{lpips.4} parent=58 // pred_check
            _
          $region61: #{lpips.4} parent=58 // pred_check_branch
            %920 = sbr.rel (0) target = $region63
          $region62: #{lpips.4} parent=58 // pred_region
            // Predicated region
            $region64: #{lpips.4} parent=62 // pred_check
              _
            $region65: #{lpips.4} parent=62 // pred_check_branch
              %922 = sbr.rel (0) target = $region67
            $region66: #{lpips.4} parent=62 // pred_region
              loop: start=0, step=1, limit=1
              $region68: #{lpips.4} parent=66 // loop_pre_header
                _
              $region69: #{lpips.4} parent=66 // loop_header
                %s924 = sphi 0, %s928
                %p925 = scmp.ge.s32.totalorder %s924, 1
                %s929 = sphi %s912, %s912
                %s930 = sphi %s918, %s918
              $region70: #{lpips.4} parent=66 // loop_header_branch
                %927 = sbr.rel (%p925) target = $region74
              $region71: #{lpips.4} parent=66 // loop_body
                %v931 = vld [vmem:[%s929] sm:$0xff]
                %932 = vst [vmem:[%s930] sm:$0xff] %v931
                %v933 = vld [vmem:[%s929 + $0x8] sm:$0xff]
                %934 = vst [vmem:[%s930 + $0x8] sm:$0xff] %v933
                %v935 = vld [vmem:[%s929 + $0x10] sm:$0xff]
                %936 = vst [vmem:[%s930 + $0x10] sm:$0xff] %v935
                %v937 = vld [vmem:[%s929 + $0x18] sm:$0xff]
                %938 = vst [vmem:[%s930 + $0x18] sm:$0xff] %v937
                %v939 = vld [vmem:[%s929 + $0x20] sm:$0xff]
                %940 = vst [vmem:[%s930 + $0x20] sm:$0xff] %v939
                %v941 = vld [vmem:[%s929 + $0x28] sm:$0xff]
                %942 = vst [vmem:[%s930 + $0x28] sm:$0xff] %v941
                %v943 = vld [vmem:[%s929 + $0x30] sm:$0xff]
                %944 = vst [vmem:[%s930 + $0x30] sm:$0xff] %v943
                %v945 = vld [vmem:[%s929 + $0x38] sm:$0xff]
                %946 = vst [vmem:[%s930 + $0x38] sm:$0xff] %v945
                %v947 = vld [vmem:[%s929 + $0x40] sm:$0xff]
                %948 = vst [vmem:[%s930 + $0x40] sm:$0xff] %v947
                %v949 = vld [vmem:[%s929 + $0x48] sm:$0xff]
                %950 = vst [vmem:[%s930 + $0x48] sm:$0xff] %v949
                %v951 = vld [vmem:[%s929 + $0x50] sm:$0xff]
                %952 = vst [vmem:[%s930 + $0x50] sm:$0xff] %v951
                %v953 = vld [vmem:[%s929 + $0x58] sm:$0xff]
                %954 = vst [vmem:[%s930 + $0x58] sm:$0xff] %v953
                %v955 = vld [vmem:[%s929 + $0x60] sm:$0xff]
                %956 = vst [vmem:[%s930 + $0x60] sm:$0xff] %v955
                %v957 = vld [vmem:[%s929 + $0x68] sm:$0xff]
                %958 = vst [vmem:[%s930 + $0x68] sm:$0xff] %v957
                %v959 = vld [vmem:[%s929 + $0x70] sm:$0xff]
                %960 = vst [vmem:[%s930 + $0x70] sm:$0xff] %v959
                %v961 = vld [vmem:[%s929 + $0x78] sm:$0xff]
                %962 = vst [vmem:[%s930 + $0x78] sm:$0xff] %v961
                %v963 = vld [vmem:[%s929 + $0x80] sm:$0xff]
                %964 = vst [vmem:[%s930 + $0x200] sm:$0xff] %v963
                %v965 = vld [vmem:[%s929 + $0x88] sm:$0xff]
                %966 = vst [vmem:[%s930 + $0x208] sm:$0xff] %v965
                %v967 = vld [vmem:[%s929 + $0x90] sm:$0xff]
                %968 = vst [vmem:[%s930 + $0x210] sm:$0xff] %v967
                %v969 = vld [vmem:[%s929 + $0x98] sm:$0xff]
                %970 = vst [vmem:[%s930 + $0x218] sm:$0xff] %v969
                %v971 = vld [vmem:[%s929 + $0xa0] sm:$0xff]
                %972 = vst [vmem:[%s930 + $0x220] sm:$0xff] %v971
                %v973 = vld [vmem:[%s929 + $0xa8] sm:$0xff]
                %974 = vst [vmem:[%s930 + $0x228] sm:$0xff] %v973
                %v975 = vld [vmem:[%s929 + $0xb0] sm:$0xff]
                %976 = vst [vmem:[%s930 + $0x230] sm:$0xff] %v975
                %v977 = vld [vmem:[%s929 + $0xb8] sm:$0xff]
                %978 = vst [vmem:[%s930 + $0x238] sm:$0xff] %v977
                %v979 = vld [vmem:[%s929 + $0xc0] sm:$0xff]
                %980 = vst [vmem:[%s930 + $0x240] sm:$0xff] %v979
                %v981 = vld [vmem:[%s929 + $0xc8] sm:$0xff]
                %982 = vst [vmem:[%s930 + $0x248] sm:$0xff] %v981
                %v983 = vld [vmem:[%s929 + $0xd0] sm:$0xff]
                %984 = vst [vmem:[%s930 + $0x250] sm:$0xff] %v983
                %v985 = vld [vmem:[%s929 + $0xd8] sm:$0xff]
                %986 = vst [vmem:[%s930 + $0x258] sm:$0xff] %v985
                %v987 = vld [vmem:[%s929 + $0xe0] sm:$0xff]
                %988 = vst [vmem:[%s930 + $0x260] sm:$0xff] %v987
                %v989 = vld [vmem:[%s929 + $0xe8] sm:$0xff]
                %990 = vst [vmem:[%s930 + $0x268] sm:$0xff] %v989
                %v991 = vld [vmem:[%s929 + $0xf0] sm:$0xff]
                %992 = vst [vmem:[%s930 + $0x270] sm:$0xff] %v991
                %v993 = vld [vmem:[%s929 + $0xf8] sm:$0xff]
                %994 = vst [vmem:[%s930 + $0x278] sm:$0xff] %v993
              $region72: #{lpips.4} parent=66 // loop_footer
                %s928 = sadd.s32 1, %s924
              $region73: #{lpips.4} parent=66 // loop_footer_branch
                %923 = sbr.rel target = $region69
              $region74: #{lpips.4} parent=66 // loop_exit
                _
            $region67: #{lpips.4} parent=62 // pred_fallthru
              _
            // Predicated region
            $region75: #{lpips.4} parent=62 // pred_check
              _
            $region76: #{lpips.4} parent=62 // pred_check_branch
              %996 = sbr.rel target = $region78
            $region77: #{lpips.4} parent=62 // pred_region
              _
            $region78: #{lpips.4} parent=62 // pred_fallthru
              _
          $region63: #{lpips.4} parent=58 // pred_fallthru
            _
          %997 = vnop
        $region59: #{lpips.4} parent=50 // pred_fallthru
          _
      $region51: #{lpips.4} parent=5 // pred_fallthru
        _
      %p998 = scmp.le.s32.totalorder 2, %s9
      // Predicated region
      $region79: #{lpips.4} parent=5 // pred_check
        %p999 = pneg %p998
      $region80: #{lpips.4} parent=5 // pred_check_branch
        %1001 = sbr.rel (%p999) target = $region82
      $region81: #{lpips.4} parent=5 // pred_region
        %s1002 = ssub.s32 %s9, 2
        // Predicated region
        $region83: #{lpips.4} parent=81 // pred_check
          %p1003 = pneg %p106
        $region84: #{lpips.4} parent=81 // pred_check_branch
          %1005 = sbr.rel (%p1003) target = $region86
        $region85: #{lpips.4} parent=81 // pred_region
          %s1006 = sand.u32 %s91, 1
          %s1007 = sand.u32 %s91, 1
          %s1008 = smul.addr %s1007, 256
          %s1009 = scalar_lea.vmem [#allocation3], %s1008
        $region86: #{lpips.4} parent=81 // pred_fallthru
          _
      $region82: #{lpips.4} parent=5 // pred_fallthru
        _
    $region6: #{lpips.4} parent=1 // loop_footer
      %s13 = sadd.s32 1, %s9
    $region7: #{lpips.4} parent=1 // loop_footer_branch
      %8 = sbr.rel target = $region3
    $region8: #{lpips.4} parent=1 // loop_exit
      _

// kernel: lpips.5
$region0: #{lpips.5}
  #allocation0 [shape = 'u32[]', space=smem, size = 0x4, offset = 0x4, fixed_abs, tag = 'smem constant byte address 0x4 - core index']
  #allocation1 [shape = 'u32[144,128]{1,0:T(1,128)}', space=vmem, size = 0x12000, scoped, tag = 'internal scratch']
  %s0 = inlined_call_operand.vmem [shape: bf16[32,432], index: 0, kind: input, shape index: {}]
  %s1 = inlined_call_operand.vmem [shape: bf16[432,1024], index: 1, kind: input, shape index: {}]
  %s2 = inlined_call_operand.vmem [shape: f32[32,1], index: 2, kind: input, shape index: {}]
  %s3 = inlined_call_operand.vmem [shape: f32[32,1024], index: 3, kind: output, shape index: {}]
  %s4 = sld [smem:[#allocation0]]
  $region22: #{lpips.5} parent=0
    _
  %s6 = ssub.s32 1, %s4
  %s7 = scalar_select 0, %s6, %s4
  // Predicated region
  $region2: #{lpips.5} parent=0 // pred_check
    _
  $region3: #{lpips.5} parent=0 // pred_check_branch
    %9 = sbr.rel (0) target = $region5
  $region4: #{lpips.5} parent=0 // pred_region
    _
  $region5: #{lpips.5} parent=0 // pred_fallthru
    _
  // Predicated region
  $region6: #{lpips.5} parent=0 // pred_check
    _
  $region7: #{lpips.5} parent=0 // pred_check_branch
    %11 = sbr.rel (0) target = $region9
  $region8: #{lpips.5} parent=0 // pred_region
    _
  $region9: #{lpips.5} parent=0 // pred_fallthru
    _
  // Predicated region
  $region10: #{lpips.5} parent=0 // pred_check
    _
  $region11: #{lpips.5} parent=0 // pred_check_branch
    %13 = sbr.rel (0) target = $region13
  $region12: #{lpips.5} parent=0 // pred_region
    _
  $region13: #{lpips.5} parent=0 // pred_fallthru
    _
  %v15 = vld [vmem:[%s0] sm:$0xff]
  %v16 = vld [vmem:[%s0 + $0x8] sm:$0xff]
  %v17 = vld [vmem:[%s0 + $0x10] sm:$0xff]
  %v18 = vld [vmem:[%s0 + $0x18] sm:$0xff]
  %v19 = vld [vmem:[%s0 + $0x20] sm:$0xff]
  %v20 = vld [vmem:[%s0 + $0x28] sm:$0xff]
  %v21 = vld [vmem:[%s0 + $0x30] sm:$0xff]
  %v22 = vld [vmem:[%s0 + $0x38] sm:$0xff]
  %v23 = vld [vmem:[%s1] sm:$0xff]
  %v24 = vld [vmem:[%s1 + $0x8] sm:$0xff]
  %v25 = vld [vmem:[%s1 + $0x10] sm:$0xff]
  %v26 = vld [vmem:[%s1 + $0x18] sm:$0xff]
  %v27 = vld [vmem:[%s1 + $0x20] sm:$0xff]
  %v28 = vld [vmem:[%s1 + $0x28] sm:$0xff]
  %v29 = vld [vmem:[%s1 + $0x30] sm:$0xff]
  %v30 = vld [vmem:[%s1 + $0x38] sm:$0xff]
  %v31 = vld [vmem:[%s1 + $0x40] sm:$0xff]
  %v32 = vld [vmem:[%s1 + $0x48] sm:$0xff]
  %v33 = vld [vmem:[%s1 + $0x50] sm:$0xff]
  %v34 = vld [vmem:[%s1 + $0x58] sm:$0xff]
  %v35 = vld [vmem:[%s1 + $0x60] sm:$0xff]
  %v36 = vld [vmem:[%s1 + $0x68] sm:$0xff]
  %v37 = vld [vmem:[%s1 + $0x70] sm:$0xff]
  %v38 = vld [vmem:[%s1 + $0x78] sm:$0xff]
  %v39 = vld [vmem:[%s1 + $0x80] sm:$0xff]
  %v40 = vld [vmem:[%s1 + $0x88] sm:$0xff]
  %v41 = vld [vmem:[%s1 + $0x90] sm:$0xff]
  %v42 = vld [vmem:[%s1 + $0x98] sm:$0xff]
  %v43 = vld [vmem:[%s1 + $0xa0] sm:$0xff]
  %v44 = vld [vmem:[%s1 + $0xa8] sm:$0xff]
  %v45 = vld [vmem:[%s1 + $0xb0] sm:$0xff]
  %v46 = vld [vmem:[%s1 + $0xb8] sm:$0xff]
  %v47 = vld [vmem:[%s1 + $0xc0] sm:$0xff]
  %v48 = vld [vmem:[%s1 + $0xc8] sm:$0xff]
  %v49 = vld [vmem:[%s1 + $0xd0] sm:$0xff]
  %v50 = vld [vmem:[%s1 + $0xd8] sm:$0xff]
  %v51 = vld [vmem:[%s1 + $0xe0] sm:$0xff]
  %v52 = vld [vmem:[%s1 + $0xe8] sm:$0xff]
  %v53 = vld [vmem:[%s1 + $0xf0] sm:$0xff]
  %v54 = vld [vmem:[%s1 + $0xf8] sm:$0xff]
  %v55 = vld [vmem:[%s1 + $0x100] sm:$0xff]
  %v56 = vld [vmem:[%s1 + $0x108] sm:$0xff]
  %v57 = vld [vmem:[%s1 + $0x110] sm:$0xff]
  %v58 = vld [vmem:[%s1 + $0x118] sm:$0xff]
  %v59 = vld [vmem:[%s1 + $0x120] sm:$0xff]
  %v60 = vld [vmem:[%s1 + $0x128] sm:$0xff]
  %v61 = vld [vmem:[%s1 + $0x130] sm:$0xff]
  %v62 = vld [vmem:[%s1 + $0x138] sm:$0xff]
  %v63 = vld [vmem:[%s1 + $0x140] sm:$0xff]
  %v64 = vld [vmem:[%s1 + $0x148] sm:$0xff]
  %v65 = vld [vmem:[%s1 + $0x150] sm:$0xff]
  %v66 = vld [vmem:[%s1 + $0x158] sm:$0xff]
  %v67 = vld [vmem:[%s1 + $0x160] sm:$0xff]
  %v68 = vld [vmem:[%s1 + $0x168] sm:$0xff]
  %v69 = vld [vmem:[%s1 + $0x170] sm:$0xff]
  %v70 = vld [vmem:[%s1 + $0x178] sm:$0xff]
  %v71 = vld [vmem:[%s1 + $0x180] sm:$0xff]
  %v72 = vld [vmem:[%s1 + $0x188] sm:$0xff]
  %v73 = vld [vmem:[%s1 + $0x190] sm:$0xff]
  %v74 = vld [vmem:[%s1 + $0x198] sm:$0xff]
  %v75 = vld [vmem:[%s1 + $0x1a0] sm:$0xff]
  %v76 = vld [vmem:[%s1 + $0x1a8] sm:$0xff]
  %v77 = vld [vmem:[%s1 + $0x1b0] sm:$0xff]
  %v78 = vld [vmem:[%s1 + $0x1b8] sm:$0xff]
  %v79 = vld [vmem:[%s1 + $0x1c0] sm:$0xff]
  %v80 = vld [vmem:[%s1 + $0x1c8] sm:$0xff]
  %v81 = vld [vmem:[%s1 + $0x1d0] sm:$0xff]
  %v82 = vld [vmem:[%s1 + $0x1d8] sm:$0xff]
  %v83 = vld [vmem:[%s1 + $0x1e0] sm:$0xff]
  %v84 = vld [vmem:[%s1 + $0x1e8] sm:$0xff]
  %v85 = vld [vmem:[%s1 + $0x1f0] sm:$0xff]
  %v86 = vld [vmem:[%s1 + $0x1f8] sm:$0xff]
  %v87 = vld [vmem:[%s1 + $0x200] sm:$0xff]
  %v88 = vld [vmem:[%s1 + $0x208] sm:$0xff]
  %v89 = vld [vmem:[%s1 + $0x210] sm:$0xff]
  %v90 = vld [vmem:[%s1 + $0x218] sm:$0xff]
  %v91 = vld [vmem:[%s1 + $0x220] sm:$0xff]
  %v92 = vld [vmem:[%s1 + $0x228] sm:$0xff]
  %v93 = vld [vmem:[%s1 + $0x230] sm:$0xff]
  %v94 = vld [vmem:[%s1 + $0x238] sm:$0xff]
  %v95 = vld [vmem:[%s1 + $0x240] sm:$0xff]
  %v96 = vld [vmem:[%s1 + $0x248] sm:$0xff]
  %v97 = vld [vmem:[%s1 + $0x250] sm:$0xff]
  %v98 = vld [vmem:[%s1 + $0x258] sm:$0xff]
  %v99 = vld [vmem:[%s1 + $0x260] sm:$0xff]
  %v100 = vld [vmem:[%s1 + $0x268] sm:$0xff]
  %v101 = vld [vmem:[%s1 + $0x270] sm:$0xff]
  %v102 = vld [vmem:[%s1 + $0x278] sm:$0xff]
  %v103 = vld [vmem:[%s1 + $0x280] sm:$0xff]
  %v104 = vld [vmem:[%s1 + $0x288] sm:$0xff]
  %v105 = vld [vmem:[%s1 + $0x290] sm:$0xff]
  %v106 = vld [vmem:[%s1 + $0x298] sm:$0xff]
  %v107 = vld [vmem:[%s1 + $0x2a0] sm:$0xff]
  %v108 = vld [vmem:[%s1 + $0x2a8] sm:$0xff]
  %v109 = vld [vmem:[%s1 + $0x2b0] sm:$0xff]
  %v110 = vld [vmem:[%s1 + $0x2b8] sm:$0xff]
  %v111 = vld [vmem:[%s1 + $0x2c0] sm:$0xff]
  %v112 = vld [vmem:[%s1 + $0x2c8] sm:$0xff]
  %v113 = vld [vmem:[%s1 + $0x2d0] sm:$0xff]
  %v114 = vld [vmem:[%s1 + $0x2d8] sm:$0xff]
  %v115 = vld [vmem:[%s1 + $0x2e0] sm:$0xff]
  %v116 = vld [vmem:[%s1 + $0x2e8] sm:$0xff]
  %v117 = vld [vmem:[%s1 + $0x2f0] sm:$0xff]
  %v118 = vld [vmem:[%s1 + $0x2f8] sm:$0xff]
  %v119 = vld [vmem:[%s1 + $0x300] sm:$0xff]
  %v120 = vld [vmem:[%s1 + $0x308] sm:$0xff]
  %v121 = vld [vmem:[%s1 + $0x310] sm:$0xff]
  %v122 = vld [vmem:[%s1 + $0x318] sm:$0xff]
  %v123 = vld [vmem:[%s1 + $0x320] sm:$0xff]
  %v124 = vld [vmem:[%s1 + $0x328] sm:$0xff]
  %v125 = vld [vmem:[%s1 + $0x330] sm:$0xff]
  %v126 = vld [vmem:[%s1 + $0x338] sm:$0xff]
  %v127 = vld [vmem:[%s1 + $0x340] sm:$0xff]
  %v128 = vld [vmem:[%s1 + $0x348] sm:$0xff]
  %v129 = vld [vmem:[%s1 + $0x350] sm:$0xff]
  %v130 = vld [vmem:[%s1 + $0x358] sm:$0xff]
  %v131 = vld [vmem:[%s1 + $0x360] sm:$0xff]
  %v132 = vld [vmem:[%s1 + $0x368] sm:$0xff]
  %v133 = vld [vmem:[%s1 + $0x370] sm:$0xff]
  %v134 = vld [vmem:[%s1 + $0x378] sm:$0xff]
  %v135 = vld [vmem:[%s1 + $0x380] sm:$0xff]
  %v136 = vld [vmem:[%s1 + $0x388] sm:$0xff]
  %v137 = vld [vmem:[%s1 + $0x390] sm:$0xff]
  %v138 = vld [vmem:[%s1 + $0x398] sm:$0xff]
  %v139 = vld [vmem:[%s1 + $0x3a0] sm:$0xff]
  %v140 = vld [vmem:[%s1 + $0x3a8] sm:$0xff]
  %v141 = vld [vmem:[%s1 + $0x3b0] sm:$0xff]
  %v142 = vld [vmem:[%s1 + $0x3b8] sm:$0xff]
  %v143 = vld [vmem:[%s1 + $0x3c0] sm:$0xff]
  %v144 = vld [vmem:[%s1 + $0x3c8] sm:$0xff]
  %v145 = vld [vmem:[%s1 + $0x3d0] sm:$0xff]
  %v146 = vld [vmem:[%s1 + $0x3d8] sm:$0xff]
  %v147 = vld [vmem:[%s1 + $0x3e0] sm:$0xff]
  %v148 = vld [vmem:[%s1 + $0x3e8] sm:$0xff]
  %v149 = vld [vmem:[%s1 + $0x3f0] sm:$0xff]
  %v150 = vld [vmem:[%s1 + $0x3f8] sm:$0xff]
  %v151 = vld [vmem:[%s1 + $0x400] sm:$0xff]
  %v152 = vld [vmem:[%s1 + $0x408] sm:$0xff]
  %v153 = vld [vmem:[%s1 + $0x410] sm:$0xff]
  %v154 = vld [vmem:[%s1 + $0x418] sm:$0xff]
  %v155 = vld [vmem:[%s1 + $0x420] sm:$0xff]
  %v156 = vld [vmem:[%s1 + $0x428] sm:$0xff]
  %v157 = vld [vmem:[%s1 + $0x430] sm:$0xff]
  %v158 = vld [vmem:[%s1 + $0x438] sm:$0xff]
  %v159 = vld [vmem:[%s1 + $0x440] sm:$0xff]
  %v160 = vld [vmem:[%s1 + $0x448] sm:$0xff]
  %v161 = vld [vmem:[%s1 + $0x450] sm:$0xff]
  %v162 = vld [vmem:[%s1 + $0x458] sm:$0xff]
  %v163 = vld [vmem:[%s1 + $0x460] sm:$0xff]
  %v164 = vld [vmem:[%s1 + $0x468] sm:$0xff]
  %v165 = vld [vmem:[%s1 + $0x470] sm:$0xff]
  %v166 = vld [vmem:[%s1 + $0x478] sm:$0xff]
  %v167 = vld [vmem:[%s1 + $0x480] sm:$0xff]
  %v168 = vld [vmem:[%s1 + $0x488] sm:$0xff]
  %v169 = vld [vmem:[%s1 + $0x490] sm:$0xff]
  %v170 = vld [vmem:[%s1 + $0x498] sm:$0xff]
  %v171 = vld [vmem:[%s1 + $0x4a0] sm:$0xff]
  %v172 = vld [vmem:[%s1 + $0x4a8] sm:$0xff]
  %v173 = vld [vmem:[%s1 + $0x4b0] sm:$0xff]
  %v174 = vld [vmem:[%s1 + $0x4b8] sm:$0xff]
  %v175 = vld [vmem:[%s1 + $0x4c0] sm:$0xff]
  %v176 = vld [vmem:[%s1 + $0x4c8] sm:$0xff]
  %v177 = vld [vmem:[%s1 + $0x4d0] sm:$0xff]
  %v178 = vld [vmem:[%s1 + $0x4d8] sm:$0xff]
  %v179 = vld [vmem:[%s1 + $0x4e0] sm:$0xff]
  %v180 = vld [vmem:[%s1 + $0x4e8] sm:$0xff]
  %v181 = vld [vmem:[%s1 + $0x4f0] sm:$0xff]
  %v182 = vld [vmem:[%s1 + $0x4f8] sm:$0xff]
  %v183 = vld [vmem:[%s1 + $0x500] sm:$0xff]
  %v184 = vld [vmem:[%s1 + $0x508] sm:$0xff]
  %v185 = vld [vmem:[%s1 + $0x510] sm:$0xff]
  %v186 = vld [vmem:[%s1 + $0x518] sm:$0xff]
  %v187 = vld [vmem:[%s1 + $0x520] sm:$0xff]
  %v188 = vld [vmem:[%s1 + $0x528] sm:$0xff]
  %v189 = vld [vmem:[%s1 + $0x530] sm:$0xff]
  %v190 = vld [vmem:[%s1 + $0x538] sm:$0xff]
  %v191 = vld [vmem:[%s1 + $0x540] sm:$0xff]
  %v192 = vld [vmem:[%s1 + $0x548] sm:$0xff]
  %v193 = vld [vmem:[%s1 + $0x550] sm:$0xff]
  %v194 = vld [vmem:[%s1 + $0x558] sm:$0xff]
  %v195 = vld [vmem:[%s1 + $0x560] sm:$0xff]
  %v196 = vld [vmem:[%s1 + $0x568] sm:$0xff]
  %v197 = vld [vmem:[%s1 + $0x570] sm:$0xff]
  %v198 = vld [vmem:[%s1 + $0x578] sm:$0xff]
  %v199 = vld [vmem:[%s1 + $0x580] sm:$0xff]
  %v200 = vld [vmem:[%s1 + $0x588] sm:$0xff]
  %v201 = vld [vmem:[%s1 + $0x590] sm:$0xff]
  %v202 = vld [vmem:[%s1 + $0x598] sm:$0xff]
  %v203 = vld [vmem:[%s1 + $0x5a0] sm:$0xff]
  %v204 = vld [vmem:[%s1 + $0x5a8] sm:$0xff]
  %v205 = vld [vmem:[%s1 + $0x5b0] sm:$0xff]
  %v206 = vld [vmem:[%s1 + $0x5b8] sm:$0xff]
  %v207 = vld [vmem:[%s1 + $0x5c0] sm:$0xff]
  %v208 = vld [vmem:[%s1 + $0x5c8] sm:$0xff]
  %v209 = vld [vmem:[%s1 + $0x5d0] sm:$0xff]
  %v210 = vld [vmem:[%s1 + $0x5d8] sm:$0xff]
  %v211 = vld [vmem:[%s1 + $0x5e0] sm:$0xff]
  %v212 = vld [vmem:[%s1 + $0x5e8] sm:$0xff]
  %v213 = vld [vmem:[%s1 + $0x5f0] sm:$0xff]
  %v214 = vld [vmem:[%s1 + $0x5f8] sm:$0xff]
  %v215 = vld [vmem:[%s1 + $0x600] sm:$0xff]
  %v216 = vld [vmem:[%s1 + $0x608] sm:$0xff]
  %v217 = vld [vmem:[%s1 + $0x610] sm:$0xff]
  %v218 = vld [vmem:[%s1 + $0x618] sm:$0xff]
  %v219 = vld [vmem:[%s1 + $0x620] sm:$0xff]
  %v220 = vld [vmem:[%s1 + $0x628] sm:$0xff]
  %v221 = vld [vmem:[%s1 + $0x630] sm:$0xff]
  %v222 = vld [vmem:[%s1 + $0x638] sm:$0xff]
  %v223 = vld [vmem:[%s1 + $0x640] sm:$0xff]
  %v224 = vld [vmem:[%s1 + $0x648] sm:$0xff]
  %v225 = vld [vmem:[%s1 + $0x650] sm:$0xff]
  %v226 = vld [vmem:[%s1 + $0x658] sm:$0xff]
  %v227 = vld [vmem:[%s1 + $0x660] sm:$0xff]
  %v228 = vld [vmem:[%s1 + $0x668] sm:$0xff]
  %v229 = vld [vmem:[%s1 + $0x670] sm:$0xff]
  %v230 = vld [vmem:[%s1 + $0x678] sm:$0xff]
  %v231 = vld [vmem:[%s1 + $0x680] sm:$0xff]
  %v232 = vld [vmem:[%s1 + $0x688] sm:$0xff]
  %v233 = vld [vmem:[%s1 + $0x690] sm:$0xff]
  %v234 = vld [vmem:[%s1 + $0x698] sm:$0xff]
  %v235 = vld [vmem:[%s1 + $0x6a0] sm:$0xff]
  %v236 = vld [vmem:[%s1 + $0x6a8] sm:$0xff]
  %v237 = vld [vmem:[%s1 + $0x6b0] sm:$0xff]
  %v238 = vld [vmem:[%s1 + $0x6b8] sm:$0xff]
  %v239 = vld [vmem:[%s2] sm:$0xff]
  %v240 = vld [vmem:[%s2 + $0x8] sm:$0xff]
  %v241 = vld [vmem:[%s2 + $0x10] sm:$0xff]
  %v242 = vld [vmem:[%s2 + $0x18] sm:$0xff]
  %244 = vset.pattern.permute.xlu0 0
  %245 = vperm.xlu0 %244, %v239
  %v246 = vpop.permute.xlu0 %245
  %249 = vset.pattern.permute.xlu0 0
  %250 = vperm.xlu0 %249, %v240
  %v251 = vpop.permute.xlu0 %250
  %254 = vset.pattern.permute.xlu0 0
  %255 = vperm.xlu0 %254, %v241
  %v256 = vpop.permute.xlu0 %255
  %259 = vset.pattern.permute.xlu0 0
  %260 = vperm.xlu0 %259, %v242
  %v261 = vpop.permute.xlu0 %260
  %v271 = vunpack.c.l.b16 %v15
  %v272 = vunpack.c.h.b16 %v15
  %v273 = vunpack.c.l.b16 %v16
  %v274 = vunpack.c.h.b16 %v16
  %v275 = vunpack.c.l.b16 %v17
  %v276 = vunpack.c.h.b16 %v17
  %v277 = vunpack.c.l.b16 %v18
  %v278 = vunpack.c.h.b16 %v18
  %v279 = vunpack.c.l.b16 %v19
  %v280 = vunpack.c.h.b16 %v19
  %v281 = vunpack.c.l.b16 %v20
  %v282 = vunpack.c.h.b16 %v20
  %v283 = vunpack.c.l.b16 %v21
  %v284 = vunpack.c.h.b16 %v21
  %v285 = vunpack.c.l.b16 %v22
  %v286 = vunpack.c.h.b16 %v22
  %v287 = vpack.c.b16 %v275, %v271
  %v288 = vpack.c.b16 %v276, %v272
  %v289 = vpack.c.b16 %v277, %v273
  %v290 = vpack.c.b16 %v278, %v274
  %v291 = vpack.c.b16 %v283, %v279
  %v292 = vpack.c.b16 %v284, %v280
  %v293 = vpack.c.b16 %v285, %v281
  %v294 = vpack.c.b16 %v286, %v282
  %v517 = vunpack.c.l.b16 %v23
  %v518 = vunpack.c.h.b16 %v23
  %v519 = vunpack.c.l.b16 %v24
  %v520 = vunpack.c.h.b16 %v24
  %v521 = vunpack.c.l.b16 %v25
  %v522 = vunpack.c.h.b16 %v25
  %v523 = vunpack.c.l.b16 %v26
  %v524 = vunpack.c.h.b16 %v26
  %v525 = vunpack.c.l.b16 %v27
  %v526 = vunpack.c.h.b16 %v27
  %v527 = vunpack.c.l.b16 %v28
  %v528 = vunpack.c.h.b16 %v28
  %v529 = vunpack.c.l.b16 %v29
  %v530 = vunpack.c.h.b16 %v29
  %v531 = vunpack.c.l.b16 %v30
  %v532 = vunpack.c.h.b16 %v30
  %v533 = vunpack.c.l.b16 %v31
  %v534 = vunpack.c.h.b16 %v31
  %v535 = vunpack.c.l.b16 %v32
  %v536 = vunpack.c.h.b16 %v32
  %v537 = vunpack.c.l.b16 %v33
  %v538 = vunpack.c.h.b16 %v33
  %v539 = vunpack.c.l.b16 %v34
  %v540 = vunpack.c.h.b16 %v34
  %v541 = vunpack.c.l.b16 %v35
  %v542 = vunpack.c.h.b16 %v35
  %v543 = vunpack.c.l.b16 %v36
  %v544 = vunpack.c.h.b16 %v36
  %v545 = vunpack.c.l.b16 %v37
  %v546 = vunpack.c.h.b16 %v37
  %v547 = vunpack.c.l.b16 %v38
  %v548 = vunpack.c.h.b16 %v38
  %v549 = vunpack.c.l.b16 %v39
  %v550 = vunpack.c.h.b16 %v39
  %v551 = vunpack.c.l.b16 %v40
  %v552 = vunpack.c.h.b16 %v40
  %v553 = vunpack.c.l.b16 %v41
  %v554 = vunpack.c.h.b16 %v41
  %v555 = vunpack.c.l.b16 %v42
  %v556 = vunpack.c.h.b16 %v42
  %v557 = vunpack.c.l.b16 %v43
  %v558 = vunpack.c.h.b16 %v43
  %v559 = vunpack.c.l.b16 %v44
  %v560 = vunpack.c.h.b16 %v44
  %v561 = vunpack.c.l.b16 %v45
  %v562 = vunpack.c.h.b16 %v45
  %v563 = vunpack.c.l.b16 %v46
  %v564 = vunpack.c.h.b16 %v46
  %v565 = vunpack.c.l.b16 %v47
  %v566 = vunpack.c.h.b16 %v47
  %v567 = vunpack.c.l.b16 %v48
  %v568 = vunpack.c.h.b16 %v48
  %v569 = vunpack.c.l.b16 %v49
  %v570 = vunpack.c.h.b16 %v49
  %v571 = vunpack.c.l.b16 %v50
  %v572 = vunpack.c.h.b16 %v50
  %v573 = vunpack.c.l.b16 %v51
  %v574 = vunpack.c.h.b16 %v51
  %v575 = vunpack.c.l.b16 %v52
  %v576 = vunpack.c.h.b16 %v52
  %v577 = vunpack.c.l.b16 %v53
  %v578 = vunpack.c.h.b16 %v53
  %v579 = vunpack.c.l.b16 %v54
  %v580 = vunpack.c.h.b16 %v54
  %v581 = vunpack.c.l.b16 %v55
  %v582 = vunpack.c.h.b16 %v55
  %v583 = vunpack.c.l.b16 %v56
  %v584 = vunpack.c.h.b16 %v56
  %v585 = vunpack.c.l.b16 %v57
  %v586 = vunpack.c.h.b16 %v57
  %v587 = vunpack.c.l.b16 %v58
  %v588 = vunpack.c.h.b16 %v58
  %v589 = vunpack.c.l.b16 %v59
  %v590 = vunpack.c.h.b16 %v59
  %v591 = vunpack.c.l.b16 %v60
  %v592 = vunpack.c.h.b16 %v60
  %v593 = vunpack.c.l.b16 %v61
  %v594 = vunpack.c.h.b16 %v61
  %v595 = vunpack.c.l.b16 %v62
  %v596 = vunpack.c.h.b16 %v62
  %v597 = vunpack.c.l.b16 %v63
  %v598 = vunpack.c.h.b16 %v63
  %v599 = vunpack.c.l.b16 %v64
  %v600 = vunpack.c.h.b16 %v64
  %v601 = vunpack.c.l.b16 %v65
  %v602 = vunpack.c.h.b16 %v65
  %v603 = vunpack.c.l.b16 %v66
  %v604 = vunpack.c.h.b16 %v66
  %v605 = vunpack.c.l.b16 %v67
  %v606 = vunpack.c.h.b16 %v67
  %v607 = vunpack.c.l.b16 %v68
  %v608 = vunpack.c.h.b16 %v68
  %v609 = vunpack.c.l.b16 %v69
  %v610 = vunpack.c.h.b16 %v69
  %v611 = vunpack.c.l.b16 %v70
  %v612 = vunpack.c.h.b16 %v70
  %v613 = vunpack.c.l.b16 %v71
  %v614 = vunpack.c.h.b16 %v71
  %v615 = vunpack.c.l.b16 %v72
  %v616 = vunpack.c.h.b16 %v72
  %v617 = vunpack.c.l.b16 %v73
  %v618 = vunpack.c.h.b16 %v73
  %v619 = vunpack.c.l.b16 %v74
  %v620 = vunpack.c.h.b16 %v74
  %v621 = vunpack.c.l.b16 %v75
  %v622 = vunpack.c.h.b16 %v75
  %v623 = vunpack.c.l.b16 %v76
  %v624 = vunpack.c.h.b16 %v76
  %v625 = vunpack.c.l.b16 %v77
  %v626 = vunpack.c.h.b16 %v77
  %v627 = vunpack.c.l.b16 %v78
  %v628 = vunpack.c.h.b16 %v78
  %v629 = vunpack.c.l.b16 %v79
  %v630 = vunpack.c.h.b16 %v79
  %v631 = vunpack.c.l.b16 %v80
  %v632 = vunpack.c.h.b16 %v80
  %v633 = vunpack.c.l.b16 %v81
  %v634 = vunpack.c.h.b16 %v81
  %v635 = vunpack.c.l.b16 %v82
  %v636 = vunpack.c.h.b16 %v82
  %v637 = vunpack.c.l.b16 %v83
  %v638 = vunpack.c.h.b16 %v83
  %v639 = vunpack.c.l.b16 %v84
  %v640 = vunpack.c.h.b16 %v84
  %v641 = vunpack.c.l.b16 %v85
  %v642 = vunpack.c.h.b16 %v85
  %v643 = vunpack.c.l.b16 %v86
  %v644 = vunpack.c.h.b16 %v86
  %v645 = vunpack.c.l.b16 %v87
  %v646 = vunpack.c.h.b16 %v87
  %v647 = vunpack.c.l.b16 %v88
  %v648 = vunpack.c.h.b16 %v88
  %v649 = vunpack.c.l.b16 %v89
  %v650 = vunpack.c.h.b16 %v89
  %v651 = vunpack.c.l.b16 %v90
  %v652 = vunpack.c.h.b16 %v90
  %v653 = vunpack.c.l.b16 %v91
  %v654 = vunpack.c.h.b16 %v91
  %v655 = vunpack.c.l.b16 %v92
  %v656 = vunpack.c.h.b16 %v92
  %v657 = vunpack.c.l.b16 %v93
  %v658 = vunpack.c.h.b16 %v93
  %v659 = vunpack.c.l.b16 %v94
  %v660 = vunpack.c.h.b16 %v94
  %v661 = vunpack.c.l.b16 %v95
  %v662 = vunpack.c.h.b16 %v95
  %v663 = vunpack.c.l.b16 %v96
  %v664 = vunpack.c.h.b16 %v96
  %v665 = vunpack.c.l.b16 %v97
  %v666 = vunpack.c.h.b16 %v97
  %v667 = vunpack.c.l.b16 %v98
  %v668 = vunpack.c.h.b16 %v98
  %v669 = vunpack.c.l.b16 %v99
  %v670 = vunpack.c.h.b16 %v99
  %v671 = vunpack.c.l.b16 %v100
  %v672 = vunpack.c.h.b16 %v100
  %v673 = vunpack.c.l.b16 %v101
  %v674 = vunpack.c.h.b16 %v101
  %v675 = vunpack.c.l.b16 %v102
  %v676 = vunpack.c.h.b16 %v102
  %v677 = vunpack.c.l.b16 %v103
  %v678 = vunpack.c.h.b16 %v103
  %v679 = vunpack.c.l.b16 %v104
  %v680 = vunpack.c.h.b16 %v104
  %v681 = vunpack.c.l.b16 %v105
  %v682 = vunpack.c.h.b16 %v105
  %v683 = vunpack.c.l.b16 %v106
  %v684 = vunpack.c.h.b16 %v106
  %v685 = vunpack.c.l.b16 %v107
  %v686 = vunpack.c.h.b16 %v107
  %v687 = vunpack.c.l.b16 %v108
  %v688 = vunpack.c.h.b16 %v108
  %v689 = vunpack.c.l.b16 %v109
  %v690 = vunpack.c.h.b16 %v109
  %v691 = vunpack.c.l.b16 %v110
  %v692 = vunpack.c.h.b16 %v110
  %v693 = vunpack.c.l.b16 %v111
  %v694 = vunpack.c.h.b16 %v111
  %v695 = vunpack.c.l.b16 %v112
  %v696 = vunpack.c.h.b16 %v112
  %v697 = vunpack.c.l.b16 %v113
  %v698 = vunpack.c.h.b16 %v113
  %v699 = vunpack.c.l.b16 %v114
  %v700 = vunpack.c.h.b16 %v114
  %v701 = vunpack.c.l.b16 %v115
  %v702 = vunpack.c.h.b16 %v115
  %v703 = vunpack.c.l.b16 %v116
  %v704 = vunpack.c.h.b16 %v116
  %v705 = vunpack.c.l.b16 %v117
  %v706 = vunpack.c.h.b16 %v117
  %v707 = vunpack.c.l.b16 %v118
  %v708 = vunpack.c.h.b16 %v118
  %v709 = vunpack.c.l.b16 %v119
  %v710 = vunpack.c.h.b16 %v119
  %v711 = vunpack.c.l.b16 %v120
  %v712 = vunpack.c.h.b16 %v120
  %v713 = vunpack.c.l.b16 %v121
  %v714 = vunpack.c.h.b16 %v121
  %v715 = vunpack.c.l.b16 %v122
  %v716 = vunpack.c.h.b16 %v122
  %v717 = vunpack.c.l.b16 %v123
  %v718 = vunpack.c.h.b16 %v123
  %v719 = vunpack.c.l.b16 %v124
  %v720 = vunpack.c.h.b16 %v124
  %v721 = vunpack.c.l.b16 %v125
  %v722 = vunpack.c.h.b16 %v125
  %v723 = vunpack.c.l.b16 %v126
  %v724 = vunpack.c.h.b16 %v126
  %v725 = vunpack.c.l.b16 %v127
  %v726 = vunpack.c.h.b16 %v127
  %v727 = vunpack.c.l.b16 %v128
  %v728 = vunpack.c.h.b16 %v128
  %v729 = vunpack.c.l.b16 %v129
  %v730 = vunpack.c.h.b16 %v129
  %v731 = vunpack.c.l.b16 %v130
  %v732 = vunpack.c.h.b16 %v130
  %v733 = vunpack.c.l.b16 %v131
  %v734 = vunpack.c.h.b16 %v131
  %v735 = vunpack.c.l.b16 %v132
  %v736 = vunpack.c.h.b16 %v132
  %v737 = vunpack.c.l.b16 %v133
  %v738 = vunpack.c.h.b16 %v133
  %v739 = vunpack.c.l.b16 %v134
  %v740 = vunpack.c.h.b16 %v134
  %v741 = vunpack.c.l.b16 %v135
  %v742 = vunpack.c.h.b16 %v135
  %v743 = vunpack.c.l.b16 %v136
  %v744 = vunpack.c.h.b16 %v136
  %v745 = vunpack.c.l.b16 %v137
  %v746 = vunpack.c.h.b16 %v137
  %v747 = vunpack.c.l.b16 %v138
  %v748 = vunpack.c.h.b16 %v138
  %v749 = vunpack.c.l.b16 %v139
  %v750 = vunpack.c.h.b16 %v139
  %v751 = vunpack.c.l.b16 %v140
  %v752 = vunpack.c.h.b16 %v140
  %v753 = vunpack.c.l.b16 %v141
  %v754 = vunpack.c.h.b16 %v141
  %v755 = vunpack.c.l.b16 %v142
  %v756 = vunpack.c.h.b16 %v142
  %v757 = vunpack.c.l.b16 %v143
  %v758 = vunpack.c.h.b16 %v143
  %v759 = vunpack.c.l.b16 %v144
  %v760 = vunpack.c.h.b16 %v144
  %v761 = vunpack.c.l.b16 %v145
  %v762 = vunpack.c.h.b16 %v145
  %v763 = vunpack.c.l.b16 %v146
  %v764 = vunpack.c.h.b16 %v146
  %v765 = vunpack.c.l.b16 %v147
  %v766 = vunpack.c.h.b16 %v147
  %v767 = vunpack.c.l.b16 %v148
  %v768 = vunpack.c.h.b16 %v148
  %v769 = vunpack.c.l.b16 %v149
  %v770 = vunpack.c.h.b16 %v149
  %v771 = vunpack.c.l.b16 %v150
  %v772 = vunpack.c.h.b16 %v150
  %v773 = vunpack.c.l.b16 %v151
  %v774 = vunpack.c.h.b16 %v151
  %v775 = vunpack.c.l.b16 %v152
  %v776 = vunpack.c.h.b16 %v152
  %v777 = vunpack.c.l.b16 %v153
  %v778 = vunpack.c.h.b16 %v153
  %v779 = vunpack.c.l.b16 %v154
  %v780 = vunpack.c.h.b16 %v154
  %v781 = vunpack.c.l.b16 %v155
  %v782 = vunpack.c.h.b16 %v155
  %v783 = vunpack.c.l.b16 %v156
  %v784 = vunpack.c.h.b16 %v156
  %v785 = vunpack.c.l.b16 %v157
  %v786 = vunpack.c.h.b16 %v157
  %v787 = vunpack.c.l.b16 %v158
  %v788 = vunpack.c.h.b16 %v158
  %v789 = vunpack.c.l.b16 %v159
  %v790 = vunpack.c.h.b16 %v159
  %v791 = vunpack.c.l.b16 %v160
  %v792 = vunpack.c.h.b16 %v160
  %v793 = vunpack.c.l.b16 %v161
  %v794 = vunpack.c.h.b16 %v161
  %v795 = vunpack.c.l.b16 %v162
  %v796 = vunpack.c.h.b16 %v162
  %v797 = vunpack.c.l.b16 %v163
  %v798 = vunpack.c.h.b16 %v163
  %v799 = vunpack.c.l.b16 %v164
  %v800 = vunpack.c.h.b16 %v164
  %v801 = vunpack.c.l.b16 %v165
  %v802 = vunpack.c.h.b16 %v165
  %v803 = vunpack.c.l.b16 %v166
  %v804 = vunpack.c.h.b16 %v166
  %v805 = vunpack.c.l.b16 %v167
  %v806 = vunpack.c.h.b16 %v167
  %v807 = vunpack.c.l.b16 %v168
  %v808 = vunpack.c.h.b16 %v168
  %v809 = vunpack.c.l.b16 %v169
  %v810 = vunpack.c.h.b16 %v169
  %v811 = vunpack.c.l.b16 %v170
  %v812 = vunpack.c.h.b16 %v170
  %v813 = vunpack.c.l.b16 %v171
  %v814 = vunpack.c.h.b16 %v171
  %v815 = vunpack.c.l.b16 %v172
  %v816 = vunpack.c.h.b16 %v172
  %v817 = vunpack.c.l.b16 %v173
  %v818 = vunpack.c.h.b16 %v173
  %v819 = vunpack.c.l.b16 %v174
  %v820 = vunpack.c.h.b16 %v174
  %v821 = vunpack.c.l.b16 %v175
  %v822 = vunpack.c.h.b16 %v175
  %v823 = vunpack.c.l.b16 %v176
  %v824 = vunpack.c.h.b16 %v176
  %v825 = vunpack.c.l.b16 %v177
  %v826 = vunpack.c.h.b16 %v177
  %v827 = vunpack.c.l.b16 %v178
  %v828 = vunpack.c.h.b16 %v178
  %v829 = vunpack.c.l.b16 %v179
  %v830 = vunpack.c.h.b16 %v179
  %v831 = vunpack.c.l.b16 %v180
  %v832 = vunpack.c.h.b16 %v180
  %v833 = vunpack.c.l.b16 %v181
  %v834 = vunpack.c.h.b16 %v181
  %v835 = vunpack.c.l.b16 %v182
  %v836 = vunpack.c.h.b16 %v182
  %v837 = vunpack.c.l.b16 %v183
  %v838 = vunpack.c.h.b16 %v183
  %v839 = vunpack.c.l.b16 %v184
  %v840 = vunpack.c.h.b16 %v184
  %v841 = vunpack.c.l.b16 %v185
  %v842 = vunpack.c.h.b16 %v185
  %v843 = vunpack.c.l.b16 %v186
  %v844 = vunpack.c.h.b16 %v186
  %v845 = vunpack.c.l.b16 %v187
  %v846 = vunpack.c.h.b16 %v187
  %v847 = vunpack.c.l.b16 %v188
  %v848 = vunpack.c.h.b16 %v188
  %v849 = vunpack.c.l.b16 %v189
  %v850 = vunpack.c.h.b16 %v189
  %v851 = vunpack.c.l.b16 %v190
  %v852 = vunpack.c.h.b16 %v190
  %v853 = vunpack.c.l.b16 %v191
  %v854 = vunpack.c.h.b16 %v191
  %v855 = vunpack.c.l.b16 %v192
  %v856 = vunpack.c.h.b16 %v192
  %v857 = vunpack.c.l.b16 %v193
  %v858 = vunpack.c.h.b16 %v193
  %v859 = vunpack.c.l.b16 %v194
  %v860 = vunpack.c.h.b16 %v194
  %v861 = vunpack.c.l.b16 %v195
  %v862 = vunpack.c.h.b16 %v195
  %v863 = vunpack.c.l.b16 %v196
  %v864 = vunpack.c.h.b16 %v196
  %v865 = vunpack.c.l.b16 %v197
  %v866 = vunpack.c.h.b16 %v197
  %v867 = vunpack.c.l.b16 %v198
  %v868 = vunpack.c.h.b16 %v198
  %v869 = vunpack.c.l.b16 %v199
  %v870 = vunpack.c.h.b16 %v199
  %v871 = vunpack.c.l.b16 %v200
  %v872 = vunpack.c.h.b16 %v200
  %v873 = vunpack.c.l.b16 %v201
  %v874 = vunpack.c.h.b16 %v201
  %v875 = vunpack.c.l.b16 %v202
  %v876 = vunpack.c.h.b16 %v202
  %v877 = vunpack.c.l.b16 %v203
  %v878 = vunpack.c.h.b16 %v203
  %v879 = vunpack.c.l.b16 %v204
  %v880 = vunpack.c.h.b16 %v204
  %v881 = vunpack.c.l.b16 %v205
  %v882 = vunpack.c.h.b16 %v205
  %v883 = vunpack.c.l.b16 %v206
  %v884 = vunpack.c.h.b16 %v206
  %v885 = vunpack.c.l.b16 %v207
  %v886 = vunpack.c.h.b16 %v207
  %v887 = vunpack.c.l.b16 %v208
  %v888 = vunpack.c.h.b16 %v208
  %v889 = vunpack.c.l.b16 %v209
  %v890 = vunpack.c.h.b16 %v209
  %v891 = vunpack.c.l.b16 %v210
  %v892 = vunpack.c.h.b16 %v210
  %v893 = vunpack.c.l.b16 %v211
  %v894 = vunpack.c.h.b16 %v211
  %v895 = vunpack.c.l.b16 %v212
  %v896 = vunpack.c.h.b16 %v212
  %v897 = vunpack.c.l.b16 %v213
  %v898 = vunpack.c.h.b16 %v213
  %v899 = vunpack.c.l.b16 %v214
  %v900 = vunpack.c.h.b16 %v214
  %v901 = vunpack.c.l.b16 %v215
  %v902 = vunpack.c.h.b16 %v215
  %v903 = vunpack.c.l.b16 %v216
  %v904 = vunpack.c.h.b16 %v216
  %v905 = vunpack.c.l.b16 %v217
  %v906 = vunpack.c.h.b16 %v217
  %v907 = vunpack.c.l.b16 %v218
  %v908 = vunpack.c.h.b16 %v218
  %v909 = vunpack.c.l.b16 %v219
  %v910 = vunpack.c.h.b16 %v219
  %v911 = vunpack.c.l.b16 %v220
  %v912 = vunpack.c.h.b16 %v220
  %v913 = vunpack.c.l.b16 %v221
  %v914 = vunpack.c.h.b16 %v221
  %v915 = vunpack.c.l.b16 %v222
  %v916 = vunpack.c.h.b16 %v222
  %v917 = vunpack.c.l.b16 %v223
  %v918 = vunpack.c.h.b16 %v223
  %v919 = vunpack.c.l.b16 %v224
  %v920 = vunpack.c.h.b16 %v224
  %v921 = vunpack.c.l.b16 %v225
  %v922 = vunpack.c.h.b16 %v225
  %v923 = vunpack.c.l.b16 %v226
  %v924 = vunpack.c.h.b16 %v226
  %v925 = vunpack.c.l.b16 %v227
  %v926 = vunpack.c.h.b16 %v227
  %v927 = vunpack.c.l.b16 %v228
  %v928 = vunpack.c.h.b16 %v228
  %v929 = vunpack.c.l.b16 %v229
  %v930 = vunpack.c.h.b16 %v229
  %v931 = vunpack.c.l.b16 %v230
  %v932 = vunpack.c.h.b16 %v230
  %v933 = vunpack.c.l.b16 %v231
  %v934 = vunpack.c.h.b16 %v231
  %v935 = vunpack.c.l.b16 %v232
  %v936 = vunpack.c.h.b16 %v232
  %v937 = vunpack.c.l.b16 %v233
  %v938 = vunpack.c.h.b16 %v233
  %v939 = vunpack.c.l.b16 %v234
  %v940 = vunpack.c.h.b16 %v234
  %v941 = vunpack.c.l.b16 %v235
  %v942 = vunpack.c.h.b16 %v235
  %v943 = vunpack.c.l.b16 %v236
  %v944 = vunpack.c.h.b16 %v236
  %v945 = vunpack.c.l.b16 %v237
  %v946 = vunpack.c.h.b16 %v237
  %v947 = vunpack.c.l.b16 %v238
  %v948 = vunpack.c.h.b16 %v238
  %v949 = vpack.c.b16 %v525, %v517
  %v950 = vpack.c.b16 %v526, %v518
  %v951 = vpack.c.b16 %v527, %v519
  %v952 = vpack.c.b16 %v528, %v520
  %v953 = vpack.c.b16 %v529, %v521
  %v954 = vpack.c.b16 %v530, %v522
  %v955 = vpack.c.b16 %v531, %v523
  %v956 = vpack.c.b16 %v532, %v524
  %v957 = vpack.c.b16 %v541, %v533
  %v958 = vpack.c.b16 %v542, %v534
  %v959 = vpack.c.b16 %v543, %v535
  %v960 = vpack.c.b16 %v544, %v536
  %v961 = vpack.c.b16 %v545, %v537
  %v962 = vpack.c.b16 %v546, %v538
  %v963 = vpack.c.b16 %v547, %v539
  %v964 = vpack.c.b16 %v548, %v540
  %v965 = vpack.c.b16 %v557, %v549
  %v966 = vpack.c.b16 %v558, %v550
  %v967 = vpack.c.b16 %v559, %v551
  %v968 = vpack.c.b16 %v560, %v552
  %v969 = vpack.c.b16 %v561, %v553
  %v970 = vpack.c.b16 %v562, %v554
  %v971 = vpack.c.b16 %v563, %v555
  %v972 = vpack.c.b16 %v564, %v556
  %v973 = vpack.c.b16 %v573, %v565
  %v974 = vpack.c.b16 %v574, %v566
  %v975 = vpack.c.b16 %v575, %v567
  %v976 = vpack.c.b16 %v576, %v568
  %v977 = vpack.c.b16 %v577, %v569
  %v978 = vpack.c.b16 %v578, %v570
  %v979 = vpack.c.b16 %v579, %v571
  %v980 = vpack.c.b16 %v580, %v572
  %v981 = vpack.c.b16 %v589, %v581
  %v982 = vpack.c.b16 %v590, %v582
  %v983 = vpack.c.b16 %v591, %v583
  %v984 = vpack.c.b16 %v592, %v584
  %v985 = vpack.c.b16 %v593, %v585
  %v986 = vpack.c.b16 %v594, %v586
  %v987 = vpack.c.b16 %v595, %v587
  %v988 = vpack.c.b16 %v596, %v588
  %v989 = vpack.c.b16 %v605, %v597
  %v990 = vpack.c.b16 %v606, %v598
  %v991 = vpack.c.b16 %v607, %v599
  %v992 = vpack.c.b16 %v608, %v600
  %v993 = vpack.c.b16 %v609, %v601
  %v994 = vpack.c.b16 %v610, %v602
  %v995 = vpack.c.b16 %v611, %v603
  %v996 = vpack.c.b16 %v612, %v604
  %v997 = vpack.c.b16 %v621, %v613
  %v998 = vpack.c.b16 %v622, %v614
  %v999 = vpack.c.b16 %v623, %v615
  %v1000 = vpack.c.b16 %v624, %v616
  %v1001 = vpack.c.b16 %v625, %v617
  %v1002 = vpack.c.b16 %v626, %v618
  %v1003 = vpack.c.b16 %v627, %v619
  %v1004 = vpack.c.b16 %v628, %v620
  %v1005 = vpack.c.b16 %v637, %v629
  %v1006 = vpack.c.b16 %v638, %v630
  %v1007 = vpack.c.b16 %v639, %v631
  %v1008 = vpack.c.b16 %v640, %v632
  %v1009 = vpack.c.b16 %v641, %v633
  %v1010 = vpack.c.b16 %v642, %v634
  %v1011 = vpack.c.b16 %v643, %v635
  %v1012 = vpack.c.b16 %v644, %v636
  %v1013 = vpack.c.b16 %v653, %v645
  %v1014 = vpack.c.b16 %v654, %v646
  %v1015 = vpack.c.b16 %v655, %v647
  %v1016 = vpack.c.b16 %v656, %v648
  %v1017 = vpack.c.b16 %v657, %v649
  %v1018 = vpack.c.b16 %v658, %v650
  %v1019 = vpack.c.b16 %v659, %v651
  %v1020 = vpack.c.b16 %v660, %v652
  %v1021 = vpack.c.b16 %v669, %v661
  %v1022 = vpack.c.b16 %v670, %v662
  %v1023 = vpack.c.b16 %v671, %v663
  %v1024 = vpack.c.b16 %v672, %v664
  %v1025 = vpack.c.b16 %v673, %v665
  %v1026 = vpack.c.b16 %v674, %v666
  %v1027 = vpack.c.b16 %v675, %v667
  %v1028 = vpack.c.b16 %v676, %v668
  %v1029 = vpack.c.b16 %v685, %v677
  %v1030 = vpack.c.b16 %v686, %v678
  %v1031 = vpack.c.b16 %v687, %v679
  %v1032 = vpack.c.b16 %v688, %v680
  %v1033 = vpack.c.b16 %v689, %v681
  %v1034 = vpack.c.b16 %v690, %v682
  %v1035 = vpack.c.b16 %v691, %v683
  %v1036 = vpack.c.b16 %v692, %v684
  %v1037 = vpack.c.b16 %v701, %v693
  %v1038 = vpack.c.b16 %v702, %v694
  %v1039 = vpack.c.b16 %v703, %v695
  %v1040 = vpack.c.b16 %v704, %v696
  %v1041 = vpack.c.b16 %v705, %v697
  %v1042 = vpack.c.b16 %v706, %v698
  %v1043 = vpack.c.b16 %v707, %v699
  %v1044 = vpack.c.b16 %v708, %v700
  %v1045 = vpack.c.b16 %v717, %v709
  %v1046 = vpack.c.b16 %v718, %v710
  %v1047 = vpack.c.b16 %v719, %v711
  %v1048 = vpack.c.b16 %v720, %v712
  %v1049 = vpack.c.b16 %v721, %v713
  %v1050 = vpack.c.b16 %v722, %v714
  %v1051 = vpack.c.b16 %v723, %v715
  %v1052 = vpack.c.b16 %v724, %v716
  %v1053 = vpack.c.b16 %v733, %v725
  %v1054 = vpack.c.b16 %v734, %v726
  %v1055 = vpack.c.b16 %v735, %v727
  %v1056 = vpack.c.b16 %v736, %v728
  %v1057 = vpack.c.b16 %v737, %v729
  %v1058 = vpack.c.b16 %v738, %v730
  %v1059 = vpack.c.b16 %v739, %v731
  %v1060 = vpack.c.b16 %v740, %v732
  %v1061 = vpack.c.b16 %v749, %v741
  %v1062 = vpack.c.b16 %v750, %v742
  %v1063 = vpack.c.b16 %v751, %v743
  %v1064 = vpack.c.b16 %v752, %v744
  %v1065 = vpack.c.b16 %v753, %v745
  %v1066 = vpack.c.b16 %v754, %v746
  %v1067 = vpack.c.b16 %v755, %v747
  %v1068 = vpack.c.b16 %v756, %v748
  %v1069 = vpack.c.b16 %v765, %v757
  %v1070 = vpack.c.b16 %v766, %v758
  %v1071 = vpack.c.b16 %v767, %v759
  %v1072 = vpack.c.b16 %v768, %v760
  %v1073 = vpack.c.b16 %v769, %v761
  %v1074 = vpack.c.b16 %v770, %v762
  %v1075 = vpack.c.b16 %v771, %v763
  %v1076 = vpack.c.b16 %v772, %v764
  %v1077 = vpack.c.b16 %v781, %v773
  %v1078 = vpack.c.b16 %v782, %v774
  %v1079 = vpack.c.b16 %v783, %v775
  %v1080 = vpack.c.b16 %v784, %v776
  %v1081 = vpack.c.b16 %v785, %v777
  %v1082 = vpack.c.b16 %v786, %v778
  %v1083 = vpack.c.b16 %v787, %v779
  %v1084 = vpack.c.b16 %v788, %v780
  %v1085 = vpack.c.b16 %v797, %v789
  %v1086 = vpack.c.b16 %v798, %v790
  %v1087 = vpack.c.b16 %v799, %v791
  %v1088 = vpack.c.b16 %v800, %v792
  %v1089 = vpack.c.b16 %v801, %v793
  %v1090 = vpack.c.b16 %v802, %v794
  %v1091 = vpack.c.b16 %v803, %v795
  %v1092 = vpack.c.b16 %v804, %v796
  %v1093 = vpack.c.b16 %v813, %v805
  %v1094 = vpack.c.b16 %v814, %v806
  %v1095 = vpack.c.b16 %v815, %v807
  %v1096 = vpack.c.b16 %v816, %v808
  %v1097 = vpack.c.b16 %v817, %v809
  %v1098 = vpack.c.b16 %v818, %v810
  %v1099 = vpack.c.b16 %v819, %v811
  %v1100 = vpack.c.b16 %v820, %v812
  %v1101 = vpack.c.b16 %v829, %v821
  %v1102 = vpack.c.b16 %v830, %v822
  %v1103 = vpack.c.b16 %v831, %v823
  %v1104 = vpack.c.b16 %v832, %v824
  %v1105 = vpack.c.b16 %v833, %v825
  %v1106 = vpack.c.b16 %v834, %v826
  %v1107 = vpack.c.b16 %v835, %v827
  %v1108 = vpack.c.b16 %v836, %v828
  %v1109 = vpack.c.b16 %v845, %v837
  %v1110 = vpack.c.b16 %v846, %v838
  %v1111 = vpack.c.b16 %v847, %v839
  %v1112 = vpack.c.b16 %v848, %v840
  %v1113 = vpack.c.b16 %v849, %v841
  %v1114 = vpack.c.b16 %v850, %v842
  %v1115 = vpack.c.b16 %v851, %v843
  %v1116 = vpack.c.b16 %v852, %v844
  %v1117 = vpack.c.b16 %v861, %v853
  %v1118 = vpack.c.b16 %v862, %v854
  %v1119 = vpack.c.b16 %v863, %v855
  %v1120 = vpack.c.b16 %v864, %v856
  %v1121 = vpack.c.b16 %v865, %v857
  %v1122 = vpack.c.b16 %v866, %v858
  %v1123 = vpack.c.b16 %v867, %v859
  %v1124 = vpack.c.b16 %v868, %v860
  %v1125 = vpack.c.b16 %v877, %v869
  %v1126 = vpack.c.b16 %v878, %v870
  %v1127 = vpack.c.b16 %v879, %v871
  %v1128 = vpack.c.b16 %v880, %v872
  %v1129 = vpack.c.b16 %v881, %v873
  %v1130 = vpack.c.b16 %v882, %v874
  %v1131 = vpack.c.b16 %v883, %v875
  %v1132 = vpack.c.b16 %v884, %v876
  %v1133 = vpack.c.b16 %v893, %v885
  %v1134 = vpack.c.b16 %v894, %v886
  %v1135 = vpack.c.b16 %v895, %v887
  %v1136 = vpack.c.b16 %v896, %v888
  %v1137 = vpack.c.b16 %v897, %v889
  %v1138 = vpack.c.b16 %v898, %v890
  %v1139 = vpack.c.b16 %v899, %v891
  %v1140 = vpack.c.b16 %v900, %v892
  %v1141 = vpack.c.b16 %v909, %v901
  %v1142 = vpack.c.b16 %v910, %v902
  %v1143 = vpack.c.b16 %v911, %v903
  %v1144 = vpack.c.b16 %v912, %v904
  %v1145 = vpack.c.b16 %v913, %v905
  %v1146 = vpack.c.b16 %v914, %v906
  %v1147 = vpack.c.b16 %v915, %v907
  %v1148 = vpack.c.b16 %v916, %v908
  %v1149 = vpack.c.b16 %v925, %v917
  %v1150 = vpack.c.b16 %v926, %v918
  %v1151 = vpack.c.b16 %v927, %v919
  %v1152 = vpack.c.b16 %v928, %v920
  %v1153 = vpack.c.b16 %v929, %v921
  %v1154 = vpack.c.b16 %v930, %v922
  %v1155 = vpack.c.b16 %v931, %v923
  %v1156 = vpack.c.b16 %v932, %v924
  %v1157 = vpack.c.b16 %v941, %v933
  %v1158 = vpack.c.b16 %v942, %v934
  %v1159 = vpack.c.b16 %v943, %v935
  %v1160 = vpack.c.b16 %v944, %v936
  %v1161 = vpack.c.b16 %v945, %v937
  %v1162 = vpack.c.b16 %v946, %v938
  %v1163 = vpack.c.b16 %v947, %v939
  %v1164 = vpack.c.b16 %v948, %v940
  %vm1381 = vcmask 392192
  %v1383 = vsel %vm1381, %v290, 0
  %v1386 = vsel %vm1381, %v294, 0
  %1388 = vmatprep.subr.bf16.mxu0 %v950
  %1389 = vmatpush1.bf16.msra.mxu0 %v949
  %1390 = vmatprep.subr.bf16.mxu0 %v958
  %1391 = vmatpush1.bf16.msra.mxu0 %v957
  %1392 = vmatprep.subr.bf16.mxu0 %v966
  %1393 = vmatpush1.bf16.msra.mxu0 %v965
  %1394 = vmatprep.subr.bf16.mxu0 %v974
  %1395 = vmatpush1.bf16.msra.mxu0 %v973
  %1396 = vmatprep.subr.bf16.mxu0 %v982
  %1397 = vmatpush1.bf16.msra.mxu0 %v981
  %1398 = vmatprep.subr.bf16.mxu0 %v990
  %1399 = vmatpush1.bf16.msra.mxu0 %v989
  %1400 = vmatprep.subr.bf16.mxu0 %v998
  %1401 = vmatpush1.bf16.msra.mxu0 %v997
  %1402 = vmatprep.subr.bf16.mxu0 %v1006
  %1403 = vmatpush1.bf16.msra.mxu0 %v1005
  %1404 = vmatprep.subr.bf16.mxu0 %v1014
  %1405 = vmatpush1.bf16.msra.mxu0 %v1013
  %1406 = vmatprep.subr.bf16.mxu0 %v1022
  %1407 = vmatpush1.bf16.msra.mxu0 %v1021
  %1408 = vmatprep.subr.bf16.mxu0 %v1030
  %1409 = vmatpush1.bf16.msra.mxu0 %v1029
  %1410 = vmatprep.subr.bf16.mxu0 %v1038
  %1411 = vmatpush1.bf16.msra.mxu0 %v1037
  %1412 = vmatprep.subr.bf16.mxu0 %v1046
  %1413 = vmatpush1.bf16.msra.mxu0 %v1045
  %1414 = vmatprep.subr.bf16.mxu0 %v1054
  %1415 = vmatpush1.bf16.msra.mxu0 %v1053
  %1416 = vmatprep.subr.bf16.mxu0 %v1062
  %1417 = vmatpush1.bf16.msra.mxu0 %v1061
  %1418 = vmatprep.subr.bf16.mxu0 %v1070
  %1419 = vmatpush1.bf16.msra.mxu0 %v1069
  %1420 = vmatprep.mubr.bf16.mxu0 %v288
  %1421 = vmatmul.mubr.bf16.gmra.mrb[0].mxu0 %v287
  %v1422 = vpop.f32.mrb[0].mxu0
  %v1423 = vadd.f32 %v246, %v1422
  %v1424 = vpop.f32.mrb[0].mxu0
  %v1425 = vadd.f32 %v246, %v1424
  %v1426 = vpop.f32.mrb[0].mxu0
  %v1427 = vadd.f32 %v251, %v1426
  %v1428 = vpop.f32.mrb[0].mxu0
  %v1429 = vadd.f32 %v251, %v1428
  %1430 = vmatprep.mubr.bf16.mxu0 %v292
  %1431 = vmatmul.mubr.bf16.gmra.mrb[0].mxu0 %v291
  %v1432 = vpop.f32.mrb[0].mxu0
  %v1433 = vadd.f32 %v256, %v1432
  %v1434 = vpop.f32.mrb[0].mxu0
  %v1435 = vadd.f32 %v256, %v1434
  %v1436 = vpop.f32.mrb[0].mxu0
  %v1437 = vadd.f32 %v261, %v1436
  %v1438 = vpop.f32.mrb[0].mxu0
  %v1439 = vadd.f32 %v261, %v1438
  %1440 = vdwg.mxu0
  %1441 = vmatprep.subr.bf16.mxu0 %v1078
  %1442 = vmatpush1.bf16.msra.mxu0 %v1077
  %1443 = vmatprep.subr.bf16.mxu0 %v1086
  %1444 = vmatpush1.bf16.msra.mxu0 %v1085
  %1445 = vmatprep.subr.bf16.mxu0 %v1094
  %1446 = vmatpush1.bf16.msra.mxu0 %v1093
  %1447 = vmatprep.subr.bf16.mxu0 %v1102
  %1448 = vmatpush1.bf16.msra.mxu0 %v1101
  %1449 = vmatprep.subr.bf16.mxu0 %v1110
  %1450 = vmatpush1.bf16.msra.mxu0 %v1109
  %1451 = vmatprep.subr.bf16.mxu0 %v1118
  %1452 = vmatpush1.bf16.msra.mxu0 %v1117
  %1453 = vmatprep.subr.bf16.mxu0 %v1126
  %1454 = vmatpush1.bf16.msra.mxu0 %v1125
  %1455 = vmatprep.subr.bf16.mxu0 %v1134
  %1456 = vmatpush1.bf16.msra.mxu0 %v1133
  %1457 = vmatprep.subr.bf16.mxu0 %v1142
  %1458 = vmatpush1.bf16.msra.mxu0 %v1141
  %1459 = vmatprep.subr.bf16.mxu0 %v1150
  %1460 = vmatpush1.bf16.msra.mxu0 %v1149
  %1461 = vmatprep.subr.bf16.mxu0 %v1158
  %1462 = vmatpush1.bf16.msra.mxu0 %v1157
  %1463 = vmatprep.subr.bf16.mxu0 0
  %1464 = vmatpush1.bf16.msra.mxu0 0
  %1465 = vmatprep.subr.bf16.mxu0 0
  %1466 = vmatpush1.bf16.msra.mxu0 0
  %1467 = vmatprep.subr.bf16.mxu0 0
  %1468 = vmatpush1.bf16.msra.mxu0 0
  %1469 = vmatprep.subr.bf16.mxu0 0
  %1470 = vmatpush1.bf16.msra.mxu0 0
  %1471 = vmatprep.subr.bf16.mxu0 0
  %1472 = vmatpush1.bf16.msra.mxu0 0
  %1473 = vmatprep.mubr.bf16.mxu0 %v1383
  %1474 = vmatmul.mubr.bf16.gmra.mrb[0].mxu0 %v289
  %v1475 = vpop.f32.mrb[0].mxu0
  %v1476 = vadd.f32 %v1423, %v1475
  %v1477 = vpop.f32.mrb[0].mxu0
  %v1478 = vadd.f32 %v1425, %v1477
  %v1479 = vpop.f32.mrb[0].mxu0
  %v1480 = vadd.f32 %v1427, %v1479
  %v1481 = vpop.f32.mrb[0].mxu0
  %v1482 = vadd.f32 %v1429, %v1481
  %1483 = vmatprep.mubr.bf16.mxu0 %v1386
  %1484 = vmatmul.mubr.bf16.gmra.mrb[0].mxu0 %v293
  %v1485 = vpop.f32.mrb[0].mxu0
  %v1486 = vadd.f32 %v1433, %v1485
  %v1487 = vpop.f32.mrb[0].mxu0
  %v1488 = vadd.f32 %v1435, %v1487
  %v1489 = vpop.f32.mrb[0].mxu0
  %v1490 = vadd.f32 %v1437, %v1489
  %v1491 = vpop.f32.mrb[0].mxu0
  %v1492 = vadd.f32 %v1439, %v1491
  %1493 = vdwg.mxu0
  %1494 = vmatprep.subr.bf16.mxu0 %v952
  %1495 = vmatpush1.bf16.msra.mxu0 %v951
  %1496 = vmatprep.subr.bf16.mxu0 %v960
  %1497 = vmatpush1.bf16.msra.mxu0 %v959
  %1498 = vmatprep.subr.bf16.mxu0 %v968
  %1499 = vmatpush1.bf16.msra.mxu0 %v967
  %1500 = vmatprep.subr.bf16.mxu0 %v976
  %1501 = vmatpush1.bf16.msra.mxu0 %v975
  %1502 = vmatprep.subr.bf16.mxu0 %v984
  %1503 = vmatpush1.bf16.msra.mxu0 %v983
  %1504 = vmatprep.subr.bf16.mxu0 %v992
  %1505 = vmatpush1.bf16.msra.mxu0 %v991
  %1506 = vmatprep.subr.bf16.mxu0 %v1000
  %1507 = vmatpush1.bf16.msra.mxu0 %v999
  %1508 = vmatprep.subr.bf16.mxu0 %v1008
  %1509 = vmatpush1.bf16.msra.mxu0 %v1007
  %1510 = vmatprep.subr.bf16.mxu0 %v1016
  %1511 = vmatpush1.bf16.msra.mxu0 %v1015
  %1512 = vmatprep.subr.bf16.mxu0 %v1024
  %1513 = vmatpush1.bf16.msra.mxu0 %v1023
  %1514 = vmatprep.subr.bf16.mxu0 %v1032
  %1515 = vmatpush1.bf16.msra.mxu0 %v1031
  %1516 = vmatprep.subr.bf16.mxu0 %v1040
  %1517 = vmatpush1.bf16.msra.mxu0 %v1039
  %1518 = vmatprep.subr.bf16.mxu0 %v1048
  %1519 = vmatpush1.bf16.msra.mxu0 %v1047
  %1520 = vmatprep.subr.bf16.mxu0 %v1056
  %1521 = vmatpush1.bf16.msra.mxu0 %v1055
  %1522 = vmatprep.subr.bf16.mxu0 %v1064
  %1523 = vmatpush1.bf16.msra.mxu0 %v1063
  %1524 = vmatprep.subr.bf16.mxu0 %v1072
  %1525 = vmatpush1.bf16.msra.mxu0 %v1071
  %1526 = vmatprep.mubr.bf16.mxu0 %v288
  %1527 = vmatmul.mubr.bf16.gmra.mrb[0].mxu0 %v287
  %v1528 = vpop.f32.mrb[0].mxu0
  %v1529 = vadd.f32 %v246, %v1528
  %v1530 = vpop.f32.mrb[0].mxu0
  %v1531 = vadd.f32 %v246, %v1530
  %v1532 = vpop.f32.mrb[0].mxu0
  %v1533 = vadd.f32 %v251, %v1532
  %v1534 = vpop.f32.mrb[0].mxu0
  %v1535 = vadd.f32 %v251, %v1534
  %1536 = vmatprep.mubr.bf16.mxu0 %v292
  %1537 = vmatmul.mubr.bf16.gmra.mrb[0].mxu0 %v291
  %v1538 = vpop.f32.mrb[0].mxu0
  %v1539 = vadd.f32 %v256, %v1538
  %v1540 = vpop.f32.mrb[0].mxu0
  %v1541 = vadd.f32 %v256, %v1540
  %v1542 = vpop.f32.mrb[0].mxu0
  %v1543 = vadd.f32 %v261, %v1542
  %v1544 = vpop.f32.mrb[0].mxu0
  %v1545 = vadd.f32 %v261, %v1544
  %1546 = vdwg.mxu0
  %1547 = vmatprep.subr.bf16.mxu0 %v1080
  %1548 = vmatpush1.bf16.msra.mxu0 %v1079
  %1549 = vmatprep.subr.bf16.mxu0 %v1088
  %1550 = vmatpush1.bf16.msra.mxu0 %v1087
  %1551 = vmatprep.subr.bf16.mxu0 %v1096
  %1552 = vmatpush1.bf16.msra.mxu0 %v1095
  %1553 = vmatprep.subr.bf16.mxu0 %v1104
  %1554 = vmatpush1.bf16.msra.mxu0 %v1103
  %1555 = vmatprep.subr.bf16.mxu0 %v1112
  %1556 = vmatpush1.bf16.msra.mxu0 %v1111
  %1557 = vmatprep.subr.bf16.mxu0 %v1120
  %1558 = vmatpush1.bf16.msra.mxu0 %v1119
  %1559 = vmatprep.subr.bf16.mxu0 %v1128
  %1560 = vmatpush1.bf16.msra.mxu0 %v1127
  %1561 = vmatprep.subr.bf16.mxu0 %v1136
  %1562 = vmatpush1.bf16.msra.mxu0 %v1135
  %1563 = vmatprep.subr.bf16.mxu0 %v1144
  %1564 = vmatpush1.bf16.msra.mxu0 %v1143
  %1565 = vmatprep.subr.bf16.mxu0 %v1152
  %1566 = vmatpush1.bf16.msra.mxu0 %v1151
  %1567 = vmatprep.subr.bf16.mxu0 %v1160
  %1568 = vmatpush1.bf16.msra.mxu0 %v1159
  %1569 = vmatprep.subr.bf16.mxu0 0
  %1570 = vmatpush1.bf16.msra.mxu0 0
  %1571 = vmatprep.subr.bf16.mxu0 0
  %1572 = vmatpush1.bf16.msra.mxu0 0
  %1573 = vmatprep.subr.bf16.mxu0 0
  %1574 = vmatpush1.bf16.msra.mxu0 0
  %1575 = vmatprep.subr.bf16.mxu0 0
  %1576 = vmatpush1.bf16.msra.mxu0 0
  %1577 = vmatprep.subr.bf16.mxu0 0
  %1578 = vmatpush1.bf16.msra.mxu0 0
  %1579 = vmatprep.mubr.bf16.mxu0 %v1383
  %1580 = vmatmul.mubr.bf16.gmra.mrb[0].mxu0 %v289
  %v1581 = vpop.f32.mrb[0].mxu0
  %v1582 = vadd.f32 %v1529, %v1581
  %v1583 = vpop.f32.mrb[0].mxu0
  %v1584 = vadd.f32 %v1531, %v1583
  %v1585 = vpop.f32.mrb[0].mxu0
  %v1586 = vadd.f32 %v1533, %v1585
  %v1587 = vpop.f32.mrb[0].mxu0
  %v1588 = vadd.f32 %v1535, %v1587
  %1589 = vmatprep.mubr.bf16.mxu0 %v1386
  %1590 = vmatmul.mubr.bf16.gmra.mrb[0].mxu0 %v293
  %v1591 = vpop.f32.mrb[0].mxu0
  %v1592 = vadd.f32 %v1539, %v1591
  %v1593 = vpop.f32.mrb[0].mxu0
  %v1594 = vadd.f32 %v1541, %v1593
  %v1595 = vpop.f32.mrb[0].mxu0
  %v1596 = vadd.f32 %v1543, %v1595
  %v1597 = vpop.f32.mrb[0].mxu0
  %v1598 = vadd.f32 %v1545, %v1597
  %1599 = vdwg.mxu0
  %1600 = vmatprep.subr.bf16.mxu0 %v954
  %1601 = vmatpush1.bf16.msra.mxu0 %v953
  %1602 = vmatprep.subr.bf16.mxu0 %v962
  %1603 = vmatpush1.bf16.msra.mxu0 %v961
  %1604 = vmatprep.subr.bf16.mxu0 %v970
  %1605 = vmatpush1.bf16.msra.mxu0 %v969
  %1606 = vmatprep.subr.bf16.mxu0 %v978
  %1607 = vmatpush1.bf16.msra.mxu0 %v977
  %1608 = vmatprep.subr.bf16.mxu0 %v986
  %1609 = vmatpush1.bf16.msra.mxu0 %v985
  %1610 = vmatprep.subr.bf16.mxu0 %v994
  %1611 = vmatpush1.bf16.msra.mxu0 %v993
  %1612 = vmatprep.subr.bf16.mxu0 %v1002
  %1613 = vmatpush1.bf16.msra.mxu0 %v1001
  %1614 = vmatprep.subr.bf16.mxu0 %v1010
  %1615 = vmatpush1.bf16.msra.mxu0 %v1009
  %1616 = vmatprep.subr.bf16.mxu0 %v1018
  %1617 = vmatpush1.bf16.msra.mxu0 %v1017
  %1618 = vmatprep.subr.bf16.mxu0 %v1026
  %1619 = vmatpush1.bf16.msra.mxu0 %v1025
  %1620 = vmatprep.subr.bf16.mxu0 %v1034
  %1621 = vmatpush1.bf16.msra.mxu0 %v1033
  %1622 = vmatprep.subr.bf16.mxu0 %v1042
  %1623 = vmatpush1.bf16.msra.mxu0 %v1041
  %1624 = vmatprep.subr.bf16.mxu0 %v1050
  %1625 = vmatpush1.bf16.msra.mxu0 %v1049
  %1626 = vmatprep.subr.bf16.mxu0 %v1058
  %1627 = vmatpush1.bf16.msra.mxu0 %v1057
  %1628 = vmatprep.subr.bf16.mxu0 %v1066
  %1629 = vmatpush1.bf16.msra.mxu0 %v1065
  %1630 = vmatprep.subr.bf16.mxu0 %v1074
  %1631 = vmatpush1.bf16.msra.mxu0 %v1073
  %1632 = vmatprep.mubr.bf16.mxu0 %v288
  %1633 = vmatmul.mubr.bf16.gmra.mrb[0].mxu0 %v287
  %v1634 = vpop.f32.mrb[0].mxu0
  %v1635 = vadd.f32 %v246, %v1634
  %v1636 = vpop.f32.mrb[0].mxu0
  %v1637 = vadd.f32 %v246, %v1636
  %v1638 = vpop.f32.mrb[0].mxu0
  %v1639 = vadd.f32 %v251, %v1638
  %v1640 = vpop.f32.mrb[0].mxu0
  %v1641 = vadd.f32 %v251, %v1640
  %1642 = vmatprep.mubr.bf16.mxu0 %v292
  %1643 = vmatmul.mubr.bf16.gmra.mrb[0].mxu0 %v291
  %v1644 = vpop.f32.mrb[0].mxu0
  %v1645 = vadd.f32 %v256, %v1644
  %v1646 = vpop.f32.mrb[0].mxu0
  %v1647 = vadd.f32 %v256, %v1646
  %v1648 = vpop.f32.mrb[0].mxu0
  %v1649 = vadd.f32 %v261, %v1648
  %v1650 = vpop.f32.mrb[0].mxu0
  %v1651 = vadd.f32 %v261, %v1650
  %1652 = vdwg.mxu0
  %1653 = vmatprep.subr.bf16.mxu0 %v1082
  %1654 = vmatpush1.bf16.msra.mxu0 %v1081
  %1655 = vmatprep.subr.bf16.mxu0 %v1090
  %1656 = vmatpush1.bf16.msra.mxu0 %v1089
  %1657 = vmatprep.subr.bf16.mxu0 %v1098
  %1658 = vmatpush1.bf16.msra.mxu0 %v1097
  %1659 = vmatprep.subr.bf16.mxu0 %v1106
  %1660 = vmatpush1.bf16.msra.mxu0 %v1105
  %1661 = vmatprep.subr.bf16.mxu0 %v1114
  %1662 = vmatpush1.bf16.msra.mxu0 %v1113
  %1663 = vmatprep.subr.bf16.mxu0 %v1122
  %1664 = vmatpush1.bf16.msra.mxu0 %v1121
  %1665 = vmatprep.subr.bf16.mxu0 %v1130
  %1666 = vmatpush1.bf16.msra.mxu0 %v1129
  %1667 = vmatprep.subr.bf16.mxu0 %v1138
  %1668 = vmatpush1.bf16.msra.mxu0 %v1137
  %1669 = vmatprep.subr.bf16.mxu0 %v1146
  %1670 = vmatpush1.bf16.msra.mxu0 %v1145
  %1671 = vmatprep.subr.bf16.mxu0 %v1154
  %1672 = vmatpush1.bf16.msra.mxu0 %v1153
  %1673 = vmatprep.subr.bf16.mxu0 %v1162
  %1674 = vmatpush1.bf16.msra.mxu0 %v1161
  %1675 = vmatprep.subr.bf16.mxu0 0
  %1676 = vmatpush1.bf16.msra.mxu0 0
  %1677 = vmatprep.subr.bf16.mxu0 0
  %1678 = vmatpush1.bf16.msra.mxu0 0
  %1679 = vmatprep.subr.bf16.mxu0 0
  %1680 = vmatpush1.bf16.msra.mxu0 0
  %1681 = vmatprep.subr.bf16.mxu0 0
  %1682 = vmatpush1.bf16.msra.mxu0 0
  %1683 = vmatprep.subr.bf16.mxu0 0
  %1684 = vmatpush1.bf16.msra.mxu0 0
  %1685 = vmatprep.mubr.bf16.mxu0 %v1383
  %1686 = vmatmul.mubr.bf16.gmra.mrb[0].mxu0 %v289
  %v1687 = vpop.f32.mrb[0].mxu0
  %v1688 = vadd.f32 %v1635, %v1687
  %v1689 = vpop.f32.mrb[0].mxu0
  %v1690 = vadd.f32 %v1637, %v1689
  %v1691 = vpop.f32.mrb[0].mxu0
  %v1692 = vadd.f32 %v1639, %v1691
  %v1693 = vpop.f32.mrb[0].mxu0
  %v1694 = vadd.f32 %v1641, %v1693
  %1695 = vmatprep.mubr.bf16.mxu0 %v1386
  %1696 = vmatmul.mubr.bf16.gmra.mrb[0].mxu0 %v293
  %v1697 = vpop.f32.mrb[0].mxu0
  %v1698 = vadd.f32 %v1645, %v1697
  %v1699 = vpop.f32.mrb[0].mxu0
  %v1700 = vadd.f32 %v1647, %v1699
  %v1701 = vpop.f32.mrb[0].mxu0
  %v1702 = vadd.f32 %v1649, %v1701
  %v1703 = vpop.f32.mrb[0].mxu0
  %v1704 = vadd.f32 %v1651, %v1703
  %1705 = vdwg.mxu0
  %1706 = vmatprep.subr.bf16.mxu0 %v956
  %1707 = vmatpush1.bf16.msra.mxu0 %v955
  %1708 = vmatprep.subr.bf16.mxu0 %v964
  %1709 = vmatpush1.bf16.msra.mxu0 %v963
  %1710 = vmatprep.subr.bf16.mxu0 %v972
  %1711 = vmatpush1.bf16.msra.mxu0 %v971
  %1712 = vmatprep.subr.bf16.mxu0 %v980
  %1713 = vmatpush1.bf16.msra.mxu0 %v979
  %1714 = vmatprep.subr.bf16.mxu0 %v988
  %1715 = vmatpush1.bf16.msra.mxu0 %v987
  %1716 = vmatprep.subr.bf16.mxu0 %v996
  %1717 = vmatpush1.bf16.msra.mxu0 %v995
  %1718 = vmatprep.subr.bf16.mxu0 %v1004
  %1719 = vmatpush1.bf16.msra.mxu0 %v1003
  %1720 = vmatprep.subr.bf16.mxu0 %v1012
  %1721 = vmatpush1.bf16.msra.mxu0 %v1011
  %1722 = vmatprep.subr.bf16.mxu0 %v1020
  %1723 = vmatpush1.bf16.msra.mxu0 %v1019
  %1724 = vmatprep.subr.bf16.mxu0 %v1028
  %1725 = vmatpush1.bf16.msra.mxu0 %v1027
  %1726 = vmatprep.subr.bf16.mxu0 %v1036
  %1727 = vmatpush1.bf16.msra.mxu0 %v1035
  %1728 = vmatprep.subr.bf16.mxu0 %v1044
  %1729 = vmatpush1.bf16.msra.mxu0 %v1043
  %1730 = vmatprep.subr.bf16.mxu0 %v1052
  %1731 = vmatpush1.bf16.msra.mxu0 %v1051
  %1732 = vmatprep.subr.bf16.mxu0 %v1060
  %1733 = vmatpush1.bf16.msra.mxu0 %v1059
  %1734 = vmatprep.subr.bf16.mxu0 %v1068
  %1735 = vmatpush1.bf16.msra.mxu0 %v1067
  %1736 = vmatprep.subr.bf16.mxu0 %v1076
  %1737 = vmatpush1.bf16.msra.mxu0 %v1075
  %1738 = vmatprep.mubr.bf16.mxu0 %v288
  %1739 = vmatmul.mubr.bf16.gmra.mrb[0].mxu0 %v287
  %v1740 = vpop.f32.mrb[0].mxu0
  %v1741 = vadd.f32 %v246, %v1740
  %v1742 = vpop.f32.mrb[0].mxu0
  %v1743 = vadd.f32 %v246, %v1742
  %v1744 = vpop.f32.mrb[0].mxu0
  %v1745 = vadd.f32 %v251, %v1744
  %v1746 = vpop.f32.mrb[0].mxu0
  %v1747 = vadd.f32 %v251, %v1746
  %1748 = vmatprep.mubr.bf16.mxu0 %v292
  %1749 = vmatmul.mubr.bf16.gmra.mrb[0].mxu0 %v291
  %v1750 = vpop.f32.mrb[0].mxu0
  %v1751 = vadd.f32 %v256, %v1750
  %v1752 = vpop.f32.mrb[0].mxu0
  %v1753 = vadd.f32 %v256, %v1752
  %v1754 = vpop.f32.mrb[0].mxu0
  %v1755 = vadd.f32 %v261, %v1754
  %v1756 = vpop.f32.mrb[0].mxu0
  %v1757 = vadd.f32 %v261, %v1756
  %1758 = vdwg.mxu0
  %1759 = vmatprep.subr.bf16.mxu0 %v1084
  %1760 = vmatpush1.bf16.msra.mxu0 %v1083
  %1761 = vmatprep.subr.bf16.mxu0 %v1092
  %1762 = vmatpush1.bf16.msra.mxu0 %v1091
  %1763 = vmatprep.subr.bf16.mxu0 %v1100
  %1764 = vmatpush1.bf16.msra.mxu0 %v1099
  %1765 = vmatprep.subr.bf16.mxu0 %v1108
  %1766 = vmatpush1.bf16.msra.mxu0 %v1107
  %1767 = vmatprep.subr.bf16.mxu0 %v1116
  %1768 = vmatpush1.bf16.msra.mxu0 %v1115
  %1769 = vmatprep.subr.bf16.mxu0 %v1124
  %1770 = vmatpush1.bf16.msra.mxu0 %v1123
  %1771 = vmatprep.subr.bf16.mxu0 %v1132
  %1772 = vmatpush1.bf16.msra.mxu0 %v1131
  %1773 = vmatprep.subr.bf16.mxu0 %v1140
  %1774 = vmatpush1.bf16.msra.mxu0 %v1139
  %1775 = vmatprep.subr.bf16.mxu0 %v1148
  %1776 = vmatpush1.bf16.msra.mxu0 %v1147
  %1777 = vmatprep.subr.bf16.mxu0 %v1156
  %1778 = vmatpush1.bf16.msra.mxu0 %v1155
  %1779 = vmatprep.subr.bf16.mxu0 %v1164
  %1780 = vmatpush1.bf16.msra.mxu0 %v1163
  %1781 = vmatprep.subr.bf16.mxu0 0
  %1782 = vmatpush1.bf16.msra.mxu0 0
  %1783 = vmatprep.subr.bf16.mxu0 0
  %1784 = vmatpush1.bf16.msra.mxu0 0
  %1785 = vmatprep.subr.bf16.mxu0 0
  %1786 = vmatpush1.bf16.msra.mxu0 0
  %1787 = vmatprep.subr.bf16.mxu0 0
  %1788 = vmatpush1.bf16.msra.mxu0 0
  %1789 = vmatprep.subr.bf16.mxu0 0
  %1790 = vmatpush1.bf16.msra.mxu0 0
  %1791 = vmatprep.mubr.bf16.mxu0 %v1383
  %1792 = vmatmul.mubr.bf16.gmra.mrb[0].mxu0 %v289
  %v1793 = vpop.f32.mrb[0].mxu0
  %v1794 = vadd.f32 %v1741, %v1793
  %v1795 = vpop.f32.mrb[0].mxu0
  %v1796 = vadd.f32 %v1743, %v1795
  %v1797 = vpop.f32.mrb[0].mxu0
  %v1798 = vadd.f32 %v1745, %v1797
  %v1799 = vpop.f32.mrb[0].mxu0
  %v1800 = vadd.f32 %v1747, %v1799
  %1801 = vmatprep.mubr.bf16.mxu0 %v1386
  %1802 = vmatmul.mubr.bf16.gmra.mrb[0].mxu0 %v293
  %v1803 = vpop.f32.mrb[0].mxu0
  %v1804 = vadd.f32 %v1751, %v1803
  %v1805 = vpop.f32.mrb[0].mxu0
  %v1806 = vadd.f32 %v1753, %v1805
  %v1807 = vpop.f32.mrb[0].mxu0
  %v1808 = vadd.f32 %v1755, %v1807
  %v1809 = vpop.f32.mrb[0].mxu0
  %v1810 = vadd.f32 %v1757, %v1809
  %1811 = vdwg.mxu0
  %v1812 = vmax.f32 %v1476, 0.0
  %v1813 = vmax.f32 %v1478, 0.0
  %v1814 = vmax.f32 %v1582, 0.0
  %v1815 = vmax.f32 %v1584, 0.0
  %v1816 = vmax.f32 %v1688, 0.0
  %v1817 = vmax.f32 %v1690, 0.0
  %v1818 = vmax.f32 %v1794, 0.0
  %v1819 = vmax.f32 %v1796, 0.0
  %v1820 = vmax.f32 %v1480, 0.0
  %v1821 = vmax.f32 %v1482, 0.0
  %v1822 = vmax.f32 %v1586, 0.0
  %v1823 = vmax.f32 %v1588, 0.0
  %v1824 = vmax.f32 %v1692, 0.0
  %v1825 = vmax.f32 %v1694, 0.0
  %v1826 = vmax.f32 %v1798, 0.0
  %v1827 = vmax.f32 %v1800, 0.0
  %v1828 = vmax.f32 %v1486, 0.0
  %v1829 = vmax.f32 %v1488, 0.0
  %v1830 = vmax.f32 %v1592, 0.0
  %v1831 = vmax.f32 %v1594, 0.0
  %v1832 = vmax.f32 %v1698, 0.0
  %v1833 = vmax.f32 %v1700, 0.0
  %v1834 = vmax.f32 %v1804, 0.0
  %v1835 = vmax.f32 %v1806, 0.0
  %v1836 = vmax.f32 %v1490, 0.0
  %v1837 = vmax.f32 %v1492, 0.0
  %v1838 = vmax.f32 %v1596, 0.0
  %v1839 = vmax.f32 %v1598, 0.0
  %v1840 = vmax.f32 %v1702, 0.0
  %v1841 = vmax.f32 %v1704, 0.0
  %v1842 = vmax.f32 %v1808, 0.0
  %v1843 = vmax.f32 %v1810, 0.0
  %1844 = vst [vmem:[%s3] sm:$0xff] %v1812
  %1845 = vst [vmem:[%s3 + $0x8] sm:$0xff] %v1813
  %1846 = vst [vmem:[%s3 + $0x10] sm:$0xff] %v1814
  %1847 = vst [vmem:[%s3 + $0x18] sm:$0xff] %v1815
  %1848 = vst [vmem:[%s3 + $0x20] sm:$0xff] %v1816
  %1849 = vst [vmem:[%s3 + $0x28] sm:$0xff] %v1817
  %1850 = vst [vmem:[%s3 + $0x30] sm:$0xff] %v1818
  %1851 = vst [vmem:[%s3 + $0x38] sm:$0xff] %v1819
  %1852 = vst [vmem:[%s3 + $0x40] sm:$0xff] %v1820
  %1853 = vst [vmem:[%s3 + $0x48] sm:$0xff] %v1821
  %1854 = vst [vmem:[%s3 + $0x50] sm:$0xff] %v1822
  %1855 = vst [vmem:[%s3 + $0x58] sm:$0xff] %v1823
  %1856 = vst [vmem:[%s3 + $0x60] sm:$0xff] %v1824
  %1857 = vst [vmem:[%s3 + $0x68] sm:$0xff] %v1825
  %1858 = vst [vmem:[%s3 + $0x70] sm:$0xff] %v1826
  %1859 = vst [vmem:[%s3 + $0x78] sm:$0xff] %v1827
  %1860 = vst [vmem:[%s3 + $0x80] sm:$0xff] %v1828
  %1861 = vst [vmem:[%s3 + $0x88] sm:$0xff] %v1829
  %1862 = vst [vmem:[%s3 + $0x90] sm:$0xff] %v1830
  %1863 = vst [vmem:[%s3 + $0x98] sm:$0xff] %v1831
  %1864 = vst [vmem:[%s3 + $0xa0] sm:$0xff] %v1832
  %1865 = vst [vmem:[%s3 + $0xa8] sm:$0xff] %v1833
  %1866 = vst [vmem:[%s3 + $0xb0] sm:$0xff] %v1834
  %1867 = vst [vmem:[%s3 + $0xb8] sm:$0xff] %v1835
  %1868 = vst [vmem:[%s3 + $0xc0] sm:$0xff] %v1836
  %1869 = vst [vmem:[%s3 + $0xc8] sm:$0xff] %v1837
  %1870 = vst [vmem:[%s3 + $0xd0] sm:$0xff] %v1838
  %1871 = vst [vmem:[%s3 + $0xd8] sm:$0xff] %v1839
  %1872 = vst [vmem:[%s3 + $0xe0] sm:$0xff] %v1840
  %1873 = vst [vmem:[%s3 + $0xe8] sm:$0xff] %v1841
  %1874 = vst [vmem:[%s3 + $0xf0] sm:$0xff] %v1842
  %1875 = vst [vmem:[%s3 + $0xf8] sm:$0xff] %v1843
  // Predicated region
  $region14: #{lpips.5} parent=0 // pred_check
    _
  $region15: #{lpips.5} parent=0 // pred_check_branch
    %1877 = sbr.rel (0) target = $region17
  $region16: #{lpips.5} parent=0 // pred_region
    _
  $region17: #{lpips.5} parent=0 // pred_fallthru
    _
  // Predicated region
  $region18: #{lpips.5} parent=0 // pred_check
    _
  $region19: #{lpips.5} parent=0 // pred_check_branch
    %1879 = sbr.rel (0) target = $region21
  $region20: #{lpips.5} parent=0 // pred_region
    _
  $region21: #{lpips.5} parent=0 // pred_fallthru
    _

// kernel: lpips.6
$region0: #{lpips.6}
  #allocation0 [shape = 'u32[]', space=smem, size = 0x4, offset = 0x4, fixed_abs, tag = 'smem constant byte address 0x4 - core index']
  #allocation1 [shape = 'u32[144,128]{1,0:T(1,128)}', space=vmem, size = 0x12000, scoped, tag = 'internal scratch']
  %s0 = inlined_call_operand.vmem [shape: bf16[64,864], index: 0, kind: input, shape index: {}]
  %s1 = inlined_call_operand.vmem [shape: bf16[864,128], index: 1, kind: input, shape index: {}]
  %s2 = inlined_call_operand.vmem [shape: f32[64,1], index: 2, kind: input, shape index: {}]
  %s3 = inlined_call_operand.vmem [shape: f32[64,128], index: 3, kind: output, shape index: {}]
  %s4 = sld [smem:[#allocation0]]
  $region22: #{lpips.6} parent=0
    _
  %s6 = ssub.s32 1, %s4
  %s7 = scalar_select 0, %s6, %s4
  // Predicated region
  $region2: #{lpips.6} parent=0 // pred_check
    _
  $region3: #{lpips.6} parent=0 // pred_check_branch
    %9 = sbr.rel (0) target = $region5
  $region4: #{lpips.6} parent=0 // pred_region
    _
  $region5: #{lpips.6} parent=0 // pred_fallthru
    _
  // Predicated region
  $region6: #{lpips.6} parent=0 // pred_check
    _
  $region7: #{lpips.6} parent=0 // pred_check_branch
    %11 = sbr.rel (0) target = $region9
  $region8: #{lpips.6} parent=0 // pred_region
    _
  $region9: #{lpips.6} parent=0 // pred_fallthru
    _
  // Predicated region
  $region10: #{lpips.6} parent=0 // pred_check
    _
  $region11: #{lpips.6} parent=0 // pred_check_branch
    %13 = sbr.rel (0) target = $region13
  $region12: #{lpips.6} parent=0 // pred_region
    _
  $region13: #{lpips.6} parent=0 // pred_fallthru
    _
  %v15 = vld [vmem:[%s0] sm:$0xff]
  %v16 = vld [vmem:[%s0 + $0x8] sm:$0xff]
  %v17 = vld [vmem:[%s0 + $0x10] sm:$0xff]
  %v18 = vld [vmem:[%s0 + $0x18] sm:$0xf]
  %v19 = vld [vmem:[%s0 + $0x1c] sm:$0xff]
  %v20 = vld [vmem:[%s0 + $0x24] sm:$0xff]
  %v21 = vld [vmem:[%s0 + $0x2c] sm:$0xff]
  %v22 = vld [vmem:[%s0 + $0x34] sm:$0xf]
  %v23 = vld [vmem:[%s0 + $0x38] sm:$0xff]
  %v24 = vld [vmem:[%s0 + $0x40] sm:$0xff]
  %v25 = vld [vmem:[%s0 + $0x48] sm:$0xff]
  %v26 = vld [vmem:[%s0 + $0x50] sm:$0xf]
  %v27 = vld [vmem:[%s0 + $0x54] sm:$0xff]
  %v28 = vld [vmem:[%s0 + $0x5c] sm:$0xff]
  %v29 = vld [vmem:[%s0 + $0x64] sm:$0xff]
  %v30 = vld [vmem:[%s0 + $0x6c] sm:$0xf]
  %v31 = vld [vmem:[%s0 + $0x70] sm:$0xff]
  %v32 = vld [vmem:[%s0 + $0x78] sm:$0xff]
  %v33 = vld [vmem:[%s0 + $0x80] sm:$0xff]
  %v34 = vld [vmem:[%s0 + $0x88] sm:$0xf]
  %v35 = vld [vmem:[%s0 + $0x8c] sm:$0xff]
  %v36 = vld [vmem:[%s0 + $0x94] sm:$0xff]
  %v37 = vld [vmem:[%s0 + $0x9c] sm:$0xff]
  %v38 = vld [vmem:[%s0 + $0xa4] sm:$0xf]
  %v39 = vld [vmem:[%s0 + $0xa8] sm:$0xff]
  %v40 = vld [vmem:[%s0 + $0xb0] sm:$0xff]
  %v41 = vld [vmem:[%s0 + $0xb8] sm:$0xff]
  %v42 = vld [vmem:[%s0 + $0xc0] sm:$0xf]
  %v43 = vld [vmem:[%s0 + $0xc4] sm:$0xff]
  %v44 = vld [vmem:[%s0 + $0xcc] sm:$0xff]
  %v45 = vld [vmem:[%s0 + $0xd4] sm:$0xff]
  %v46 = vld [vmem:[%s0 + $0xdc] sm:$0xf]
  %v47 = vld [vmem:[%s1] sm:$0xf]
  %v48 = vld [vmem:[%s1 + $0x4] sm:$0xf]
  %v49 = vld [vmem:[%s1 + $0x8] sm:$0xf]
  %v50 = vld [vmem:[%s1 + $0xc] sm:$0xf]
  %v51 = vld [vmem:[%s1 + $0x10] sm:$0xf]
  %v52 = vld [vmem:[%s1 + $0x14] sm:$0xf]
  %v53 = vld [vmem:[%s1 + $0x18] sm:$0xf]
  %v54 = vld [vmem:[%s1 + $0x1c] sm:$0xf]
  %v55 = vld [vmem:[%s1 + $0x20] sm:$0xf]
  %v56 = vld [vmem:[%s1 + $0x24] sm:$0xf]
  %v57 = vld [vmem:[%s1 + $0x28] sm:$0xf]
  %v58 = vld [vmem:[%s1 + $0x2c] sm:$0xf]
  %v59 = vld [vmem:[%s1 + $0x30] sm:$0xf]
  %v60 = vld [vmem:[%s1 + $0x34] sm:$0xf]
  %v61 = vld [vmem:[%s1 + $0x38] sm:$0xf]
  %v62 = vld [vmem:[%s1 + $0x3c] sm:$0xf]
  %v63 = vld [vmem:[%s1 + $0x40] sm:$0xf]
  %v64 = vld [vmem:[%s1 + $0x44] sm:$0xf]
  %v65 = vld [vmem:[%s1 + $0x48] sm:$0xf]
  %v66 = vld [vmem:[%s1 + $0x4c] sm:$0xf]
  %v67 = vld [vmem:[%s1 + $0x50] sm:$0xf]
  %v68 = vld [vmem:[%s1 + $0x54] sm:$0xf]
  %v69 = vld [vmem:[%s1 + $0x58] sm:$0xf]
  %v70 = vld [vmem:[%s1 + $0x5c] sm:$0xf]
  %v71 = vld [vmem:[%s1 + $0x60] sm:$0xf]
  %v72 = vld [vmem:[%s1 + $0x64] sm:$0xf]
  %v73 = vld [vmem:[%s1 + $0x68] sm:$0xf]
  %v74 = vld [vmem:[%s1 + $0x6c] sm:$0xf]
  %v75 = vld [vmem:[%s1 + $0x70] sm:$0xf]
  %v76 = vld [vmem:[%s1 + $0x74] sm:$0xf]
  %v77 = vld [vmem:[%s1 + $0x78] sm:$0xf]
  %v78 = vld [vmem:[%s1 + $0x7c] sm:$0xf]
  %v79 = vld [vmem:[%s1 + $0x80] sm:$0xf]
  %v80 = vld [vmem:[%s1 + $0x84] sm:$0xf]
  %v81 = vld [vmem:[%s1 + $0x88] sm:$0xf]
  %v82 = vld [vmem:[%s1 + $0x8c] sm:$0xf]
  %v83 = vld [vmem:[%s1 + $0x90] sm:$0xf]
  %v84 = vld [vmem:[%s1 + $0x94] sm:$0xf]
  %v85 = vld [vmem:[%s1 + $0x98] sm:$0xf]
  %v86 = vld [vmem:[%s1 + $0x9c] sm:$0xf]
  %v87 = vld [vmem:[%s1 + $0xa0] sm:$0xf]
  %v88 = vld [vmem:[%s1 + $0xa4] sm:$0xf]
  %v89 = vld [vmem:[%s1 + $0xa8] sm:$0xf]
  %v90 = vld [vmem:[%s1 + $0xac] sm:$0xf]
  %v91 = vld [vmem:[%s1 + $0xb0] sm:$0xf]
  %v92 = vld [vmem:[%s1 + $0xb4] sm:$0xf]
  %v93 = vld [vmem:[%s1 + $0xb8] sm:$0xf]
  %v94 = vld [vmem:[%s1 + $0xbc] sm:$0xf]
  %v95 = vld [vmem:[%s1 + $0xc0] sm:$0xf]
  %v96 = vld [vmem:[%s1 + $0xc4] sm:$0xf]
  %v97 = vld [vmem:[%s1 + $0xc8] sm:$0xf]
  %v98 = vld [vmem:[%s1 + $0xcc] sm:$0xf]
  %v99 = vld [vmem:[%s1 + $0xd0] sm:$0xf]
  %v100 = vld [vmem:[%s1 + $0xd4] sm:$0xf]
  %v101 = vld [vmem:[%s1 + $0xd8] sm:$0xf]
  %v102 = vld [vmem:[%s1 + $0xdc] sm:$0xf]
  %v103 = vld [vmem:[%s1 + $0xe0] sm:$0xf]
  %v104 = vld [vmem:[%s1 + $0xe4] sm:$0xf]
  %v105 = vld [vmem:[%s1 + $0xe8] sm:$0xf]
  %v106 = vld [vmem:[%s1 + $0xec] sm:$0xf]
  %v107 = vld [vmem:[%s1 + $0xf0] sm:$0xf]
  %v108 = vld [vmem:[%s1 + $0xf4] sm:$0xf]
  %v109 = vld [vmem:[%s1 + $0xf8] sm:$0xf]
  %v110 = vld [vmem:[%s1 + $0xfc] sm:$0xf]
  %v111 = vld [vmem:[%s1 + $0x100] sm:$0xf]
  %v112 = vld [vmem:[%s1 + $0x104] sm:$0xf]
  %v113 = vld [vmem:[%s1 + $0x108] sm:$0xf]
  %v114 = vld [vmem:[%s1 + $0x10c] sm:$0xf]
  %v115 = vld [vmem:[%s1 + $0x110] sm:$0xf]
  %v116 = vld [vmem:[%s1 + $0x114] sm:$0xf]
  %v117 = vld [vmem:[%s1 + $0x118] sm:$0xf]
  %v118 = vld [vmem:[%s1 + $0x11c] sm:$0xf]
  %v119 = vld [vmem:[%s1 + $0x120] sm:$0xf]
  %v120 = vld [vmem:[%s1 + $0x124] sm:$0xf]
  %v121 = vld [vmem:[%s1 + $0x128] sm:$0xf]
  %v122 = vld [vmem:[%s1 + $0x12c] sm:$0xf]
  %v123 = vld [vmem:[%s1 + $0x130] sm:$0xf]
  %v124 = vld [vmem:[%s1 + $0x134] sm:$0xf]
  %v125 = vld [vmem:[%s1 + $0x138] sm:$0xf]
  %v126 = vld [vmem:[%s1 + $0x13c] sm:$0xf]
  %v127 = vld [vmem:[%s1 + $0x140] sm:$0xf]
  %v128 = vld [vmem:[%s1 + $0x144] sm:$0xf]
  %v129 = vld [vmem:[%s1 + $0x148] sm:$0xf]
  %v130 = vld [vmem:[%s1 + $0x14c] sm:$0xf]
  %v131 = vld [vmem:[%s1 + $0x150] sm:$0xf]
  %v132 = vld [vmem:[%s1 + $0x154] sm:$0xf]
  %v133 = vld [vmem:[%s1 + $0x158] sm:$0xf]
  %v134 = vld [vmem:[%s1 + $0x15c] sm:$0xf]
  %v135 = vld [vmem:[%s1 + $0x160] sm:$0xf]
  %v136 = vld [vmem:[%s1 + $0x164] sm:$0xf]
  %v137 = vld [vmem:[%s1 + $0x168] sm:$0xf]
  %v138 = vld [vmem:[%s1 + $0x16c] sm:$0xf]
  %v139 = vld [vmem:[%s1 + $0x170] sm:$0xf]
  %v140 = vld [vmem:[%s1 + $0x174] sm:$0xf]
  %v141 = vld [vmem:[%s1 + $0x178] sm:$0xf]
  %v142 = vld [vmem:[%s1 + $0x17c] sm:$0xf]
  %v143 = vld [vmem:[%s1 + $0x180] sm:$0xf]
  %v144 = vld [vmem:[%s1 + $0x184] sm:$0xf]
  %v145 = vld [vmem:[%s1 + $0x188] sm:$0xf]
  %v146 = vld [vmem:[%s1 + $0x18c] sm:$0xf]
  %v147 = vld [vmem:[%s1 + $0x190] sm:$0xf]
  %v148 = vld [vmem:[%s1 + $0x194] sm:$0xf]
  %v149 = vld [vmem:[%s1 + $0x198] sm:$0xf]
  %v150 = vld [vmem:[%s1 + $0x19c] sm:$0xf]
  %v151 = vld [vmem:[%s1 + $0x1a0] sm:$0xf]
  %v152 = vld [vmem:[%s1 + $0x1a4] sm:$0xf]
  %v153 = vld [vmem:[%s1 + $0x1a8] sm:$0xf]
  %v154 = vld [vmem:[%s1 + $0x1ac] sm:$0xf]
  %v155 = vld [vmem:[%s2] sm:$0xff]
  %v156 = vld [vmem:[%s2 + $0x8] sm:$0xff]
  %v157 = vld [vmem:[%s2 + $0x10] sm:$0xff]
  %v158 = vld [vmem:[%s2 + $0x18] sm:$0xff]
  %v159 = vld [vmem:[%s2 + $0x20] sm:$0xff]
  %v160 = vld [vmem:[%s2 + $0x28] sm:$0xff]
  %v161 = vld [vmem:[%s2 + $0x30] sm:$0xff]
  %v162 = vld [vmem:[%s2 + $0x38] sm:$0xff]
  %164 = vset.pattern.permute.xlu0 0
  %165 = vperm.xlu0 %164, %v155
  %v166 = vpop.permute.xlu0 %165
  %169 = vset.pattern.permute.xlu0 0
  %170 = vperm.xlu0 %169, %v156
  %v171 = vpop.permute.xlu0 %170
  %174 = vset.pattern.permute.xlu0 0
  %175 = vperm.xlu0 %174, %v157
  %v176 = vpop.permute.xlu0 %175
  %179 = vset.pattern.permute.xlu0 0
  %180 = vperm.xlu0 %179, %v158
  %v181 = vpop.permute.xlu0 %180
  %184 = vset.pattern.permute.xlu0 0
  %185 = vperm.xlu0 %184, %v159
  %v186 = vpop.permute.xlu0 %185
  %189 = vset.pattern.permute.xlu0 0
  %190 = vperm.xlu0 %189, %v160
  %v191 = vpop.permute.xlu0 %190
  %194 = vset.pattern.permute.xlu0 0
  %195 = vperm.xlu0 %194, %v161
  %v196 = vpop.permute.xlu0 %195
  %199 = vset.pattern.permute.xlu0 0
  %200 = vperm.xlu0 %199, %v162
  %v201 = vpop.permute.xlu0 %200
  %v235 = vunpack.c.l.b16 %v15
  %v236 = vunpack.c.h.b16 %v15
  %v237 = vunpack.c.l.b16 %v16
  %v238 = vunpack.c.h.b16 %v16
  %v239 = vunpack.c.l.b16 %v17
  %v240 = vunpack.c.h.b16 %v17
  %v241 = vunpack.c.l.b16 %v18
  %v242 = vunpack.c.l.b16 %v19
  %v243 = vunpack.c.h.b16 %v19
  %v244 = vunpack.c.l.b16 %v20
  %v245 = vunpack.c.h.b16 %v20
  %v246 = vunpack.c.l.b16 %v21
  %v247 = vunpack.c.h.b16 %v21
  %v248 = vunpack.c.l.b16 %v22
  %v249 = vunpack.c.l.b16 %v23
  %v250 = vunpack.c.h.b16 %v23
  %v251 = vunpack.c.l.b16 %v24
  %v252 = vunpack.c.h.b16 %v24
  %v253 = vunpack.c.l.b16 %v25
  %v254 = vunpack.c.h.b16 %v25
  %v255 = vunpack.c.l.b16 %v26
  %v256 = vunpack.c.l.b16 %v27
  %v257 = vunpack.c.h.b16 %v27
  %v258 = vunpack.c.l.b16 %v28
  %v259 = vunpack.c.h.b16 %v28
  %v260 = vunpack.c.l.b16 %v29
  %v261 = vunpack.c.h.b16 %v29
  %v262 = vunpack.c.l.b16 %v30
  %v263 = vunpack.c.l.b16 %v31
  %v264 = vunpack.c.h.b16 %v31
  %v265 = vunpack.c.l.b16 %v32
  %v266 = vunpack.c.h.b16 %v32
  %v267 = vunpack.c.l.b16 %v33
  %v268 = vunpack.c.h.b16 %v33
  %v269 = vunpack.c.l.b16 %v34
  %v270 = vunpack.c.l.b16 %v35
  %v271 = vunpack.c.h.b16 %v35
  %v272 = vunpack.c.l.b16 %v36
  %v273 = vunpack.c.h.b16 %v36
  %v274 = vunpack.c.l.b16 %v37
  %v275 = vunpack.c.h.b16 %v37
  %v276 = vunpack.c.l.b16 %v38
  %v277 = vunpack.c.l.b16 %v39
  %v278 = vunpack.c.h.b16 %v39
  %v279 = vunpack.c.l.b16 %v40
  %v280 = vunpack.c.h.b16 %v40
  %v281 = vunpack.c.l.b16 %v41
  %v282 = vunpack.c.h.b16 %v41
  %v283 = vunpack.c.l.b16 %v42
  %v284 = vunpack.c.l.b16 %v43
  %v285 = vunpack.c.h.b16 %v43
  %v286 = vunpack.c.l.b16 %v44
  %v287 = vunpack.c.h.b16 %v44
  %v288 = vunpack.c.l.b16 %v45
  %v289 = vunpack.c.h.b16 %v45
  %v290 = vunpack.c.l.b16 %v46
  %v291 = vpack.c.b16 %v242, %v235
  %v292 = vpack.c.b16 %v243, %v236
  %v293 = vpack.c.b16 %v244, %v237
  %v294 = vpack.c.b16 %v245, %v238
  %v295 = vpack.c.b16 %v246, %v239
  %v296 = vpack.c.b16 %v247, %v240
  %v297 = vpack.c.b16 %v248, %v241
  %v298 = vpack.c.b16 %v256, %v249
  %v299 = vpack.c.b16 %v257, %v250
  %v300 = vpack.c.b16 %v258, %v251
  %v301 = vpack.c.b16 %v259, %v252
  %v302 = vpack.c.b16 %v260, %v253
  %v303 = vpack.c.b16 %v261, %v254
  %v304 = vpack.c.b16 %v262, %v255
  %v305 = vpack.c.b16 %v270, %v263
  %v306 = vpack.c.b16 %v271, %v264
  %v307 = vpack.c.b16 %v272, %v265
  %v308 = vpack.c.b16 %v273, %v266
  %v309 = vpack.c.b16 %v274, %v267
  %v310 = vpack.c.b16 %v275, %v268
  %v311 = vpack.c.b16 %v276, %v269
  %v312 = vpack.c.b16 %v284, %v277
  %v313 = vpack.c.b16 %v285, %v278
  %v314 = vpack.c.b16 %v286, %v279
  %v315 = vpack.c.b16 %v287, %v280
  %v316 = vpack.c.b16 %v288, %v281
  %v317 = vpack.c.b16 %v289, %v282
  %v318 = vpack.c.b16 %v290, %v283
  %v451 = vunpack.c.l.b16 %v47
  %v452 = vunpack.c.l.b16 %v48
  %v453 = vunpack.c.l.b16 %v49
  %v454 = vunpack.c.l.b16 %v50
  %v455 = vunpack.c.l.b16 %v51
  %v456 = vunpack.c.l.b16 %v52
  %v457 = vunpack.c.l.b16 %v53
  %v458 = vunpack.c.l.b16 %v54
  %v459 = vunpack.c.l.b16 %v55
  %v460 = vunpack.c.l.b16 %v56
  %v461 = vunpack.c.l.b16 %v57
  %v462 = vunpack.c.l.b16 %v58
  %v463 = vunpack.c.l.b16 %v59
  %v464 = vunpack.c.l.b16 %v60
  %v465 = vunpack.c.l.b16 %v61
  %v466 = vunpack.c.l.b16 %v62
  %v467 = vunpack.c.l.b16 %v63
  %v468 = vunpack.c.l.b16 %v64
  %v469 = vunpack.c.l.b16 %v65
  %v470 = vunpack.c.l.b16 %v66
  %v471 = vunpack.c.l.b16 %v67
  %v472 = vunpack.c.l.b16 %v68
  %v473 = vunpack.c.l.b16 %v69
  %v474 = vunpack.c.l.b16 %v70
  %v475 = vunpack.c.l.b16 %v71
  %v476 = vunpack.c.l.b16 %v72
  %v477 = vunpack.c.l.b16 %v73
  %v478 = vunpack.c.l.b16 %v74
  %v479 = vunpack.c.l.b16 %v75
  %v480 = vunpack.c.l.b16 %v76
  %v481 = vunpack.c.l.b16 %v77
  %v482 = vunpack.c.l.b16 %v78
  %v483 = vunpack.c.l.b16 %v79
  %v484 = vunpack.c.l.b16 %v80
  %v485 = vunpack.c.l.b16 %v81
  %v486 = vunpack.c.l.b16 %v82
  %v487 = vunpack.c.l.b16 %v83
  %v488 = vunpack.c.l.b16 %v84
  %v489 = vunpack.c.l.b16 %v85
  %v490 = vunpack.c.l.b16 %v86
  %v491 = vunpack.c.l.b16 %v87
  %v492 = vunpack.c.l.b16 %v88
  %v493 = vunpack.c.l.b16 %v89
  %v494 = vunpack.c.l.b16 %v90
  %v495 = vunpack.c.l.b16 %v91
  %v496 = vunpack.c.l.b16 %v92
  %v497 = vunpack.c.l.b16 %v93
  %v498 = vunpack.c.l.b16 %v94
  %v499 = vunpack.c.l.b16 %v95
  %v500 = vunpack.c.l.b16 %v96
  %v501 = vunpack.c.l.b16 %v97
  %v502 = vunpack.c.l.b16 %v98
  %v503 = vunpack.c.l.b16 %v99
  %v504 = vunpack.c.l.b16 %v100
  %v505 = vunpack.c.l.b16 %v101
  %v506 = vunpack.c.l.b16 %v102
  %v507 = vunpack.c.l.b16 %v103
  %v508 = vunpack.c.l.b16 %v104
  %v509 = vunpack.c.l.b16 %v105
  %v510 = vunpack.c.l.b16 %v106
  %v511 = vunpack.c.l.b16 %v107
  %v512 = vunpack.c.l.b16 %v108
  %v513 = vunpack.c.l.b16 %v109
  %v514 = vunpack.c.l.b16 %v110
  %v515 = vunpack.c.l.b16 %v111
  %v516 = vunpack.c.l.b16 %v112
  %v517 = vunpack.c.l.b16 %v113
  %v518 = vunpack.c.l.b16 %v114
  %v519 = vunpack.c.l.b16 %v115
  %v520 = vunpack.c.l.b16 %v116
  %v521 = vunpack.c.l.b16 %v117
  %v522 = vunpack.c.l.b16 %v118
  %v523 = vunpack.c.l.b16 %v119
  %v524 = vunpack.c.l.b16 %v120
  %v525 = vunpack.c.l.b16 %v121
  %v526 = vunpack.c.l.b16 %v122
  %v527 = vunpack.c.l.b16 %v123
  %v528 = vunpack.c.l.b16 %v124
  %v529 = vunpack.c.l.b16 %v125
  %v530 = vunpack.c.l.b16 %v126
  %v531 = vunpack.c.l.b16 %v127
  %v532 = vunpack.c.l.b16 %v128
  %v533 = vunpack.c.l.b16 %v129
  %v534 = vunpack.c.l.b16 %v130
  %v535 = vunpack.c.l.b16 %v131
  %v536 = vunpack.c.l.b16 %v132
  %v537 = vunpack.c.l.b16 %v133
  %v538 = vunpack.c.l.b16 %v134
  %v539 = vunpack.c.l.b16 %v135
  %v540 = vunpack.c.l.b16 %v136
  %v541 = vunpack.c.l.b16 %v137
  %v542 = vunpack.c.l.b16 %v138
  %v543 = vunpack.c.l.b16 %v139
  %v544 = vunpack.c.l.b16 %v140
  %v545 = vunpack.c.l.b16 %v141
  %v546 = vunpack.c.l.b16 %v142
  %v547 = vunpack.c.l.b16 %v143
  %v548 = vunpack.c.l.b16 %v144
  %v549 = vunpack.c.l.b16 %v145
  %v550 = vunpack.c.l.b16 %v146
  %v551 = vunpack.c.l.b16 %v147
  %v552 = vunpack.c.l.b16 %v148
  %v553 = vunpack.c.l.b16 %v149
  %v554 = vunpack.c.l.b16 %v150
  %v555 = vunpack.c.l.b16 %v151
  %v556 = vunpack.c.l.b16 %v152
  %v557 = vunpack.c.l.b16 %v153
  %v558 = vunpack.c.l.b16 %v154
  %v559 = vpack.c.b16 %v452, %v451
  %v560 = vpack.c.b16 %v454, %v453
  %v561 = vpack.c.b16 %v456, %v455
  %v562 = vpack.c.b16 %v458, %v457
  %v563 = vpack.c.b16 %v460, %v459
  %v564 = vpack.c.b16 %v462, %v461
  %v565 = vpack.c.b16 %v464, %v463
  %v566 = vpack.c.b16 %v466, %v465
  %v567 = vpack.c.b16 %v468, %v467
  %v568 = vpack.c.b16 %v470, %v469
  %v569 = vpack.c.b16 %v472, %v471
  %v570 = vpack.c.b16 %v474, %v473
  %v571 = vpack.c.b16 %v476, %v475
  %v572 = vpack.c.b16 %v478, %v477
  %v573 = vpack.c.b16 %v480, %v479
  %v574 = vpack.c.b16 %v482, %v481
  %v575 = vpack.c.b16 %v484, %v483
  %v576 = vpack.c.b16 %v486, %v485
  %v577 = vpack.c.b16 %v488, %v487
  %v578 = vpack.c.b16 %v490, %v489
  %v579 = vpack.c.b16 %v492, %v491
  %v580 = vpack.c.b16 %v494, %v493
  %v581 = vpack.c.b16 %v496, %v495
  %v582 = vpack.c.b16 %v498, %v497
  %v583 = vpack.c.b16 %v500, %v499
  %v584 = vpack.c.b16 %v502, %v501
  %v585 = vpack.c.b16 %v504, %v503
  %v586 = vpack.c.b16 %v506, %v505
  %v587 = vpack.c.b16 %v508, %v507
  %v588 = vpack.c.b16 %v510, %v509
  %v589 = vpack.c.b16 %v512, %v511
  %v590 = vpack.c.b16 %v514, %v513
  %v591 = vpack.c.b16 %v516, %v515
  %v592 = vpack.c.b16 %v518, %v517
  %v593 = vpack.c.b16 %v520, %v519
  %v594 = vpack.c.b16 %v522, %v521
  %v595 = vpack.c.b16 %v524, %v523
  %v596 = vpack.c.b16 %v526, %v525
  %v597 = vpack.c.b16 %v528, %v527
  %v598 = vpack.c.b16 %v530, %v529
  %v599 = vpack.c.b16 %v532, %v531
  %v600 = vpack.c.b16 %v534, %v533
  %v601 = vpack.c.b16 %v536, %v535
  %v602 = vpack.c.b16 %v538, %v537
  %v603 = vpack.c.b16 %v540, %v539
  %v604 = vpack.c.b16 %v542, %v541
  %v605 = vpack.c.b16 %v544, %v543
  %v606 = vpack.c.b16 %v546, %v545
  %v607 = vpack.c.b16 %v548, %v547
  %v608 = vpack.c.b16 %v550, %v549
  %v609 = vpack.c.b16 %v552, %v551
  %v610 = vpack.c.b16 %v554, %v553
  %v611 = vpack.c.b16 %v556, %v555
  %v612 = vpack.c.b16 %v558, %v557
  %vm667 = vcmask 785408
  %v669 = vsel %vm667, %v297, 0
  %v672 = vsel %vm667, %v304, 0
  %v675 = vsel %vm667, %v311, 0
  %v678 = vsel %vm667, %v318, 0
  %680 = vmatprep.subr.bf16.mxu0 0
  %681 = vmatpush1.bf16.msra.mxu0 %v559
  %682 = vmatprep.subr.bf16.mxu0 0
  %683 = vmatpush1.bf16.msra.mxu0 %v560
  %684 = vmatprep.subr.bf16.mxu0 0
  %685 = vmatpush1.bf16.msra.mxu0 %v561
  %686 = vmatprep.subr.bf16.mxu0 0
  %687 = vmatpush1.bf16.msra.mxu0 %v562
  %688 = vmatprep.subr.bf16.mxu0 0
  %689 = vmatpush1.bf16.msra.mxu0 %v563
  %690 = vmatprep.subr.bf16.mxu0 0
  %691 = vmatpush1.bf16.msra.mxu0 %v564
  %692 = vmatprep.subr.bf16.mxu0 0
  %693 = vmatpush1.bf16.msra.mxu0 %v565
  %694 = vmatprep.subr.bf16.mxu0 0
  %695 = vmatpush1.bf16.msra.mxu0 %v566
  %696 = vmatprep.subr.bf16.mxu0 0
  %697 = vmatpush1.bf16.msra.mxu0 %v567
  %698 = vmatprep.subr.bf16.mxu0 0
  %699 = vmatpush1.bf16.msra.mxu0 %v568
  %700 = vmatprep.subr.bf16.mxu0 0
  %701 = vmatpush1.bf16.msra.mxu0 %v569
  %702 = vmatprep.subr.bf16.mxu0 0
  %703 = vmatpush1.bf16.msra.mxu0 %v570
  %704 = vmatprep.subr.bf16.mxu0 0
  %705 = vmatpush1.bf16.msra.mxu0 %v571
  %706 = vmatprep.subr.bf16.mxu0 0
  %707 = vmatpush1.bf16.msra.mxu0 %v572
  %708 = vmatprep.subr.bf16.mxu0 0
  %709 = vmatpush1.bf16.msra.mxu0 %v573
  %710 = vmatprep.subr.bf16.mxu0 0
  %711 = vmatpush1.bf16.msra.mxu0 %v574
  %712 = vmatprep.mubr.bf16.mxu0 %v292
  %713 = vmatmul.mubr.bf16.gmra.mrb[0].mxu0 %v291
  %v714 = vpop.f32.mrb[0].mxu0
  %v715 = vadd.f32 %v166, %v714
  %v716 = vpop.f32.mrb[0].mxu0
  %v717 = vpop.f32.mrb[0].mxu0
  %v718 = vadd.f32 %v171, %v717
  %v719 = vpop.f32.mrb[0].mxu0
  %720 = vmatprep.mubr.bf16.mxu0 %v299
  %721 = vmatmul.mubr.bf16.gmra.mrb[0].mxu0 %v298
  %v722 = vpop.f32.mrb[0].mxu0
  %v723 = vadd.f32 %v176, %v722
  %v724 = vpop.f32.mrb[0].mxu0
  %v725 = vpop.f32.mrb[0].mxu0
  %v726 = vadd.f32 %v181, %v725
  %v727 = vpop.f32.mrb[0].mxu0
  %728 = vmatprep.mubr.bf16.mxu0 %v306
  %729 = vmatmul.mubr.bf16.gmra.mrb[0].mxu0 %v305
  %v730 = vpop.f32.mrb[0].mxu0
  %v731 = vadd.f32 %v186, %v730
  %v732 = vpop.f32.mrb[0].mxu0
  %v733 = vpop.f32.mrb[0].mxu0
  %v734 = vadd.f32 %v191, %v733
  %v735 = vpop.f32.mrb[0].mxu0
  %736 = vmatprep.mubr.bf16.mxu0 %v313
  %737 = vmatmul.mubr.bf16.gmra.mrb[0].mxu0 %v312
  %v738 = vpop.f32.mrb[0].mxu0
  %v739 = vadd.f32 %v196, %v738
  %v740 = vpop.f32.mrb[0].mxu0
  %v741 = vpop.f32.mrb[0].mxu0
  %v742 = vadd.f32 %v201, %v741
  %v743 = vpop.f32.mrb[0].mxu0
  %744 = vdwg.mxu0
  %745 = vmatprep.subr.bf16.mxu0 0
  %746 = vmatpush1.bf16.msra.mxu0 %v575
  %747 = vmatprep.subr.bf16.mxu0 0
  %748 = vmatpush1.bf16.msra.mxu0 %v576
  %749 = vmatprep.subr.bf16.mxu0 0
  %750 = vmatpush1.bf16.msra.mxu0 %v577
  %751 = vmatprep.subr.bf16.mxu0 0
  %752 = vmatpush1.bf16.msra.mxu0 %v578
  %753 = vmatprep.subr.bf16.mxu0 0
  %754 = vmatpush1.bf16.msra.mxu0 %v579
  %755 = vmatprep.subr.bf16.mxu0 0
  %756 = vmatpush1.bf16.msra.mxu0 %v580
  %757 = vmatprep.subr.bf16.mxu0 0
  %758 = vmatpush1.bf16.msra.mxu0 %v581
  %759 = vmatprep.subr.bf16.mxu0 0
  %760 = vmatpush1.bf16.msra.mxu0 %v582
  %761 = vmatprep.subr.bf16.mxu0 0
  %762 = vmatpush1.bf16.msra.mxu0 %v583
  %763 = vmatprep.subr.bf16.mxu0 0
  %764 = vmatpush1.bf16.msra.mxu0 %v584
  %765 = vmatprep.subr.bf16.mxu0 0
  %766 = vmatpush1.bf16.msra.mxu0 %v585
  %767 = vmatprep.subr.bf16.mxu0 0
  %768 = vmatpush1.bf16.msra.mxu0 %v586
  %769 = vmatprep.subr.bf16.mxu0 0
  %770 = vmatpush1.bf16.msra.mxu0 %v587
  %771 = vmatprep.subr.bf16.mxu0 0
  %772 = vmatpush1.bf16.msra.mxu0 %v588
  %773 = vmatprep.subr.bf16.mxu0 0
  %774 = vmatpush1.bf16.msra.mxu0 %v589
  %775 = vmatprep.subr.bf16.mxu0 0
  %776 = vmatpush1.bf16.msra.mxu0 %v590
  %777 = vmatprep.mubr.bf16.mxu0 %v294
  %778 = vmatmul.mubr.bf16.gmra.mrb[0].mxu0 %v293
  %v779 = vpop.f32.mrb[0].mxu0
  %v780 = vadd.f32 %v715, %v779
  %v781 = vpop.f32.mrb[0].mxu0
  %v782 = vpop.f32.mrb[0].mxu0
  %v783 = vadd.f32 %v718, %v782
  %v784 = vpop.f32.mrb[0].mxu0
  %785 = vmatprep.mubr.bf16.mxu0 %v301
  %786 = vmatmul.mubr.bf16.gmra.mrb[0].mxu0 %v300
  %v787 = vpop.f32.mrb[0].mxu0
  %v788 = vadd.f32 %v723, %v787
  %v789 = vpop.f32.mrb[0].mxu0
  %v790 = vpop.f32.mrb[0].mxu0
  %v791 = vadd.f32 %v726, %v790
  %v792 = vpop.f32.mrb[0].mxu0
  %793 = vmatprep.mubr.bf16.mxu0 %v308
  %794 = vmatmul.mubr.bf16.gmra.mrb[0].mxu0 %v307
  %v795 = vpop.f32.mrb[0].mxu0
  %v796 = vadd.f32 %v731, %v795
  %v797 = vpop.f32.mrb[0].mxu0
  %v798 = vpop.f32.mrb[0].mxu0
  %v799 = vadd.f32 %v734, %v798
  %v800 = vpop.f32.mrb[0].mxu0
  %801 = vmatprep.mubr.bf16.mxu0 %v315
  %802 = vmatmul.mubr.bf16.gmra.mrb[0].mxu0 %v314
  %v803 = vpop.f32.mrb[0].mxu0
  %v804 = vadd.f32 %v739, %v803
  %v805 = vpop.f32.mrb[0].mxu0
  %v806 = vpop.f32.mrb[0].mxu0
  %v807 = vadd.f32 %v742, %v806
  %v808 = vpop.f32.mrb[0].mxu0
  %809 = vdwg.mxu0
  %810 = vmatprep.subr.bf16.mxu0 0
  %811 = vmatpush1.bf16.msra.mxu0 %v591
  %812 = vmatprep.subr.bf16.mxu0 0
  %813 = vmatpush1.bf16.msra.mxu0 %v592
  %814 = vmatprep.subr.bf16.mxu0 0
  %815 = vmatpush1.bf16.msra.mxu0 %v593
  %816 = vmatprep.subr.bf16.mxu0 0
  %817 = vmatpush1.bf16.msra.mxu0 %v594
  %818 = vmatprep.subr.bf16.mxu0 0
  %819 = vmatpush1.bf16.msra.mxu0 %v595
  %820 = vmatprep.subr.bf16.mxu0 0
  %821 = vmatpush1.bf16.msra.mxu0 %v596
  %822 = vmatprep.subr.bf16.mxu0 0
  %823 = vmatpush1.bf16.msra.mxu0 %v597
  %824 = vmatprep.subr.bf16.mxu0 0
  %825 = vmatpush1.bf16.msra.mxu0 %v598
  %826 = vmatprep.subr.bf16.mxu0 0
  %827 = vmatpush1.bf16.msra.mxu0 %v599
  %828 = vmatprep.subr.bf16.mxu0 0
  %829 = vmatpush1.bf16.msra.mxu0 %v600
  %830 = vmatprep.subr.bf16.mxu0 0
  %831 = vmatpush1.bf16.msra.mxu0 %v601
  %832 = vmatprep.subr.bf16.mxu0 0
  %833 = vmatpush1.bf16.msra.mxu0 %v602
  %834 = vmatprep.subr.bf16.mxu0 0
  %835 = vmatpush1.bf16.msra.mxu0 %v603
  %836 = vmatprep.subr.bf16.mxu0 0
  %837 = vmatpush1.bf16.msra.mxu0 %v604
  %838 = vmatprep.subr.bf16.mxu0 0
  %839 = vmatpush1.bf16.msra.mxu0 %v605
  %840 = vmatprep.subr.bf16.mxu0 0
  %841 = vmatpush1.bf16.msra.mxu0 %v606
  %842 = vmatprep.mubr.bf16.mxu0 %v296
  %843 = vmatmul.mubr.bf16.gmra.mrb[0].mxu0 %v295
  %v844 = vpop.f32.mrb[0].mxu0
  %v845 = vadd.f32 %v780, %v844
  %v846 = vpop.f32.mrb[0].mxu0
  %v847 = vpop.f32.mrb[0].mxu0
  %v848 = vadd.f32 %v783, %v847
  %v849 = vpop.f32.mrb[0].mxu0
  %850 = vmatprep.mubr.bf16.mxu0 %v303
  %851 = vmatmul.mubr.bf16.gmra.mrb[0].mxu0 %v302
  %v852 = vpop.f32.mrb[0].mxu0
  %v853 = vadd.f32 %v788, %v852
  %v854 = vpop.f32.mrb[0].mxu0
  %v855 = vpop.f32.mrb[0].mxu0
  %v856 = vadd.f32 %v791, %v855
  %v857 = vpop.f32.mrb[0].mxu0
  %858 = vmatprep.mubr.bf16.mxu0 %v310
  %859 = vmatmul.mubr.bf16.gmra.mrb[0].mxu0 %v309
  %v860 = vpop.f32.mrb[0].mxu0
  %v861 = vadd.f32 %v796, %v860
  %v862 = vpop.f32.mrb[0].mxu0
  %v863 = vpop.f32.mrb[0].mxu0
  %v864 = vadd.f32 %v799, %v863
  %v865 = vpop.f32.mrb[0].mxu0
  %866 = vmatprep.mubr.bf16.mxu0 %v317
  %867 = vmatmul.mubr.bf16.gmra.mrb[0].mxu0 %v316
  %v868 = vpop.f32.mrb[0].mxu0
  %v869 = vadd.f32 %v804, %v868
  %v870 = vpop.f32.mrb[0].mxu0
  %v871 = vpop.f32.mrb[0].mxu0
  %v872 = vadd.f32 %v807, %v871
  %v873 = vpop.f32.mrb[0].mxu0
  %874 = vdwg.mxu0
  %875 = vmatprep.subr.bf16.mxu0 0
  %876 = vmatpush1.bf16.msra.mxu0 %v607
  %877 = vmatprep.subr.bf16.mxu0 0
  %878 = vmatpush1.bf16.msra.mxu0 %v608
  %879 = vmatprep.subr.bf16.mxu0 0
  %880 = vmatpush1.bf16.msra.mxu0 %v609
  %881 = vmatprep.subr.bf16.mxu0 0
  %882 = vmatpush1.bf16.msra.mxu0 %v610
  %883 = vmatprep.subr.bf16.mxu0 0
  %884 = vmatpush1.bf16.msra.mxu0 %v611
  %885 = vmatprep.subr.bf16.mxu0 0
  %886 = vmatpush1.bf16.msra.mxu0 %v612
  %887 = vmatprep.subr.bf16.mxu0 0
  %888 = vmatpush1.bf16.msra.mxu0 0
  %889 = vmatprep.subr.bf16.mxu0 0
  %890 = vmatpush1.bf16.msra.mxu0 0
  %891 = vmatprep.subr.bf16.mxu0 0
  %892 = vmatpush1.bf16.msra.mxu0 0
  %893 = vmatprep.subr.bf16.mxu0 0
  %894 = vmatpush1.bf16.msra.mxu0 0
  %895 = vmatprep.subr.bf16.mxu0 0
  %896 = vmatpush1.bf16.msra.mxu0 0
  %897 = vmatprep.subr.bf16.mxu0 0
  %898 = vmatpush1.bf16.msra.mxu0 0
  %899 = vmatprep.subr.bf16.mxu0 0
  %900 = vmatpush1.bf16.msra.mxu0 0
  %901 = vmatprep.subr.bf16.mxu0 0
  %902 = vmatpush1.bf16.msra.mxu0 0
  %903 = vmatprep.subr.bf16.mxu0 0
  %904 = vmatpush1.bf16.msra.mxu0 0
  %905 = vmatprep.subr.bf16.mxu0 0
  %906 = vmatpush1.bf16.msra.mxu0 0
  %907 = vmatprep.mubr.bf16.mxu0 0
  %908 = vmatmul.mubr.bf16.gmra.mrb[0].mxu0 %v669
  %v909 = vpop.f32.mrb[0].mxu0
  %v910 = vadd.f32 %v845, %v909
  %v911 = vpop.f32.mrb[0].mxu0
  %v912 = vpop.f32.mrb[0].mxu0
  %v913 = vadd.f32 %v848, %v912
  %v914 = vpop.f32.mrb[0].mxu0
  %915 = vmatprep.mubr.bf16.mxu0 0
  %916 = vmatmul.mubr.bf16.gmra.mrb[0].mxu0 %v672
  %v917 = vpop.f32.mrb[0].mxu0
  %v918 = vadd.f32 %v853, %v917
  %v919 = vpop.f32.mrb[0].mxu0
  %v920 = vpop.f32.mrb[0].mxu0
  %v921 = vadd.f32 %v856, %v920
  %v922 = vpop.f32.mrb[0].mxu0
  %923 = vmatprep.mubr.bf16.mxu0 0
  %924 = vmatmul.mubr.bf16.gmra.mrb[0].mxu0 %v675
  %v925 = vpop.f32.mrb[0].mxu0
  %v926 = vadd.f32 %v861, %v925
  %v927 = vpop.f32.mrb[0].mxu0
  %v928 = vpop.f32.mrb[0].mxu0
  %v929 = vadd.f32 %v864, %v928
  %v930 = vpop.f32.mrb[0].mxu0
  %931 = vmatprep.mubr.bf16.mxu0 0
  %932 = vmatmul.mubr.bf16.gmra.mrb[0].mxu0 %v678
  %v933 = vpop.f32.mrb[0].mxu0
  %v934 = vadd.f32 %v869, %v933
  %v935 = vpop.f32.mrb[0].mxu0
  %v936 = vpop.f32.mrb[0].mxu0
  %v937 = vadd.f32 %v872, %v936
  %v938 = vpop.f32.mrb[0].mxu0
  %939 = vdwg.mxu0
  %v940 = vmax.f32 %v910, 0.0
  %v941 = vmax.f32 %v913, 0.0
  %v942 = vmax.f32 %v918, 0.0
  %v943 = vmax.f32 %v921, 0.0
  %v944 = vmax.f32 %v926, 0.0
  %v945 = vmax.f32 %v929, 0.0
  %v946 = vmax.f32 %v934, 0.0
  %v947 = vmax.f32 %v937, 0.0
  %948 = vst [vmem:[%s3] sm:$0xff] %v940
  %949 = vst [vmem:[%s3 + $0x8] sm:$0xff] %v941
  %950 = vst [vmem:[%s3 + $0x10] sm:$0xff] %v942
  %951 = vst [vmem:[%s3 + $0x18] sm:$0xff] %v943
  %952 = vst [vmem:[%s3 + $0x20] sm:$0xff] %v944
  %953 = vst [vmem:[%s3 + $0x28] sm:$0xff] %v945
  %954 = vst [vmem:[%s3 + $0x30] sm:$0xff] %v946
  %955 = vst [vmem:[%s3 + $0x38] sm:$0xff] %v947
  // Predicated region
  $region14: #{lpips.6} parent=0 // pred_check
    _
  $region15: #{lpips.6} parent=0 // pred_check_branch
    %957 = sbr.rel (0) target = $region17
  $region16: #{lpips.6} parent=0 // pred_region
    _
  $region17: #{lpips.6} parent=0 // pred_fallthru
    _
  // Predicated region
  $region18: #{lpips.6} parent=0 // pred_check
    _
  $region19: #{lpips.6} parent=0 // pred_check_branch
    %959 = sbr.rel (0) target = $region21
  $region20: #{lpips.6} parent=0 // pred_region
    _
  $region21: #{lpips.6} parent=0 // pred_fallthru
    _

// kernel: lpips.7
$region0: #{lpips.7}
  #allocation0 [shape = 'u32[]', space=smem, size = 0x4, offset = 0x4, fixed_abs, tag = 'smem constant byte address 0x4 - core index']
  #allocation1 [shape = 'u32[144,128]{1,0:T(1,128)}', space=vmem, size = 0x12000, scoped, tag = 'internal scratch']
  %s0 = inlined_call_operand.vmem [shape: f32[16,4096], index: 0, kind: input, shape index: {}]
  %s1 = inlined_call_operand.vmem [shape: f32[16,4096], index: 1, kind: input, shape index: {}]
  %s2 = inlined_call_operand.vmem [shape: f32[32,512], index: 2, kind: input, shape index: {}]
  %s3 = inlined_call_operand.vmem [shape: f32[32,512], index: 3, kind: input, shape index: {}]
  %s4 = inlined_call_operand.vmem [shape: f32[64,64], index: 4, kind: input, shape index: {}]
  %s5 = inlined_call_operand.vmem [shape: f32[64,64], index: 5, kind: input, shape index: {}]
  %s6 = inlined_call_operand.hbm [shape: f32[1,128], index: 6, kind: output, shape index: {}]
  %s7 = sld [smem:[#allocation0]]
  $region34: #{lpips.7} parent=0
    _
  %s9 = ssub.s32 1, %s7
  %s10 = scalar_select 0, %s9, %s7
  $region1: #{lpips.7} parent=0
    #allocation2 [shape = 'u8[512]{0}', space=vmem, size = 0x400, scoped, tag = 'output window, operand 0, single buffered']
    #allocation3 [shape = 's32[1]{0}', space=sflag, size = 0x4, scoped, tag = 'scoped memory for lpips.7']
    %11 = vsyncpa [#allocation3], 0
    // Predicated region
    $region2: #{lpips.7} parent=1 // pred_check
      _
    $region3: #{lpips.7} parent=1 // pred_check_branch
      %13 = sbr.rel (0) target = $region5
    $region4: #{lpips.7} parent=1 // pred_region
      _
    $region5: #{lpips.7} parent=1 // pred_fallthru
      _
    // Predicated region
    $region6: #{lpips.7} parent=1 // pred_check
      _
    $region7: #{lpips.7} parent=1 // pred_check_branch
      %15 = sbr.rel (0) target = $region9
    $region8: #{lpips.7} parent=1 // pred_region
      _
    $region9: #{lpips.7} parent=1 // pred_fallthru
      _
    // Predicated region
    $region10: #{lpips.7} parent=1 // pred_check
      _
    $region11: #{lpips.7} parent=1 // pred_check_branch
      %17 = sbr.rel (0) target = $region13
    $region12: #{lpips.7} parent=1 // pred_region
      _
    $region13: #{lpips.7} parent=1 // pred_fallthru
      _
    // Predicated region
    $region14: #{lpips.7} parent=1 // pred_check
      _
    $region15: #{lpips.7} parent=1 // pred_check_branch
      %19 = sbr.rel (0) target = $region17
    $region16: #{lpips.7} parent=1 // pred_region
      _
    $region17: #{lpips.7} parent=1 // pred_fallthru
      _
    // Predicated region
    $region18: #{lpips.7} parent=1 // pred_check
      _
    $region19: #{lpips.7} parent=1 // pred_check_branch
      %21 = sbr.rel (0) target = $region21
    $region20: #{lpips.7} parent=1 // pred_region
      _
    $region21: #{lpips.7} parent=1 // pred_fallthru
      _
    // Predicated region
    $region22: #{lpips.7} parent=1 // pred_check
      _
    $region23: #{lpips.7} parent=1 // pred_check_branch
      %23 = sbr.rel (0) target = $region25
    $region24: #{lpips.7} parent=1 // pred_region
      _
    $region25: #{lpips.7} parent=1 // pred_fallthru
      _
    %v24 = vld [vmem:[%s0] sm:$0xff]
    %v25 = vld [vmem:[%s0 + $0x8] sm:$0xff]
    %v26 = vld [vmem:[%s0 + $0x10] sm:$0xff]
    %v27 = vld [vmem:[%s0 + $0x18] sm:$0xff]
    %v28 = vld [vmem:[%s0 + $0x20] sm:$0xff]
    %v29 = vld [vmem:[%s0 + $0x28] sm:$0xff]
    %v30 = vld [vmem:[%s0 + $0x30] sm:$0xff]
    %v31 = vld [vmem:[%s0 + $0x38] sm:$0xff]
    %v32 = vld [vmem:[%s0 + $0x40] sm:$0xff]
    %v33 = vld [vmem:[%s0 + $0x48] sm:$0xff]
    %v34 = vld [vmem:[%s0 + $0x50] sm:$0xff]
    %v35 = vld [vmem:[%s0 + $0x58] sm:$0xff]
    %v36 = vld [vmem:[%s0 + $0x60] sm:$0xff]
    %v37 = vld [vmem:[%s0 + $0x68] sm:$0xff]
    %v38 = vld [vmem:[%s0 + $0x70] sm:$0xff]
    %v39 = vld [vmem:[%s0 + $0x78] sm:$0xff]
    %v40 = vld [vmem:[%s0 + $0x80] sm:$0xff]
    %v41 = vld [vmem:[%s0 + $0x88] sm:$0xff]
    %v42 = vld [vmem:[%s0 + $0x90] sm:$0xff]
    %v43 = vld [vmem:[%s0 + $0x98] sm:$0xff]
    %v44 = vld [vmem:[%s0 + $0xa0] sm:$0xff]
    %v45 = vld [vmem:[%s0 + $0xa8] sm:$0xff]
    %v46 = vld [vmem:[%s0 + $0xb0] sm:$0xff]
    %v47 = vld [vmem:[%s0 + $0xb8] sm:$0xff]
    %v48 = vld [vmem:[%s0 + $0xc0] sm:$0xff]
    %v49 = vld [vmem:[%s0 + $0xc8] sm:$0xff]
    %v50 = vld [vmem:[%s0 + $0xd0] sm:$0xff]
    %v51 = vld [vmem:[%s0 + $0xd8] sm:$0xff]
    %v52 = vld [vmem:[%s0 + $0xe0] sm:$0xff]
    %v53 = vld [vmem:[%s0 + $0xe8] sm:$0xff]
    %v54 = vld [vmem:[%s0 + $0xf0] sm:$0xff]
    %v55 = vld [vmem:[%s0 + $0xf8] sm:$0xff]
    %v56 = vld [vmem:[%s0 + $0x100] sm:$0xff]
    %v57 = vld [vmem:[%s0 + $0x108] sm:$0xff]
    %v58 = vld [vmem:[%s0 + $0x110] sm:$0xff]
    %v59 = vld [vmem:[%s0 + $0x118] sm:$0xff]
    %v60 = vld [vmem:[%s0 + $0x120] sm:$0xff]
    %v61 = vld [vmem:[%s0 + $0x128] sm:$0xff]
    %v62 = vld [vmem:[%s0 + $0x130] sm:$0xff]
    %v63 = vld [vmem:[%s0 + $0x138] sm:$0xff]
    %v64 = vld [vmem:[%s0 + $0x140] sm:$0xff]
    %v65 = vld [vmem:[%s0 + $0x148] sm:$0xff]
    %v66 = vld [vmem:[%s0 + $0x150] sm:$0xff]
    %v67 = vld [vmem:[%s0 + $0x158] sm:$0xff]
    %v68 = vld [vmem:[%s0 + $0x160] sm:$0xff]
    %v69 = vld [vmem:[%s0 + $0x168] sm:$0xff]
    %v70 = vld [vmem:[%s0 + $0x170] sm:$0xff]
    %v71 = vld [vmem:[%s0 + $0x178] sm:$0xff]
    %v72 = vld [vmem:[%s0 + $0x180] sm:$0xff]
    %v73 = vld [vmem:[%s0 + $0x188] sm:$0xff]
    %v74 = vld [vmem:[%s0 + $0x190] sm:$0xff]
    %v75 = vld [vmem:[%s0 + $0x198] sm:$0xff]
    %v76 = vld [vmem:[%s0 + $0x1a0] sm:$0xff]
    %v77 = vld [vmem:[%s0 + $0x1a8] sm:$0xff]
    %v78 = vld [vmem:[%s0 + $0x1b0] sm:$0xff]
    %v79 = vld [vmem:[%s0 + $0x1b8] sm:$0xff]
    %v80 = vld [vmem:[%s0 + $0x1c0] sm:$0xff]
    %v81 = vld [vmem:[%s0 + $0x1c8] sm:$0xff]
    %v82 = vld [vmem:[%s0 + $0x1d0] sm:$0xff]
    %v83 = vld [vmem:[%s0 + $0x1d8] sm:$0xff]
    %v84 = vld [vmem:[%s0 + $0x1e0] sm:$0xff]
    %v85 = vld [vmem:[%s0 + $0x1e8] sm:$0xff]
    %v86 = vld [vmem:[%s0 + $0x1f0] sm:$0xff]
    %v87 = vld [vmem:[%s0 + $0x1f8] sm:$0xff]
    %v88 = vld [vmem:[%s1] sm:$0xff]
    %v89 = vld [vmem:[%s1 + $0x8] sm:$0xff]
    %v90 = vld [vmem:[%s1 + $0x10] sm:$0xff]
    %v91 = vld [vmem:[%s1 + $0x18] sm:$0xff]
    %v92 = vld [vmem:[%s1 + $0x20] sm:$0xff]
    %v93 = vld [vmem:[%s1 + $0x28] sm:$0xff]
    %v94 = vld [vmem:[%s1 + $0x30] sm:$0xff]
    %v95 = vld [vmem:[%s1 + $0x38] sm:$0xff]
    %v96 = vld [vmem:[%s1 + $0x40] sm:$0xff]
    %v97 = vld [vmem:[%s1 + $0x48] sm:$0xff]
    %v98 = vld [vmem:[%s1 + $0x50] sm:$0xff]
    %v99 = vld [vmem:[%s1 + $0x58] sm:$0xff]
    %v100 = vld [vmem:[%s1 + $0x60] sm:$0xff]
    %v101 = vld [vmem:[%s1 + $0x68] sm:$0xff]
    %v102 = vld [vmem:[%s1 + $0x70] sm:$0xff]
    %v103 = vld [vmem:[%s1 + $0x78] sm:$0xff]
    %v104 = vld [vmem:[%s1 + $0x80] sm:$0xff]
    %v105 = vld [vmem:[%s1 + $0x88] sm:$0xff]
    %v106 = vld [vmem:[%s1 + $0x90] sm:$0xff]
    %v107 = vld [vmem:[%s1 + $0x98] sm:$0xff]
    %v108 = vld [vmem:[%s1 + $0xa0] sm:$0xff]
    %v109 = vld [vmem:[%s1 + $0xa8] sm:$0xff]
    %v110 = vld [vmem:[%s1 + $0xb0] sm:$0xff]
    %v111 = vld [vmem:[%s1 + $0xb8] sm:$0xff]
    %v112 = vld [vmem:[%s1 + $0xc0] sm:$0xff]
    %v113 = vld [vmem:[%s1 + $0xc8] sm:$0xff]
    %v114 = vld [vmem:[%s1 + $0xd0] sm:$0xff]
    %v115 = vld [vmem:[%s1 + $0xd8] sm:$0xff]
    %v116 = vld [vmem:[%s1 + $0xe0] sm:$0xff]
    %v117 = vld [vmem:[%s1 + $0xe8] sm:$0xff]
    %v118 = vld [vmem:[%s1 + $0xf0] sm:$0xff]
    %v119 = vld [vmem:[%s1 + $0xf8] sm:$0xff]
    %v120 = vld [vmem:[%s1 + $0x100] sm:$0xff]
    %v121 = vld [vmem:[%s1 + $0x108] sm:$0xff]
    %v122 = vld [vmem:[%s1 + $0x110] sm:$0xff]
    %v123 = vld [vmem:[%s1 + $0x118] sm:$0xff]
    %v124 = vld [vmem:[%s1 + $0x120] sm:$0xff]
    %v125 = vld [vmem:[%s1 + $0x128] sm:$0xff]
    %v126 = vld [vmem:[%s1 + $0x130] sm:$0xff]
    %v127 = vld [vmem:[%s1 + $0x138] sm:$0xff]
    %v128 = vld [vmem:[%s1 + $0x140] sm:$0xff]
    %v129 = vld [vmem:[%s1 + $0x148] sm:$0xff]
    %v130 = vld [vmem:[%s1 + $0x150] sm:$0xff]
    %v131 = vld [vmem:[%s1 + $0x158] sm:$0xff]
    %v132 = vld [vmem:[%s1 + $0x160] sm:$0xff]
    %v133 = vld [vmem:[%s1 + $0x168] sm:$0xff]
    %v134 = vld [vmem:[%s1 + $0x170] sm:$0xff]
    %v135 = vld [vmem:[%s1 + $0x178] sm:$0xff]
    %v136 = vld [vmem:[%s1 + $0x180] sm:$0xff]
    %v137 = vld [vmem:[%s1 + $0x188] sm:$0xff]
    %v138 = vld [vmem:[%s1 + $0x190] sm:$0xff]
    %v139 = vld [vmem:[%s1 + $0x198] sm:$0xff]
    %v140 = vld [vmem:[%s1 + $0x1a0] sm:$0xff]
    %v141 = vld [vmem:[%s1 + $0x1a8] sm:$0xff]
    %v142 = vld [vmem:[%s1 + $0x1b0] sm:$0xff]
    %v143 = vld [vmem:[%s1 + $0x1b8] sm:$0xff]
    %v144 = vld [vmem:[%s1 + $0x1c0] sm:$0xff]
    %v145 = vld [vmem:[%s1 + $0x1c8] sm:$0xff]
    %v146 = vld [vmem:[%s1 + $0x1d0] sm:$0xff]
    %v147 = vld [vmem:[%s1 + $0x1d8] sm:$0xff]
    %v148 = vld [vmem:[%s1 + $0x1e0] sm:$0xff]
    %v149 = vld [vmem:[%s1 + $0x1e8] sm:$0xff]
    %v150 = vld [vmem:[%s1 + $0x1f0] sm:$0xff]
    %v151 = vld [vmem:[%s1 + $0x1f8] sm:$0xff]
    %v152 = vmul.f32 %v24, %v24
    %v153 = vmul.f32 %v25, %v25
    %v154 = vmul.f32 %v26, %v26
    %v155 = vmul.f32 %v27, %v27
    %v156 = vmul.f32 %v28, %v28
    %v157 = vmul.f32 %v29, %v29
    %v158 = vmul.f32 %v30, %v30
    %v159 = vmul.f32 %v31, %v31
    %v160 = vmul.f32 %v32, %v32
    %v161 = vmul.f32 %v33, %v33
    %v162 = vmul.f32 %v34, %v34
    %v163 = vmul.f32 %v35, %v35
    %v164 = vmul.f32 %v36, %v36
    %v165 = vmul.f32 %v37, %v37
    %v166 = vmul.f32 %v38, %v38
    %v167 = vmul.f32 %v39, %v39
    %v168 = vmul.f32 %v40, %v40
    %v169 = vmul.f32 %v41, %v41
    %v170 = vmul.f32 %v42, %v42
    %v171 = vmul.f32 %v43, %v43
    %v172 = vmul.f32 %v44, %v44
    %v173 = vmul.f32 %v45, %v45
    %v174 = vmul.f32 %v46, %v46
    %v175 = vmul.f32 %v47, %v47
    %v176 = vmul.f32 %v48, %v48
    %v177 = vmul.f32 %v49, %v49
    %v178 = vmul.f32 %v50, %v50
    %v179 = vmul.f32 %v51, %v51
    %v180 = vmul.f32 %v52, %v52
    %v181 = vmul.f32 %v53, %v53
    %v182 = vmul.f32 %v54, %v54
    %v183 = vmul.f32 %v55, %v55
    %v184 = vmul.f32 %v56, %v56
    %v185 = vmul.f32 %v57, %v57
    %v186 = vmul.f32 %v58, %v58
    %v187 = vmul.f32 %v59, %v59
    %v188 = vmul.f32 %v60, %v60
    %v189 = vmul.f32 %v61, %v61
    %v190 = vmul.f32 %v62, %v62
    %v191 = vmul.f32 %v63, %v63
    %v192 = vmul.f32 %v64, %v64
    %v193 = vmul.f32 %v65, %v65
    %v194 = vmul.f32 %v66, %v66
    %v195 = vmul.f32 %v67, %v67
    %v196 = vmul.f32 %v68, %v68
    %v197 = vmul.f32 %v69, %v69
    %v198 = vmul.f32 %v70, %v70
    %v199 = vmul.f32 %v71, %v71
    %v200 = vmul.f32 %v72, %v72
    %v201 = vmul.f32 %v73, %v73
    %v202 = vmul.f32 %v74, %v74
    %v203 = vmul.f32 %v75, %v75
    %v204 = vmul.f32 %v76, %v76
    %v205 = vmul.f32 %v77, %v77
    %v206 = vmul.f32 %v78, %v78
    %v207 = vmul.f32 %v79, %v79
    %v208 = vmul.f32 %v80, %v80
    %v209 = vmul.f32 %v81, %v81
    %v210 = vmul.f32 %v82, %v82
    %v211 = vmul.f32 %v83, %v83
    %v212 = vmul.f32 %v84, %v84
    %v213 = vmul.f32 %v85, %v85
    %v214 = vmul.f32 %v86, %v86
    %v215 = vmul.f32 %v87, %v87
    %v216 = vadd.f32 %v152, %v184
    %v217 = vrot.slane %v216, 4
    %v218 = vadd.f32 %v216, %v217
    %v219 = vrot.slane %v218, 2
    %v220 = vadd.f32 %v218, %v219
    %v221 = vrot.slane %v220, 1
    %v222 = vadd.f32 %v220, %v221
    %v223 = vadd.f32 %v153, %v185
    %v224 = vrot.slane %v223, 4
    %v225 = vadd.f32 %v223, %v224
    %v226 = vrot.slane %v225, 2
    %v227 = vadd.f32 %v225, %v226
    %v228 = vrot.slane %v227, 1
    %v229 = vadd.f32 %v227, %v228
    %v230 = vadd.f32 %v154, %v186
    %v231 = vrot.slane %v230, 4
    %v232 = vadd.f32 %v230, %v231
    %v233 = vrot.slane %v232, 2
    %v234 = vadd.f32 %v232, %v233
    %v235 = vrot.slane %v234, 1
    %v236 = vadd.f32 %v234, %v235
    %v237 = vadd.f32 %v155, %v187
    %v238 = vrot.slane %v237, 4
    %v239 = vadd.f32 %v237, %v238
    %v240 = vrot.slane %v239, 2
    %v241 = vadd.f32 %v239, %v240
    %v242 = vrot.slane %v241, 1
    %v243 = vadd.f32 %v241, %v242
    %v244 = vadd.f32 %v156, %v188
    %v245 = vrot.slane %v244, 4
    %v246 = vadd.f32 %v244, %v245
    %v247 = vrot.slane %v246, 2
    %v248 = vadd.f32 %v246, %v247
    %v249 = vrot.slane %v248, 1
    %v250 = vadd.f32 %v248, %v249
    %v251 = vadd.f32 %v157, %v189
    %v252 = vrot.slane %v251, 4
    %v253 = vadd.f32 %v251, %v252
    %v254 = vrot.slane %v253, 2
    %v255 = vadd.f32 %v253, %v254
    %v256 = vrot.slane %v255, 1
    %v257 = vadd.f32 %v255, %v256
    %v258 = vadd.f32 %v158, %v190
    %v259 = vrot.slane %v258, 4
    %v260 = vadd.f32 %v258, %v259
    %v261 = vrot.slane %v260, 2
    %v262 = vadd.f32 %v260, %v261
    %v263 = vrot.slane %v262, 1
    %v264 = vadd.f32 %v262, %v263
    %v265 = vadd.f32 %v159, %v191
    %v266 = vrot.slane %v265, 4
    %v267 = vadd.f32 %v265, %v266
    %v268 = vrot.slane %v267, 2
    %v269 = vadd.f32 %v267, %v268
    %v270 = vrot.slane %v269, 1
    %v271 = vadd.f32 %v269, %v270
    %v272 = vadd.f32 %v160, %v192
    %v273 = vrot.slane %v272, 4
    %v274 = vadd.f32 %v272, %v273
    %v275 = vrot.slane %v274, 2
    %v276 = vadd.f32 %v274, %v275
    %v277 = vrot.slane %v276, 1
    %v278 = vadd.f32 %v276, %v277
    %v279 = vadd.f32 %v161, %v193
    %v280 = vrot.slane %v279, 4
    %v281 = vadd.f32 %v279, %v280
    %v282 = vrot.slane %v281, 2
    %v283 = vadd.f32 %v281, %v282
    %v284 = vrot.slane %v283, 1
    %v285 = vadd.f32 %v283, %v284
    %v286 = vadd.f32 %v162, %v194
    %v287 = vrot.slane %v286, 4
    %v288 = vadd.f32 %v286, %v287
    %v289 = vrot.slane %v288, 2
    %v290 = vadd.f32 %v288, %v289
    %v291 = vrot.slane %v290, 1
    %v292 = vadd.f32 %v290, %v291
    %v293 = vadd.f32 %v163, %v195
    %v294 = vrot.slane %v293, 4
    %v295 = vadd.f32 %v293, %v294
    %v296 = vrot.slane %v295, 2
    %v297 = vadd.f32 %v295, %v296
    %v298 = vrot.slane %v297, 1
    %v299 = vadd.f32 %v297, %v298
    %v300 = vadd.f32 %v164, %v196
    %v301 = vrot.slane %v300, 4
    %v302 = vadd.f32 %v300, %v301
    %v303 = vrot.slane %v302, 2
    %v304 = vadd.f32 %v302, %v303
    %v305 = vrot.slane %v304, 1
    %v306 = vadd.f32 %v304, %v305
    %v307 = vadd.f32 %v165, %v197
    %v308 = vrot.slane %v307, 4
    %v309 = vadd.f32 %v307, %v308
    %v310 = vrot.slane %v309, 2
    %v311 = vadd.f32 %v309, %v310
    %v312 = vrot.slane %v311, 1
    %v313 = vadd.f32 %v311, %v312
    %v314 = vadd.f32 %v166, %v198
    %v315 = vrot.slane %v314, 4
    %v316 = vadd.f32 %v314, %v315
    %v317 = vrot.slane %v316, 2
    %v318 = vadd.f32 %v316, %v317
    %v319 = vrot.slane %v318, 1
    %v320 = vadd.f32 %v318, %v319
    %v321 = vadd.f32 %v167, %v199
    %v322 = vrot.slane %v321, 4
    %v323 = vadd.f32 %v321, %v322
    %v324 = vrot.slane %v323, 2
    %v325 = vadd.f32 %v323, %v324
    %v326 = vrot.slane %v325, 1
    %v327 = vadd.f32 %v325, %v326
    %v328 = vadd.f32 %v168, %v200
    %v329 = vrot.slane %v328, 4
    %v330 = vadd.f32 %v328, %v329
    %v331 = vrot.slane %v330, 2
    %v332 = vadd.f32 %v330, %v331
    %v333 = vrot.slane %v332, 1
    %v334 = vadd.f32 %v332, %v333
    %v335 = vadd.f32 %v169, %v201
    %v336 = vrot.slane %v335, 4
    %v337 = vadd.f32 %v335, %v336
    %v338 = vrot.slane %v337, 2
    %v339 = vadd.f32 %v337, %v338
    %v340 = vrot.slane %v339, 1
    %v341 = vadd.f32 %v339, %v340
    %v342 = vadd.f32 %v170, %v202
    %v343 = vrot.slane %v342, 4
    %v344 = vadd.f32 %v342, %v343
    %v345 = vrot.slane %v344, 2
    %v346 = vadd.f32 %v344, %v345
    %v347 = vrot.slane %v346, 1
    %v348 = vadd.f32 %v346, %v347
    %v349 = vadd.f32 %v171, %v203
    %v350 = vrot.slane %v349, 4
    %v351 = vadd.f32 %v349, %v350
    %v352 = vrot.slane %v351, 2
    %v353 = vadd.f32 %v351, %v352
    %v354 = vrot.slane %v353, 1
    %v355 = vadd.f32 %v353, %v354
    %v356 = vadd.f32 %v172, %v204
    %v357 = vrot.slane %v356, 4
    %v358 = vadd.f32 %v356, %v357
    %v359 = vrot.slane %v358, 2
    %v360 = vadd.f32 %v358, %v359
    %v361 = vrot.slane %v360, 1
    %v362 = vadd.f32 %v360, %v361
    %v363 = vadd.f32 %v173, %v205
    %v364 = vrot.slane %v363, 4
    %v365 = vadd.f32 %v363, %v364
    %v366 = vrot.slane %v365, 2
    %v367 = vadd.f32 %v365, %v366
    %v368 = vrot.slane %v367, 1
    %v369 = vadd.f32 %v367, %v368
    %v370 = vadd.f32 %v174, %v206
    %v371 = vrot.slane %v370, 4
    %v372 = vadd.f32 %v370, %v371
    %v373 = vrot.slane %v372, 2
    %v374 = vadd.f32 %v372, %v373
    %v375 = vrot.slane %v374, 1
    %v376 = vadd.f32 %v374, %v375
    %v377 = vadd.f32 %v175, %v207
    %v378 = vrot.slane %v377, 4
    %v379 = vadd.f32 %v377, %v378
    %v380 = vrot.slane %v379, 2
    %v381 = vadd.f32 %v379, %v380
    %v382 = vrot.slane %v381, 1
    %v383 = vadd.f32 %v381, %v382
    %v384 = vadd.f32 %v176, %v208
    %v385 = vrot.slane %v384, 4
    %v386 = vadd.f32 %v384, %v385
    %v387 = vrot.slane %v386, 2
    %v388 = vadd.f32 %v386, %v387
    %v389 = vrot.slane %v388, 1
    %v390 = vadd.f32 %v388, %v389
    %v391 = vadd.f32 %v177, %v209
    %v392 = vrot.slane %v391, 4
    %v393 = vadd.f32 %v391, %v392
    %v394 = vrot.slane %v393, 2
    %v395 = vadd.f32 %v393, %v394
    %v396 = vrot.slane %v395, 1
    %v397 = vadd.f32 %v395, %v396
    %v398 = vadd.f32 %v178, %v210
    %v399 = vrot.slane %v398, 4
    %v400 = vadd.f32 %v398, %v399
    %v401 = vrot.slane %v400, 2
    %v402 = vadd.f32 %v400, %v401
    %v403 = vrot.slane %v402, 1
    %v404 = vadd.f32 %v402, %v403
    %v405 = vadd.f32 %v179, %v211
    %v406 = vrot.slane %v405, 4
    %v407 = vadd.f32 %v405, %v406
    %v408 = vrot.slane %v407, 2
    %v409 = vadd.f32 %v407, %v408
    %v410 = vrot.slane %v409, 1
    %v411 = vadd.f32 %v409, %v410
    %v412 = vadd.f32 %v180, %v212
    %v413 = vrot.slane %v412, 4
    %v414 = vadd.f32 %v412, %v413
    %v415 = vrot.slane %v414, 2
    %v416 = vadd.f32 %v414, %v415
    %v417 = vrot.slane %v416, 1
    %v418 = vadd.f32 %v416, %v417
    %v419 = vadd.f32 %v181, %v213
    %v420 = vrot.slane %v419, 4
    %v421 = vadd.f32 %v419, %v420
    %v422 = vrot.slane %v421, 2
    %v423 = vadd.f32 %v421, %v422
    %v424 = vrot.slane %v423, 1
    %v425 = vadd.f32 %v423, %v424
    %v426 = vadd.f32 %v182, %v214
    %v427 = vrot.slane %v426, 4
    %v428 = vadd.f32 %v426, %v427
    %v429 = vrot.slane %v428, 2
    %v430 = vadd.f32 %v428, %v429
    %v431 = vrot.slane %v430, 1
    %v432 = vadd.f32 %v430, %v431
    %v433 = vadd.f32 %v183, %v215
    %v434 = vrot.slane %v433, 4
    %v435 = vadd.f32 %v433, %v434
    %v436 = vrot.slane %v435, 2
    %v437 = vadd.f32 %v435, %v436
    %v438 = vrot.slane %v437, 1
    %v439 = vadd.f32 %v437, %v438
    %v440 = vadd.f32 %v222, 1e-10
    %v441 = vadd.f32 %v229, 1e-10
    %v442 = vadd.f32 %v236, 1e-10
    %v443 = vadd.f32 %v243, 1e-10
    %v444 = vadd.f32 %v250, 1e-10
    %v445 = vadd.f32 %v257, 1e-10
    %v446 = vadd.f32 %v264, 1e-10
    %v447 = vadd.f32 %v271, 1e-10
    %v448 = vadd.f32 %v278, 1e-10
    %v449 = vadd.f32 %v285, 1e-10
    %v450 = vadd.f32 %v292, 1e-10
    %v451 = vadd.f32 %v299, 1e-10
    %v452 = vadd.f32 %v306, 1e-10
    %v453 = vadd.f32 %v313, 1e-10
    %v454 = vadd.f32 %v320, 1e-10
    %v455 = vadd.f32 %v327, 1e-10
    %v456 = vadd.f32 %v334, 1e-10
    %v457 = vadd.f32 %v341, 1e-10
    %v458 = vadd.f32 %v348, 1e-10
    %v459 = vadd.f32 %v355, 1e-10
    %v460 = vadd.f32 %v362, 1e-10
    %v461 = vadd.f32 %v369, 1e-10
    %v462 = vadd.f32 %v376, 1e-10
    %v463 = vadd.f32 %v383, 1e-10
    %v464 = vadd.f32 %v390, 1e-10
    %v465 = vadd.f32 %v397, 1e-10
    %v466 = vadd.f32 %v404, 1e-10
    %v467 = vadd.f32 %v411, 1e-10
    %v468 = vadd.f32 %v418, 1e-10
    %v469 = vadd.f32 %v425, 1e-10
    %v470 = vadd.f32 %v432, 1e-10
    %v471 = vadd.f32 %v439, 1e-10
    %v472 = vrsqrt.pop %v440
    %v473 = vrsqrt.pop %v441
    %v474 = vrsqrt.pop %v442
    %v475 = vrsqrt.pop %v443
    %v476 = vrsqrt.pop %v444
    %v477 = vrsqrt.pop %v445
    %v478 = vrsqrt.pop %v446
    %v479 = vrsqrt.pop %v447
    %v480 = vrsqrt.pop %v448
    %v481 = vrsqrt.pop %v449
    %v482 = vrsqrt.pop %v450
    %v483 = vrsqrt.pop %v451
    %v484 = vrsqrt.pop %v452
    %v485 = vrsqrt.pop %v453
    %v486 = vrsqrt.pop %v454
    %v487 = vrsqrt.pop %v455
    %v488 = vrsqrt.pop %v456
    %v489 = vrsqrt.pop %v457
    %v490 = vrsqrt.pop %v458
    %v491 = vrsqrt.pop %v459
    %v492 = vrsqrt.pop %v460
    %v493 = vrsqrt.pop %v461
    %v494 = vrsqrt.pop %v462
    %v495 = vrsqrt.pop %v463
    %v496 = vrsqrt.pop %v464
    %v497 = vrsqrt.pop %v465
    %v498 = vrsqrt.pop %v466
    %v499 = vrsqrt.pop %v467
    %v500 = vrsqrt.pop %v468
    %v501 = vrsqrt.pop %v469
    %v502 = vrsqrt.pop %v470
    %v503 = vrsqrt.pop %v471
    %v504 = vmul.f32 %v24, %v472
    %v505 = vmul.f32 %v25, %v473
    %v506 = vmul.f32 %v26, %v474
    %v507 = vmul.f32 %v27, %v475
    %v508 = vmul.f32 %v28, %v476
    %v509 = vmul.f32 %v29, %v477
    %v510 = vmul.f32 %v30, %v478
    %v511 = vmul.f32 %v31, %v479
    %v512 = vmul.f32 %v32, %v480
    %v513 = vmul.f32 %v33, %v481
    %v514 = vmul.f32 %v34, %v482
    %v515 = vmul.f32 %v35, %v483
    %v516 = vmul.f32 %v36, %v484
    %v517 = vmul.f32 %v37, %v485
    %v518 = vmul.f32 %v38, %v486
    %v519 = vmul.f32 %v39, %v487
    %v520 = vmul.f32 %v40, %v488
    %v521 = vmul.f32 %v41, %v489
    %v522 = vmul.f32 %v42, %v490
    %v523 = vmul.f32 %v43, %v491
    %v524 = vmul.f32 %v44, %v492
    %v525 = vmul.f32 %v45, %v493
    %v526 = vmul.f32 %v46, %v494
    %v527 = vmul.f32 %v47, %v495
    %v528 = vmul.f32 %v48, %v496
    %v529 = vmul.f32 %v49, %v497
    %v530 = vmul.f32 %v50, %v498
    %v531 = vmul.f32 %v51, %v499
    %v532 = vmul.f32 %v52, %v500
    %v533 = vmul.f32 %v53, %v501
    %v534 = vmul.f32 %v54, %v502
    %v535 = vmul.f32 %v55, %v503
    %v536 = vmul.f32 %v56, %v472
    %v537 = vmul.f32 %v57, %v473
    %v538 = vmul.f32 %v58, %v474
    %v539 = vmul.f32 %v59, %v475
    %v540 = vmul.f32 %v60, %v476
    %v541 = vmul.f32 %v61, %v477
    %v542 = vmul.f32 %v62, %v478
    %v543 = vmul.f32 %v63, %v479
    %v544 = vmul.f32 %v64, %v480
    %v545 = vmul.f32 %v65, %v481
    %v546 = vmul.f32 %v66, %v482
    %v547 = vmul.f32 %v67, %v483
    %v548 = vmul.f32 %v68, %v484
    %v549 = vmul.f32 %v69, %v485
    %v550 = vmul.f32 %v70, %v486
    %v551 = vmul.f32 %v71, %v487
    %v552 = vmul.f32 %v72, %v488
    %v553 = vmul.f32 %v73, %v489
    %v554 = vmul.f32 %v74, %v490
    %v555 = vmul.f32 %v75, %v491
    %v556 = vmul.f32 %v76, %v492
    %v557 = vmul.f32 %v77, %v493
    %v558 = vmul.f32 %v78, %v494
    %v559 = vmul.f32 %v79, %v495
    %v560 = vmul.f32 %v80, %v496
    %v561 = vmul.f32 %v81, %v497
    %v562 = vmul.f32 %v82, %v498
    %v563 = vmul.f32 %v83, %v499
    %v564 = vmul.f32 %v84, %v500
    %v565 = vmul.f32 %v85, %v501
    %v566 = vmul.f32 %v86, %v502
    %v567 = vmul.f32 %v87, %v503
    %v568 = vmul.f32 %v88, %v88
    %v569 = vmul.f32 %v89, %v89
    %v570 = vmul.f32 %v90, %v90
    %v571 = vmul.f32 %v91, %v91
    %v572 = vmul.f32 %v92, %v92
    %v573 = vmul.f32 %v93, %v93
    %v574 = vmul.f32 %v94, %v94
    %v575 = vmul.f32 %v95, %v95
    %v576 = vmul.f32 %v96, %v96
    %v577 = vmul.f32 %v97, %v97
    %v578 = vmul.f32 %v98, %v98
    %v579 = vmul.f32 %v99, %v99
    %v580 = vmul.f32 %v100, %v100
    %v581 = vmul.f32 %v101, %v101
    %v582 = vmul.f32 %v102, %v102
    %v583 = vmul.f32 %v103, %v103
    %v584 = vmul.f32 %v104, %v104
    %v585 = vmul.f32 %v105, %v105
    %v586 = vmul.f32 %v106, %v106
    %v587 = vmul.f32 %v107, %v107
    %v588 = vmul.f32 %v108, %v108
    %v589 = vmul.f32 %v109, %v109
    %v590 = vmul.f32 %v110, %v110
    %v591 = vmul.f32 %v111, %v111
    %v592 = vmul.f32 %v112, %v112
    %v593 = vmul.f32 %v113, %v113
    %v594 = vmul.f32 %v114, %v114
    %v595 = vmul.f32 %v115, %v115
    %v596 = vmul.f32 %v116, %v116
    %v597 = vmul.f32 %v117, %v117
    %v598 = vmul.f32 %v118, %v118
    %v599 = vmul.f32 %v119, %v119
    %v600 = vmul.f32 %v120, %v120
    %v601 = vmul.f32 %v121, %v121
    %v602 = vmul.f32 %v122, %v122
    %v603 = vmul.f32 %v123, %v123
    %v604 = vmul.f32 %v124, %v124
    %v605 = vmul.f32 %v125, %v125
    %v606 = vmul.f32 %v126, %v126
    %v607 = vmul.f32 %v127, %v127
    %v608 = vmul.f32 %v128, %v128
    %v609 = vmul.f32 %v129, %v129
    %v610 = vmul.f32 %v130, %v130
    %v611 = vmul.f32 %v131, %v131
    %v612 = vmul.f32 %v132, %v132
    %v613 = vmul.f32 %v133, %v133
    %v614 = vmul.f32 %v134, %v134
    %v615 = vmul.f32 %v135, %v135
    %v616 = vmul.f32 %v136, %v136
    %v617 = vmul.f32 %v137, %v137
    %v618 = vmul.f32 %v138, %v138
    %v619 = vmul.f32 %v139, %v139
    %v620 = vmul.f32 %v140, %v140
    %v621 = vmul.f32 %v141, %v141
    %v622 = vmul.f32 %v142, %v142
    %v623 = vmul.f32 %v143, %v143
    %v624 = vmul.f32 %v144, %v144
    %v625 = vmul.f32 %v145, %v145
    %v626 = vmul.f32 %v146, %v146
    %v627 = vmul.f32 %v147, %v147
    %v628 = vmul.f32 %v148, %v148
    %v629 = vmul.f32 %v149, %v149
    %v630 = vmul.f32 %v150, %v150
    %v631 = vmul.f32 %v151, %v151
    %v632 = vadd.f32 %v568, %v600
    %v633 = vrot.slane %v632, 4
    %v634 = vadd.f32 %v632, %v633
    %v635 = vrot.slane %v634, 2
    %v636 = vadd.f32 %v634, %v635
    %v637 = vrot.slane %v636, 1
    %v638 = vadd.f32 %v636, %v637
    %v639 = vadd.f32 %v569, %v601
    %v640 = vrot.slane %v639, 4
    %v641 = vadd.f32 %v639, %v640
    %v642 = vrot.slane %v641, 2
    %v643 = vadd.f32 %v641, %v642
    %v644 = vrot.slane %v643, 1
    %v645 = vadd.f32 %v643, %v644
    %v646 = vadd.f32 %v570, %v602
    %v647 = vrot.slane %v646, 4
    %v648 = vadd.f32 %v646, %v647
    %v649 = vrot.slane %v648, 2
    %v650 = vadd.f32 %v648, %v649
    %v651 = vrot.slane %v650, 1
    %v652 = vadd.f32 %v650, %v651
    %v653 = vadd.f32 %v571, %v603
    %v654 = vrot.slane %v653, 4
    %v655 = vadd.f32 %v653, %v654
    %v656 = vrot.slane %v655, 2
    %v657 = vadd.f32 %v655, %v656
    %v658 = vrot.slane %v657, 1
    %v659 = vadd.f32 %v657, %v658
    %v660 = vadd.f32 %v572, %v604
    %v661 = vrot.slane %v660, 4
    %v662 = vadd.f32 %v660, %v661
    %v663 = vrot.slane %v662, 2
    %v664 = vadd.f32 %v662, %v663
    %v665 = vrot.slane %v664, 1
    %v666 = vadd.f32 %v664, %v665
    %v667 = vadd.f32 %v573, %v605
    %v668 = vrot.slane %v667, 4
    %v669 = vadd.f32 %v667, %v668
    %v670 = vrot.slane %v669, 2
    %v671 = vadd.f32 %v669, %v670
    %v672 = vrot.slane %v671, 1
    %v673 = vadd.f32 %v671, %v672
    %v674 = vadd.f32 %v574, %v606
    %v675 = vrot.slane %v674, 4
    %v676 = vadd.f32 %v674, %v675
    %v677 = vrot.slane %v676, 2
    %v678 = vadd.f32 %v676, %v677
    %v679 = vrot.slane %v678, 1
    %v680 = vadd.f32 %v678, %v679
    %v681 = vadd.f32 %v575, %v607
    %v682 = vrot.slane %v681, 4
    %v683 = vadd.f32 %v681, %v682
    %v684 = vrot.slane %v683, 2
    %v685 = vadd.f32 %v683, %v684
    %v686 = vrot.slane %v685, 1
    %v687 = vadd.f32 %v685, %v686
    %v688 = vadd.f32 %v576, %v608
    %v689 = vrot.slane %v688, 4
    %v690 = vadd.f32 %v688, %v689
    %v691 = vrot.slane %v690, 2
    %v692 = vadd.f32 %v690, %v691
    %v693 = vrot.slane %v692, 1
    %v694 = vadd.f32 %v692, %v693
    %v695 = vadd.f32 %v577, %v609
    %v696 = vrot.slane %v695, 4
    %v697 = vadd.f32 %v695, %v696
    %v698 = vrot.slane %v697, 2
    %v699 = vadd.f32 %v697, %v698
    %v700 = vrot.slane %v699, 1
    %v701 = vadd.f32 %v699, %v700
    %v702 = vadd.f32 %v578, %v610
    %v703 = vrot.slane %v702, 4
    %v704 = vadd.f32 %v702, %v703
    %v705 = vrot.slane %v704, 2
    %v706 = vadd.f32 %v704, %v705
    %v707 = vrot.slane %v706, 1
    %v708 = vadd.f32 %v706, %v707
    %v709 = vadd.f32 %v579, %v611
    %v710 = vrot.slane %v709, 4
    %v711 = vadd.f32 %v709, %v710
    %v712 = vrot.slane %v711, 2
    %v713 = vadd.f32 %v711, %v712
    %v714 = vrot.slane %v713, 1
    %v715 = vadd.f32 %v713, %v714
    %v716 = vadd.f32 %v580, %v612
    %v717 = vrot.slane %v716, 4
    %v718 = vadd.f32 %v716, %v717
    %v719 = vrot.slane %v718, 2
    %v720 = vadd.f32 %v718, %v719
    %v721 = vrot.slane %v720, 1
    %v722 = vadd.f32 %v720, %v721
    %v723 = vadd.f32 %v581, %v613
    %v724 = vrot.slane %v723, 4
    %v725 = vadd.f32 %v723, %v724
    %v726 = vrot.slane %v725, 2
    %v727 = vadd.f32 %v725, %v726
    %v728 = vrot.slane %v727, 1
    %v729 = vadd.f32 %v727, %v728
    %v730 = vadd.f32 %v582, %v614
    %v731 = vrot.slane %v730, 4
    %v732 = vadd.f32 %v730, %v731
    %v733 = vrot.slane %v732, 2
    %v734 = vadd.f32 %v732, %v733
    %v735 = vrot.slane %v734, 1
    %v736 = vadd.f32 %v734, %v735
    %v737 = vadd.f32 %v583, %v615
    %v738 = vrot.slane %v737, 4
    %v739 = vadd.f32 %v737, %v738
    %v740 = vrot.slane %v739, 2
    %v741 = vadd.f32 %v739, %v740
    %v742 = vrot.slane %v741, 1
    %v743 = vadd.f32 %v741, %v742
    %v744 = vadd.f32 %v584, %v616
    %v745 = vrot.slane %v744, 4
    %v746 = vadd.f32 %v744, %v745
    %v747 = vrot.slane %v746, 2
    %v748 = vadd.f32 %v746, %v747
    %v749 = vrot.slane %v748, 1
    %v750 = vadd.f32 %v748, %v749
    %v751 = vadd.f32 %v585, %v617
    %v752 = vrot.slane %v751, 4
    %v753 = vadd.f32 %v751, %v752
    %v754 = vrot.slane %v753, 2
    %v755 = vadd.f32 %v753, %v754
    %v756 = vrot.slane %v755, 1
    %v757 = vadd.f32 %v755, %v756
    %v758 = vadd.f32 %v586, %v618
    %v759 = vrot.slane %v758, 4
    %v760 = vadd.f32 %v758, %v759
    %v761 = vrot.slane %v760, 2
    %v762 = vadd.f32 %v760, %v761
    %v763 = vrot.slane %v762, 1
    %v764 = vadd.f32 %v762, %v763
    %v765 = vadd.f32 %v587, %v619
    %v766 = vrot.slane %v765, 4
    %v767 = vadd.f32 %v765, %v766
    %v768 = vrot.slane %v767, 2
    %v769 = vadd.f32 %v767, %v768
    %v770 = vrot.slane %v769, 1
    %v771 = vadd.f32 %v769, %v770
    %v772 = vadd.f32 %v588, %v620
    %v773 = vrot.slane %v772, 4
    %v774 = vadd.f32 %v772, %v773
    %v775 = vrot.slane %v774, 2
    %v776 = vadd.f32 %v774, %v775
    %v777 = vrot.slane %v776, 1
    %v778 = vadd.f32 %v776, %v777
    %v779 = vadd.f32 %v589, %v621
    %v780 = vrot.slane %v779, 4
    %v781 = vadd.f32 %v779, %v780
    %v782 = vrot.slane %v781, 2
    %v783 = vadd.f32 %v781, %v782
    %v784 = vrot.slane %v783, 1
    %v785 = vadd.f32 %v783, %v784
    %v786 = vadd.f32 %v590, %v622
    %v787 = vrot.slane %v786, 4
    %v788 = vadd.f32 %v786, %v787
    %v789 = vrot.slane %v788, 2
    %v790 = vadd.f32 %v788, %v789
    %v791 = vrot.slane %v790, 1
    %v792 = vadd.f32 %v790, %v791
    %v793 = vadd.f32 %v591, %v623
    %v794 = vrot.slane %v793, 4
    %v795 = vadd.f32 %v793, %v794
    %v796 = vrot.slane %v795, 2
    %v797 = vadd.f32 %v795, %v796
    %v798 = vrot.slane %v797, 1
    %v799 = vadd.f32 %v797, %v798
    %v800 = vadd.f32 %v592, %v624
    %v801 = vrot.slane %v800, 4
    %v802 = vadd.f32 %v800, %v801
    %v803 = vrot.slane %v802, 2
    %v804 = vadd.f32 %v802, %v803
    %v805 = vrot.slane %v804, 1
    %v806 = vadd.f32 %v804, %v805
    %v807 = vadd.f32 %v593, %v625
    %v808 = vrot.slane %v807, 4
    %v809 = vadd.f32 %v807, %v808
    %v810 = vrot.slane %v809, 2
    %v811 = vadd.f32 %v809, %v810
    %v812 = vrot.slane %v811, 1
    %v813 = vadd.f32 %v811, %v812
    %v814 = vadd.f32 %v594, %v626
    %v815 = vrot.slane %v814, 4
    %v816 = vadd.f32 %v814, %v815
    %v817 = vrot.slane %v816, 2
    %v818 = vadd.f32 %v816, %v817
    %v819 = vrot.slane %v818, 1
    %v820 = vadd.f32 %v818, %v819
    %v821 = vadd.f32 %v595, %v627
    %v822 = vrot.slane %v821, 4
    %v823 = vadd.f32 %v821, %v822
    %v824 = vrot.slane %v823, 2
    %v825 = vadd.f32 %v823, %v824
    %v826 = vrot.slane %v825, 1
    %v827 = vadd.f32 %v825, %v826
    %v828 = vadd.f32 %v596, %v628
    %v829 = vrot.slane %v828, 4
    %v830 = vadd.f32 %v828, %v829
    %v831 = vrot.slane %v830, 2
    %v832 = vadd.f32 %v830, %v831
    %v833 = vrot.slane %v832, 1
    %v834 = vadd.f32 %v832, %v833
    %v835 = vadd.f32 %v597, %v629
    %v836 = vrot.slane %v835, 4
    %v837 = vadd.f32 %v835, %v836
    %v838 = vrot.slane %v837, 2
    %v839 = vadd.f32 %v837, %v838
    %v840 = vrot.slane %v839, 1
    %v841 = vadd.f32 %v839, %v840
    %v842 = vadd.f32 %v598, %v630
    %v843 = vrot.slane %v842, 4
    %v844 = vadd.f32 %v842, %v843
    %v845 = vrot.slane %v844, 2
    %v846 = vadd.f32 %v844, %v845
    %v847 = vrot.slane %v846, 1
    %v848 = vadd.f32 %v846, %v847
    %v849 = vadd.f32 %v599, %v631
    %v850 = vrot.slane %v849, 4
    %v851 = vadd.f32 %v849, %v850
    %v852 = vrot.slane %v851, 2
    %v853 = vadd.f32 %v851, %v852
    %v854 = vrot.slane %v853, 1
    %v855 = vadd.f32 %v853, %v854
    %v856 = vadd.f32 %v638, 1e-10
    %v857 = vadd.f32 %v645, 1e-10
    %v858 = vadd.f32 %v652, 1e-10
    %v859 = vadd.f32 %v659, 1e-10
    %v860 = vadd.f32 %v666, 1e-10
    %v861 = vadd.f32 %v673, 1e-10
    %v862 = vadd.f32 %v680, 1e-10
    %v863 = vadd.f32 %v687, 1e-10
    %v864 = vadd.f32 %v694, 1e-10
    %v865 = vadd.f32 %v701, 1e-10
    %v866 = vadd.f32 %v708, 1e-10
    %v867 = vadd.f32 %v715, 1e-10
    %v868 = vadd.f32 %v722, 1e-10
    %v869 = vadd.f32 %v729, 1e-10
    %v870 = vadd.f32 %v736, 1e-10
    %v871 = vadd.f32 %v743, 1e-10
    %v872 = vadd.f32 %v750, 1e-10
    %v873 = vadd.f32 %v757, 1e-10
    %v874 = vadd.f32 %v764, 1e-10
    %v875 = vadd.f32 %v771, 1e-10
    %v876 = vadd.f32 %v778, 1e-10
    %v877 = vadd.f32 %v785, 1e-10
    %v878 = vadd.f32 %v792, 1e-10
    %v879 = vadd.f32 %v799, 1e-10
    %v880 = vadd.f32 %v806, 1e-10
    %v881 = vadd.f32 %v813, 1e-10
    %v882 = vadd.f32 %v820, 1e-10
    %v883 = vadd.f32 %v827, 1e-10
    %v884 = vadd.f32 %v834, 1e-10
    %v885 = vadd.f32 %v841, 1e-10
    %v886 = vadd.f32 %v848, 1e-10
    %v887 = vadd.f32 %v855, 1e-10
    %v888 = vrsqrt.pop %v856
    %v889 = vrsqrt.pop %v857
    %v890 = vrsqrt.pop %v858
    %v891 = vrsqrt.pop %v859
    %v892 = vrsqrt.pop %v860
    %v893 = vrsqrt.pop %v861
    %v894 = vrsqrt.pop %v862
    %v895 = vrsqrt.pop %v863
    %v896 = vrsqrt.pop %v864
    %v897 = vrsqrt.pop %v865
    %v898 = vrsqrt.pop %v866
    %v899 = vrsqrt.pop %v867
    %v900 = vrsqrt.pop %v868
    %v901 = vrsqrt.pop %v869
    %v902 = vrsqrt.pop %v870
    %v903 = vrsqrt.pop %v871
    %v904 = vrsqrt.pop %v872
    %v905 = vrsqrt.pop %v873
    %v906 = vrsqrt.pop %v874
    %v907 = vrsqrt.pop %v875
    %v908 = vrsqrt.pop %v876
    %v909 = vrsqrt.pop %v877
    %v910 = vrsqrt.pop %v878
    %v911 = vrsqrt.pop %v879
    %v912 = vrsqrt.pop %v880
    %v913 = vrsqrt.pop %v881
    %v914 = vrsqrt.pop %v882
    %v915 = vrsqrt.pop %v883
    %v916 = vrsqrt.pop %v884
    %v917 = vrsqrt.pop %v885
    %v918 = vrsqrt.pop %v886
    %v919 = vrsqrt.pop %v887
    %v920 = vmul.f32 %v88, %v888
    %v921 = vmul.f32 %v89, %v889
    %v922 = vmul.f32 %v90, %v890
    %v923 = vmul.f32 %v91, %v891
    %v924 = vmul.f32 %v92, %v892
    %v925 = vmul.f32 %v93, %v893
    %v926 = vmul.f32 %v94, %v894
    %v927 = vmul.f32 %v95, %v895
    %v928 = vmul.f32 %v96, %v896
    %v929 = vmul.f32 %v97, %v897
    %v930 = vmul.f32 %v98, %v898
    %v931 = vmul.f32 %v99, %v899
    %v932 = vmul.f32 %v100, %v900
    %v933 = vmul.f32 %v101, %v901
    %v934 = vmul.f32 %v102, %v902
    %v935 = vmul.f32 %v103, %v903
    %v936 = vmul.f32 %v104, %v904
    %v937 = vmul.f32 %v105, %v905
    %v938 = vmul.f32 %v106, %v906
    %v939 = vmul.f32 %v107, %v907
    %v940 = vmul.f32 %v108, %v908
    %v941 = vmul.f32 %v109, %v909
    %v942 = vmul.f32 %v110, %v910
    %v943 = vmul.f32 %v111, %v911
    %v944 = vmul.f32 %v112, %v912
    %v945 = vmul.f32 %v113, %v913
    %v946 = vmul.f32 %v114, %v914
    %v947 = vmul.f32 %v115, %v915
    %v948 = vmul.f32 %v116, %v916
    %v949 = vmul.f32 %v117, %v917
    %v950 = vmul.f32 %v118, %v918
    %v951 = vmul.f32 %v119, %v919
    %v952 = vmul.f32 %v120, %v888
    %v953 = vmul.f32 %v121, %v889
    %v954 = vmul.f32 %v122, %v890
    %v955 = vmul.f32 %v123, %v891
    %v956 = vmul.f32 %v124, %v892
    %v957 = vmul.f32 %v125, %v893
    %v958 = vmul.f32 %v126, %v894
    %v959 = vmul.f32 %v127, %v895
    %v960 = vmul.f32 %v128, %v896
    %v961 = vmul.f32 %v129, %v897
    %v962 = vmul.f32 %v130, %v898
    %v963 = vmul.f32 %v131, %v899
    %v964 = vmul.f32 %v132, %v900
    %v965 = vmul.f32 %v133, %v901
    %v966 = vmul.f32 %v134, %v902
    %v967 = vmul.f32 %v135, %v903
    %v968 = vmul.f32 %v136, %v904
    %v969 = vmul.f32 %v137, %v905
    %v970 = vmul.f32 %v138, %v906
    %v971 = vmul.f32 %v139, %v907
    %v972 = vmul.f32 %v140, %v908
    %v973 = vmul.f32 %v141, %v909
    %v974 = vmul.f32 %v142, %v910
    %v975 = vmul.f32 %v143, %v911
    %v976 = vmul.f32 %v144, %v912
    %v977 = vmul.f32 %v145, %v913
    %v978 = vmul.f32 %v146, %v914
    %v979 = vmul.f32 %v147, %v915
    %v980 = vmul.f32 %v148, %v916
    %v981 = vmul.f32 %v149, %v917
    %v982 = vmul.f32 %v150, %v918
    %v983 = vmul.f32 %v151, %v919
    %v984 = vsub.f32 %v504, %v920
    %v985 = vsub.f32 %v505, %v921
    %v986 = vsub.f32 %v506, %v922
    %v987 = vsub.f32 %v507, %v923
    %v988 = vsub.f32 %v508, %v924
    %v989 = vsub.f32 %v509, %v925
    %v990 = vsub.f32 %v510, %v926
    %v991 = vsub.f32 %v511, %v927
    %v992 = vsub.f32 %v512, %v928
    %v993 = vsub.f32 %v513, %v929
    %v994 = vsub.f32 %v514, %v930
    %v995 = vsub.f32 %v515, %v931
    %v996 = vsub.f32 %v516, %v932
    %v997 = vsub.f32 %v517, %v933
    %v998 = vsub.f32 %v518, %v934
    %v999 = vsub.f32 %v519, %v935
    %v1000 = vsub.f32 %v520, %v936
    %v1001 = vsub.f32 %v521, %v937
    %v1002 = vsub.f32 %v522, %v938
    %v1003 = vsub.f32 %v523, %v939
    %v1004 = vsub.f32 %v524, %v940
    %v1005 = vsub.f32 %v525, %v941
    %v1006 = vsub.f32 %v526, %v942
    %v1007 = vsub.f32 %v527, %v943
    %v1008 = vsub.f32 %v528, %v944
    %v1009 = vsub.f32 %v529, %v945
    %v1010 = vsub.f32 %v530, %v946
    %v1011 = vsub.f32 %v531, %v947
    %v1012 = vsub.f32 %v532, %v948
    %v1013 = vsub.f32 %v533, %v949
    %v1014 = vsub.f32 %v534, %v950
    %v1015 = vsub.f32 %v535, %v951
    %v1016 = vsub.f32 %v536, %v952
    %v1017 = vsub.f32 %v537, %v953
    %v1018 = vsub.f32 %v538, %v954
    %v1019 = vsub.f32 %v539, %v955
    %v1020 = vsub.f32 %v540, %v956
    %v1021 = vsub.f32 %v541, %v957
    %v1022 = vsub.f32 %v542, %v958
    %v1023 = vsub.f32 %v543, %v959
    %v1024 = vsub.f32 %v544, %v960
    %v1025 = vsub.f32 %v545, %v961
    %v1026 = vsub.f32 %v546, %v962
    %v1027 = vsub.f32 %v547, %v963
    %v1028 = vsub.f32 %v548, %v964
    %v1029 = vsub.f32 %v549, %v965
    %v1030 = vsub.f32 %v550, %v966
    %v1031 = vsub.f32 %v551, %v967
    %v1032 = vsub.f32 %v552, %v968
    %v1033 = vsub.f32 %v553, %v969
    %v1034 = vsub.f32 %v554, %v970
    %v1035 = vsub.f32 %v555, %v971
    %v1036 = vsub.f32 %v556, %v972
    %v1037 = vsub.f32 %v557, %v973
    %v1038 = vsub.f32 %v558, %v974
    %v1039 = vsub.f32 %v559, %v975
    %v1040 = vsub.f32 %v560, %v976
    %v1041 = vsub.f32 %v561, %v977
    %v1042 = vsub.f32 %v562, %v978
    %v1043 = vsub.f32 %v563, %v979
    %v1044 = vsub.f32 %v564, %v980
    %v1045 = vsub.f32 %v565, %v981
    %v1046 = vsub.f32 %v566, %v982
    %v1047 = vsub.f32 %v567, %v983
    %v1048 = vmul.f32 %v984, %v984
    %v1049 = vmul.f32 %v985, %v985
    %v1050 = vmul.f32 %v986, %v986
    %v1051 = vmul.f32 %v987, %v987
    %v1052 = vmul.f32 %v988, %v988
    %v1053 = vmul.f32 %v989, %v989
    %v1054 = vmul.f32 %v990, %v990
    %v1055 = vmul.f32 %v991, %v991
    %v1056 = vmul.f32 %v992, %v992
    %v1057 = vmul.f32 %v993, %v993
    %v1058 = vmul.f32 %v994, %v994
    %v1059 = vmul.f32 %v995, %v995
    %v1060 = vmul.f32 %v996, %v996
    %v1061 = vmul.f32 %v997, %v997
    %v1062 = vmul.f32 %v998, %v998
    %v1063 = vmul.f32 %v999, %v999
    %v1064 = vmul.f32 %v1000, %v1000
    %v1065 = vmul.f32 %v1001, %v1001
    %v1066 = vmul.f32 %v1002, %v1002
    %v1067 = vmul.f32 %v1003, %v1003
    %v1068 = vmul.f32 %v1004, %v1004
    %v1069 = vmul.f32 %v1005, %v1005
    %v1070 = vmul.f32 %v1006, %v1006
    %v1071 = vmul.f32 %v1007, %v1007
    %v1072 = vmul.f32 %v1008, %v1008
    %v1073 = vmul.f32 %v1009, %v1009
    %v1074 = vmul.f32 %v1010, %v1010
    %v1075 = vmul.f32 %v1011, %v1011
    %v1076 = vmul.f32 %v1012, %v1012
    %v1077 = vmul.f32 %v1013, %v1013
    %v1078 = vmul.f32 %v1014, %v1014
    %v1079 = vmul.f32 %v1015, %v1015
    %v1080 = vmul.f32 %v1016, %v1016
    %v1081 = vmul.f32 %v1017, %v1017
    %v1082 = vmul.f32 %v1018, %v1018
    %v1083 = vmul.f32 %v1019, %v1019
    %v1084 = vmul.f32 %v1020, %v1020
    %v1085 = vmul.f32 %v1021, %v1021
    %v1086 = vmul.f32 %v1022, %v1022
    %v1087 = vmul.f32 %v1023, %v1023
    %v1088 = vmul.f32 %v1024, %v1024
    %v1089 = vmul.f32 %v1025, %v1025
    %v1090 = vmul.f32 %v1026, %v1026
    %v1091 = vmul.f32 %v1027, %v1027
    %v1092 = vmul.f32 %v1028, %v1028
    %v1093 = vmul.f32 %v1029, %v1029
    %v1094 = vmul.f32 %v1030, %v1030
    %v1095 = vmul.f32 %v1031, %v1031
    %v1096 = vmul.f32 %v1032, %v1032
    %v1097 = vmul.f32 %v1033, %v1033
    %v1098 = vmul.f32 %v1034, %v1034
    %v1099 = vmul.f32 %v1035, %v1035
    %v1100 = vmul.f32 %v1036, %v1036
    %v1101 = vmul.f32 %v1037, %v1037
    %v1102 = vmul.f32 %v1038, %v1038
    %v1103 = vmul.f32 %v1039, %v1039
    %v1104 = vmul.f32 %v1040, %v1040
    %v1105 = vmul.f32 %v1041, %v1041
    %v1106 = vmul.f32 %v1042, %v1042
    %v1107 = vmul.f32 %v1043, %v1043
    %v1108 = vmul.f32 %v1044, %v1044
    %v1109 = vmul.f32 %v1045, %v1045
    %v1110 = vmul.f32 %v1046, %v1046
    %v1111 = vmul.f32 %v1047, %v1047
    %v1112 = vadd.f32 %v1048, %v1049
    %v1113 = vadd.f32 %v1112, %v1050
    %v1114 = vadd.f32 %v1113, %v1051
    %v1115 = vadd.f32 %v1114, %v1052
    %v1116 = vadd.f32 %v1115, %v1053
    %v1117 = vadd.f32 %v1116, %v1054
    %v1118 = vadd.f32 %v1117, %v1055
    %v1119 = vadd.f32 %v1118, %v1056
    %v1120 = vadd.f32 %v1119, %v1057
    %v1121 = vadd.f32 %v1120, %v1058
    %v1122 = vadd.f32 %v1121, %v1059
    %v1123 = vadd.f32 %v1122, %v1060
    %v1124 = vadd.f32 %v1123, %v1061
    %v1125 = vadd.f32 %v1124, %v1062
    %v1126 = vadd.f32 %v1125, %v1063
    %v1127 = vadd.f32 %v1126, %v1064
    %v1128 = vadd.f32 %v1127, %v1065
    %v1129 = vadd.f32 %v1128, %v1066
    %v1130 = vadd.f32 %v1129, %v1067
    %v1131 = vadd.f32 %v1130, %v1068
    %v1132 = vadd.f32 %v1131, %v1069
    %v1133 = vadd.f32 %v1132, %v1070
    %v1134 = vadd.f32 %v1133, %v1071
    %v1135 = vadd.f32 %v1134, %v1072
    %v1136 = vadd.f32 %v1135, %v1073
    %v1137 = vadd.f32 %v1136, %v1074
    %v1138 = vadd.f32 %v1137, %v1075
    %v1139 = vadd.f32 %v1138, %v1076
    %v1140 = vadd.f32 %v1139, %v1077
    %v1141 = vadd.f32 %v1140, %v1078
    %v1142 = vadd.f32 %v1141, %v1079
    %1143 = vadd.xlane.f32.xlu0 %v1142
    %v1144 = vpop.xlane.xlu0 %1143
    %v1145 = vadd.f32 %v1080, %v1081
    %v1146 = vadd.f32 %v1145, %v1082
    %v1147 = vadd.f32 %v1146, %v1083
    %v1148 = vadd.f32 %v1147, %v1084
    %v1149 = vadd.f32 %v1148, %v1085
    %v1150 = vadd.f32 %v1149, %v1086
    %v1151 = vadd.f32 %v1150, %v1087
    %v1152 = vadd.f32 %v1151, %v1088
    %v1153 = vadd.f32 %v1152, %v1089
    %v1154 = vadd.f32 %v1153, %v1090
    %v1155 = vadd.f32 %v1154, %v1091
    %v1156 = vadd.f32 %v1155, %v1092
    %v1157 = vadd.f32 %v1156, %v1093
    %v1158 = vadd.f32 %v1157, %v1094
    %v1159 = vadd.f32 %v1158, %v1095
    %v1160 = vadd.f32 %v1159, %v1096
    %v1161 = vadd.f32 %v1160, %v1097
    %v1162 = vadd.f32 %v1161, %v1098
    %v1163 = vadd.f32 %v1162, %v1099
    %v1164 = vadd.f32 %v1163, %v1100
    %v1165 = vadd.f32 %v1164, %v1101
    %v1166 = vadd.f32 %v1165, %v1102
    %v1167 = vadd.f32 %v1166, %v1103
    %v1168 = vadd.f32 %v1167, %v1104
    %v1169 = vadd.f32 %v1168, %v1105
    %v1170 = vadd.f32 %v1169, %v1106
    %v1171 = vadd.f32 %v1170, %v1107
    %v1172 = vadd.f32 %v1171, %v1108
    %v1173 = vadd.f32 %v1172, %v1109
    %v1174 = vadd.f32 %v1173, %v1110
    %v1175 = vadd.f32 %v1174, %v1111
    %1176 = vadd.xlane.f32.xlu0 %v1175
    %v1177 = vpop.xlane.xlu0 %1176
    %v1178 = vadd.f32 %v1144, %v1177
    %v1179 = vrot.slane %v1178, 4
    %v1180 = vadd.f32 %v1178, %v1179
    %v1181 = vrot.slane %v1180, 2
    %v1182 = vadd.f32 %v1180, %v1181
    %v1183 = vrot.slane %v1182, 1
    %v1184 = vadd.f32 %v1182, %v1183
    %v1185 = vmul.f32 %v1184, 3.0517579e-06
    %v1186 = vld [vmem:[%s2] sm:$0xff]
    %v1187 = vld [vmem:[%s2 + $0x8] sm:$0xff]
    %v1188 = vld [vmem:[%s2 + $0x10] sm:$0xff]
    %v1189 = vld [vmem:[%s2 + $0x18] sm:$0xff]
    %v1190 = vld [vmem:[%s2 + $0x20] sm:$0xff]
    %v1191 = vld [vmem:[%s2 + $0x28] sm:$0xff]
    %v1192 = vld [vmem:[%s2 + $0x30] sm:$0xff]
    %v1193 = vld [vmem:[%s2 + $0x38] sm:$0xff]
    %v1194 = vld [vmem:[%s2 + $0x40] sm:$0xff]
    %v1195 = vld [vmem:[%s2 + $0x48] sm:$0xff]
    %v1196 = vld [vmem:[%s2 + $0x50] sm:$0xff]
    %v1197 = vld [vmem:[%s2 + $0x58] sm:$0xff]
    %v1198 = vld [vmem:[%s2 + $0x60] sm:$0xff]
    %v1199 = vld [vmem:[%s2 + $0x68] sm:$0xff]
    %v1200 = vld [vmem:[%s2 + $0x70] sm:$0xff]
    %v1201 = vld [vmem:[%s2 + $0x78] sm:$0xff]
    %v1202 = vld [vmem:[%s3] sm:$0xff]
    %v1203 = vld [vmem:[%s3 + $0x8] sm:$0xff]
    %v1204 = vld [vmem:[%s3 + $0x10] sm:$0xff]
    %v1205 = vld [vmem:[%s3 + $0x18] sm:$0xff]
    %v1206 = vld [vmem:[%s3 + $0x20] sm:$0xff]
    %v1207 = vld [vmem:[%s3 + $0x28] sm:$0xff]
    %v1208 = vld [vmem:[%s3 + $0x30] sm:$0xff]
    %v1209 = vld [vmem:[%s3 + $0x38] sm:$0xff]
    %v1210 = vld [vmem:[%s3 + $0x40] sm:$0xff]
    %v1211 = vld [vmem:[%s3 + $0x48] sm:$0xff]
    %v1212 = vld [vmem:[%s3 + $0x50] sm:$0xff]
    %v1213 = vld [vmem:[%s3 + $0x58] sm:$0xff]
    %v1214 = vld [vmem:[%s3 + $0x60] sm:$0xff]
    %v1215 = vld [vmem:[%s3 + $0x68] sm:$0xff]
    %v1216 = vld [vmem:[%s3 + $0x70] sm:$0xff]
    %v1217 = vld [vmem:[%s3 + $0x78] sm:$0xff]
    %v1218 = vmul.f32 %v1186, %v1186
    %v1219 = vmul.f32 %v1187, %v1187
    %v1220 = vmul.f32 %v1188, %v1188
    %v1221 = vmul.f32 %v1189, %v1189
    %v1222 = vmul.f32 %v1190, %v1190
    %v1223 = vmul.f32 %v1191, %v1191
    %v1224 = vmul.f32 %v1192, %v1192
    %v1225 = vmul.f32 %v1193, %v1193
    %v1226 = vmul.f32 %v1194, %v1194
    %v1227 = vmul.f32 %v1195, %v1195
    %v1228 = vmul.f32 %v1196, %v1196
    %v1229 = vmul.f32 %v1197, %v1197
    %v1230 = vmul.f32 %v1198, %v1198
    %v1231 = vmul.f32 %v1199, %v1199
    %v1232 = vmul.f32 %v1200, %v1200
    %v1233 = vmul.f32 %v1201, %v1201
    %v1234 = vadd.f32 %v1218, %v1222
    %v1235 = vadd.f32 %v1234, %v1226
    %v1236 = vadd.f32 %v1235, %v1230
    %v1237 = vrot.slane %v1236, 4
    %v1238 = vadd.f32 %v1236, %v1237
    %v1239 = vrot.slane %v1238, 2
    %v1240 = vadd.f32 %v1238, %v1239
    %v1241 = vrot.slane %v1240, 1
    %v1242 = vadd.f32 %v1240, %v1241
    %v1243 = vadd.f32 %v1219, %v1223
    %v1244 = vadd.f32 %v1243, %v1227
    %v1245 = vadd.f32 %v1244, %v1231
    %v1246 = vrot.slane %v1245, 4
    %v1247 = vadd.f32 %v1245, %v1246
    %v1248 = vrot.slane %v1247, 2
    %v1249 = vadd.f32 %v1247, %v1248
    %v1250 = vrot.slane %v1249, 1
    %v1251 = vadd.f32 %v1249, %v1250
    %v1252 = vadd.f32 %v1220, %v1224
    %v1253 = vadd.f32 %v1252, %v1228
    %v1254 = vadd.f32 %v1253, %v1232
    %v1255 = vrot.slane %v1254, 4
    %v1256 = vadd.f32 %v1254, %v1255
    %v1257 = vrot.slane %v1256, 2
    %v1258 = vadd.f32 %v1256, %v1257
    %v1259 = vrot.slane %v1258, 1
    %v1260 = vadd.f32 %v1258, %v1259
    %v1261 = vadd.f32 %v1221, %v1225
    %v1262 = vadd.f32 %v1261, %v1229
    %v1263 = vadd.f32 %v1262, %v1233
    %v1264 = vrot.slane %v1263, 4
    %v1265 = vadd.f32 %v1263, %v1264
    %v1266 = vrot.slane %v1265, 2
    %v1267 = vadd.f32 %v1265, %v1266
    %v1268 = vrot.slane %v1267, 1
    %v1269 = vadd.f32 %v1267, %v1268
    %v1270 = vadd.f32 %v1242, 1e-10
    %v1271 = vadd.f32 %v1251, 1e-10
    %v1272 = vadd.f32 %v1260, 1e-10
    %v1273 = vadd.f32 %v1269, 1e-10
    %v1274 = vrsqrt.pop %v1270
    %v1275 = vrsqrt.pop %v1271
    %v1276 = vrsqrt.pop %v1272
    %v1277 = vrsqrt.pop %v1273
    %v1278 = vmul.f32 %v1186, %v1274
    %v1279 = vmul.f32 %v1187, %v1275
    %v1280 = vmul.f32 %v1188, %v1276
    %v1281 = vmul.f32 %v1189, %v1277
    %v1282 = vmul.f32 %v1190, %v1274
    %v1283 = vmul.f32 %v1191, %v1275
    %v1284 = vmul.f32 %v1192, %v1276
    %v1285 = vmul.f32 %v1193, %v1277
    %v1286 = vmul.f32 %v1194, %v1274
    %v1287 = vmul.f32 %v1195, %v1275
    %v1288 = vmul.f32 %v1196, %v1276
    %v1289 = vmul.f32 %v1197, %v1277
    %v1290 = vmul.f32 %v1198, %v1274
    %v1291 = vmul.f32 %v1199, %v1275
    %v1292 = vmul.f32 %v1200, %v1276
    %v1293 = vmul.f32 %v1201, %v1277
    %v1294 = vmul.f32 %v1202, %v1202
    %v1295 = vmul.f32 %v1203, %v1203
    %v1296 = vmul.f32 %v1204, %v1204
    %v1297 = vmul.f32 %v1205, %v1205
    %v1298 = vmul.f32 %v1206, %v1206
    %v1299 = vmul.f32 %v1207, %v1207
    %v1300 = vmul.f32 %v1208, %v1208
    %v1301 = vmul.f32 %v1209, %v1209
    %v1302 = vmul.f32 %v1210, %v1210
    %v1303 = vmul.f32 %v1211, %v1211
    %v1304 = vmul.f32 %v1212, %v1212
    %v1305 = vmul.f32 %v1213, %v1213
    %v1306 = vmul.f32 %v1214, %v1214
    %v1307 = vmul.f32 %v1215, %v1215
    %v1308 = vmul.f32 %v1216, %v1216
    %v1309 = vmul.f32 %v1217, %v1217
    %v1310 = vadd.f32 %v1294, %v1298
    %v1311 = vadd.f32 %v1310, %v1302
    %v1312 = vadd.f32 %v1311, %v1306
    %v1313 = vrot.slane %v1312, 4
    %v1314 = vadd.f32 %v1312, %v1313
    %v1315 = vrot.slane %v1314, 2
    %v1316 = vadd.f32 %v1314, %v1315
    %v1317 = vrot.slane %v1316, 1
    %v1318 = vadd.f32 %v1316, %v1317
    %v1319 = vadd.f32 %v1295, %v1299
    %v1320 = vadd.f32 %v1319, %v1303
    %v1321 = vadd.f32 %v1320, %v1307
    %v1322 = vrot.slane %v1321, 4
    %v1323 = vadd.f32 %v1321, %v1322
    %v1324 = vrot.slane %v1323, 2
    %v1325 = vadd.f32 %v1323, %v1324
    %v1326 = vrot.slane %v1325, 1
    %v1327 = vadd.f32 %v1325, %v1326
    %v1328 = vadd.f32 %v1296, %v1300
    %v1329 = vadd.f32 %v1328, %v1304
    %v1330 = vadd.f32 %v1329, %v1308
    %v1331 = vrot.slane %v1330, 4
    %v1332 = vadd.f32 %v1330, %v1331
    %v1333 = vrot.slane %v1332, 2
    %v1334 = vadd.f32 %v1332, %v1333
    %v1335 = vrot.slane %v1334, 1
    %v1336 = vadd.f32 %v1334, %v1335
    %v1337 = vadd.f32 %v1297, %v1301
    %v1338 = vadd.f32 %v1337, %v1305
    %v1339 = vadd.f32 %v1338, %v1309
    %v1340 = vrot.slane %v1339, 4
    %v1341 = vadd.f32 %v1339, %v1340
    %v1342 = vrot.slane %v1341, 2
    %v1343 = vadd.f32 %v1341, %v1342
    %v1344 = vrot.slane %v1343, 1
    %v1345 = vadd.f32 %v1343, %v1344
    %v1346 = vadd.f32 %v1318, 1e-10
    %v1347 = vadd.f32 %v1327, 1e-10
    %v1348 = vadd.f32 %v1336, 1e-10
    %v1349 = vadd.f32 %v1345, 1e-10
    %v1350 = vrsqrt.pop %v1346
    %v1351 = vrsqrt.pop %v1347
    %v1352 = vrsqrt.pop %v1348
    %v1353 = vrsqrt.pop %v1349
    %v1354 = vmul.f32 %v1202, %v1350
    %v1355 = vmul.f32 %v1203, %v1351
    %v1356 = vmul.f32 %v1204, %v1352
    %v1357 = vmul.f32 %v1205, %v1353
    %v1358 = vmul.f32 %v1206, %v1350
    %v1359 = vmul.f32 %v1207, %v1351
    %v1360 = vmul.f32 %v1208, %v1352
    %v1361 = vmul.f32 %v1209, %v1353
    %v1362 = vmul.f32 %v1210, %v1350
    %v1363 = vmul.f32 %v1211, %v1351
    %v1364 = vmul.f32 %v1212, %v1352
    %v1365 = vmul.f32 %v1213, %v1353
    %v1366 = vmul.f32 %v1214, %v1350
    %v1367 = vmul.f32 %v1215, %v1351
    %v1368 = vmul.f32 %v1216, %v1352
    %v1369 = vmul.f32 %v1217, %v1353
    %v1370 = vsub.f32 %v1278, %v1354
    %v1371 = vsub.f32 %v1279, %v1355
    %v1372 = vsub.f32 %v1280, %v1356
    %v1373 = vsub.f32 %v1281, %v1357
    %v1374 = vsub.f32 %v1282, %v1358
    %v1375 = vsub.f32 %v1283, %v1359
    %v1376 = vsub.f32 %v1284, %v1360
    %v1377 = vsub.f32 %v1285, %v1361
    %v1378 = vsub.f32 %v1286, %v1362
    %v1379 = vsub.f32 %v1287, %v1363
    %v1380 = vsub.f32 %v1288, %v1364
    %v1381 = vsub.f32 %v1289, %v1365
    %v1382 = vsub.f32 %v1290, %v1366
    %v1383 = vsub.f32 %v1291, %v1367
    %v1384 = vsub.f32 %v1292, %v1368
    %v1385 = vsub.f32 %v1293, %v1369
    %v1386 = vmul.f32 %v1370, %v1370
    %v1387 = vmul.f32 %v1371, %v1371
    %v1388 = vmul.f32 %v1372, %v1372
    %v1389 = vmul.f32 %v1373, %v1373
    %v1390 = vmul.f32 %v1374, %v1374
    %v1391 = vmul.f32 %v1375, %v1375
    %v1392 = vmul.f32 %v1376, %v1376
    %v1393 = vmul.f32 %v1377, %v1377
    %v1394 = vmul.f32 %v1378, %v1378
    %v1395 = vmul.f32 %v1379, %v1379
    %v1396 = vmul.f32 %v1380, %v1380
    %v1397 = vmul.f32 %v1381, %v1381
    %v1398 = vmul.f32 %v1382, %v1382
    %v1399 = vmul.f32 %v1383, %v1383
    %v1400 = vmul.f32 %v1384, %v1384
    %v1401 = vmul.f32 %v1385, %v1385
    %v1402 = vadd.f32 %v1386, %v1387
    %v1403 = vadd.f32 %v1402, %v1388
    %v1404 = vadd.f32 %v1403, %v1389
    %1405 = vadd.xlane.f32.xlu0 %v1404
    %v1406 = vpop.xlane.xlu0 %1405
    %v1407 = vadd.f32 %v1390, %v1391
    %v1408 = vadd.f32 %v1407, %v1392
    %v1409 = vadd.f32 %v1408, %v1393
    %1410 = vadd.xlane.f32.xlu0 %v1409
    %v1411 = vpop.xlane.xlu0 %1410
    %v1412 = vadd.f32 %v1394, %v1395
    %v1413 = vadd.f32 %v1412, %v1396
    %v1414 = vadd.f32 %v1413, %v1397
    %1415 = vadd.xlane.f32.xlu0 %v1414
    %v1416 = vpop.xlane.xlu0 %1415
    %v1417 = vadd.f32 %v1398, %v1399
    %v1418 = vadd.f32 %v1417, %v1400
    %v1419 = vadd.f32 %v1418, %v1401
    %1420 = vadd.xlane.f32.xlu0 %v1419
    %v1421 = vpop.xlane.xlu0 %1420
    %v1422 = vadd.f32 %v1406, %v1411
    %v1423 = vadd.f32 %v1422, %v1416
    %v1424 = vadd.f32 %v1423, %v1421
    %v1425 = vrot.slane %v1424, 4
    %v1426 = vadd.f32 %v1424, %v1425
    %v1427 = vrot.slane %v1426, 2
    %v1428 = vadd.f32 %v1426, %v1427
    %v1429 = vrot.slane %v1428, 1
    %v1430 = vadd.f32 %v1428, %v1429
    %v1431 = vmul.f32 %v1430, 1.8310548e-05
    %v1432 = vadd.f32 %v1185, %v1431
    %v1433 = vld [vmem:[%s4] sm:$0xff]
    %v1434 = vld [vmem:[%s4 + $0x8] sm:$0xff]
    %v1435 = vld [vmem:[%s4 + $0x10] sm:$0xff]
    %v1436 = vld [vmem:[%s4 + $0x18] sm:$0xff]
    %v1437 = vld [vmem:[%s4 + $0x20] sm:$0xff]
    %v1438 = vld [vmem:[%s4 + $0x28] sm:$0xff]
    %v1439 = vld [vmem:[%s4 + $0x30] sm:$0xff]
    %v1440 = vld [vmem:[%s4 + $0x38] sm:$0xff]
    %v1441 = vld [vmem:[%s5] sm:$0xff]
    %v1442 = vld [vmem:[%s5 + $0x8] sm:$0xff]
    %v1443 = vld [vmem:[%s5 + $0x10] sm:$0xff]
    %v1444 = vld [vmem:[%s5 + $0x18] sm:$0xff]
    %v1445 = vld [vmem:[%s5 + $0x20] sm:$0xff]
    %v1446 = vld [vmem:[%s5 + $0x28] sm:$0xff]
    %v1447 = vld [vmem:[%s5 + $0x30] sm:$0xff]
    %v1448 = vld [vmem:[%s5 + $0x38] sm:$0xff]
    %v1449 = vmul.f32 %v1433, %v1433
    %v1450 = vmul.f32 %v1434, %v1434
    %v1451 = vmul.f32 %v1435, %v1435
    %v1452 = vmul.f32 %v1436, %v1436
    %v1453 = vmul.f32 %v1437, %v1437
    %v1454 = vmul.f32 %v1438, %v1438
    %v1455 = vmul.f32 %v1439, %v1439
    %v1456 = vmul.f32 %v1440, %v1440
    %vm1457 = vcmask 523264
    %v1458 = vsel %vm1457, %v1449, 0.0
    %v1459 = vsel %vm1457, %v1450, 0.0
    %v1460 = vadd.f32 %v1458, %v1459
    %v1461 = vsel %vm1457, %v1451, 0.0
    %v1462 = vadd.f32 %v1460, %v1461
    %v1463 = vsel %vm1457, %v1452, 0.0
    %v1464 = vadd.f32 %v1462, %v1463
    %v1465 = vsel %vm1457, %v1453, 0.0
    %v1466 = vadd.f32 %v1464, %v1465
    %v1467 = vsel %vm1457, %v1454, 0.0
    %v1468 = vadd.f32 %v1466, %v1467
    %v1469 = vsel %vm1457, %v1455, 0.0
    %v1470 = vadd.f32 %v1468, %v1469
    %v1471 = vsel %vm1457, %v1456, 0.0
    %v1472 = vadd.f32 %v1470, %v1471
    %v1473 = vrot.slane %v1472, 4
    %v1474 = vadd.f32 %v1472, %v1473
    %v1475 = vrot.slane %v1474, 2
    %v1476 = vadd.f32 %v1474, %v1475
    %v1477 = vrot.slane %v1476, 1
    %v1478 = vadd.f32 %v1476, %v1477
    %v1479 = vadd.f32 %v1478, 1e-10
    %v1480 = vrsqrt.pop %v1479
    %v1481 = vmul.f32 %v1433, %v1480
    %v1482 = vmul.f32 %v1434, %v1480
    %v1483 = vmul.f32 %v1435, %v1480
    %v1484 = vmul.f32 %v1436, %v1480
    %v1485 = vmul.f32 %v1437, %v1480
    %v1486 = vmul.f32 %v1438, %v1480
    %v1487 = vmul.f32 %v1439, %v1480
    %v1488 = vmul.f32 %v1440, %v1480
    %v1489 = vmul.f32 %v1441, %v1441
    %v1490 = vmul.f32 %v1442, %v1442
    %v1491 = vmul.f32 %v1443, %v1443
    %v1492 = vmul.f32 %v1444, %v1444
    %v1493 = vmul.f32 %v1445, %v1445
    %v1494 = vmul.f32 %v1446, %v1446
    %v1495 = vmul.f32 %v1447, %v1447
    %v1496 = vmul.f32 %v1448, %v1448
    %v1497 = vsel %vm1457, %v1489, 0.0
    %v1498 = vsel %vm1457, %v1490, 0.0
    %v1499 = vadd.f32 %v1497, %v1498
    %v1500 = vsel %vm1457, %v1491, 0.0
    %v1501 = vadd.f32 %v1499, %v1500
    %v1502 = vsel %vm1457, %v1492, 0.0
    %v1503 = vadd.f32 %v1501, %v1502
    %v1504 = vsel %vm1457, %v1493, 0.0
    %v1505 = vadd.f32 %v1503, %v1504
    %v1506 = vsel %vm1457, %v1494, 0.0
    %v1507 = vadd.f32 %v1505, %v1506
    %v1508 = vsel %vm1457, %v1495, 0.0
    %v1509 = vadd.f32 %v1507, %v1508
    %v1510 = vsel %vm1457, %v1496, 0.0
    %v1511 = vadd.f32 %v1509, %v1510
    %v1512 = vrot.slane %v1511, 4
    %v1513 = vadd.f32 %v1511, %v1512
    %v1514 = vrot.slane %v1513, 2
    %v1515 = vadd.f32 %v1513, %v1514
    %v1516 = vrot.slane %v1515, 1
    %v1517 = vadd.f32 %v1515, %v1516
    %v1518 = vadd.f32 %v1517, 1e-10
    %v1519 = vrsqrt.pop %v1518
    %v1520 = vmul.f32 %v1441, %v1519
    %v1521 = vmul.f32 %v1442, %v1519
    %v1522 = vmul.f32 %v1443, %v1519
    %v1523 = vmul.f32 %v1444, %v1519
    %v1524 = vmul.f32 %v1445, %v1519
    %v1525 = vmul.f32 %v1446, %v1519
    %v1526 = vmul.f32 %v1447, %v1519
    %v1527 = vmul.f32 %v1448, %v1519
    %v1528 = vsub.f32 %v1481, %v1520
    %v1529 = vsub.f32 %v1482, %v1521
    %v1530 = vsub.f32 %v1483, %v1522
    %v1531 = vsub.f32 %v1484, %v1523
    %v1532 = vsub.f32 %v1485, %v1524
    %v1533 = vsub.f32 %v1486, %v1525
    %v1534 = vsub.f32 %v1487, %v1526
    %v1535 = vsub.f32 %v1488, %v1527
    %v1536 = vmul.f32 %v1528, %v1528
    %v1537 = vmul.f32 %v1529, %v1529
    %v1538 = vmul.f32 %v1530, %v1530
    %v1539 = vmul.f32 %v1531, %v1531
    %v1540 = vmul.f32 %v1532, %v1532
    %v1541 = vmul.f32 %v1533, %v1533
    %v1542 = vmul.f32 %v1534, %v1534
    %v1543 = vmul.f32 %v1535, %v1535
    %v1544 = vsel %vm1457, %v1536, 0.0
    %1545 = vadd.xlane.f32.xlu0 %v1544
    %v1546 = vpop.xlane.xlu0 %1545
    %v1547 = vsel %vm1457, %v1537, 0.0
    %1548 = vadd.xlane.f32.xlu0 %v1547
    %v1549 = vpop.xlane.xlu0 %1548
    %v1550 = vsel %vm1457, %v1538, 0.0
    %1551 = vadd.xlane.f32.xlu0 %v1550
    %v1552 = vpop.xlane.xlu0 %1551
    %v1553 = vsel %vm1457, %v1539, 0.0
    %1554 = vadd.xlane.f32.xlu0 %v1553
    %v1555 = vpop.xlane.xlu0 %1554
    %v1556 = vsel %vm1457, %v1540, 0.0
    %1557 = vadd.xlane.f32.xlu0 %v1556
    %v1558 = vpop.xlane.xlu0 %1557
    %v1559 = vsel %vm1457, %v1541, 0.0
    %1560 = vadd.xlane.f32.xlu0 %v1559
    %v1561 = vpop.xlane.xlu0 %1560
    %v1562 = vsel %vm1457, %v1542, 0.0
    %1563 = vadd.xlane.f32.xlu0 %v1562
    %v1564 = vpop.xlane.xlu0 %1563
    %v1565 = vsel %vm1457, %v1543, 0.0
    %1566 = vadd.xlane.f32.xlu0 %v1565
    %v1567 = vpop.xlane.xlu0 %1566
    %v1568 = vadd.f32 %v1546, %v1549
    %v1569 = vadd.f32 %v1568, %v1552
    %v1570 = vadd.f32 %v1569, %v1555
    %v1571 = vadd.f32 %v1570, %v1558
    %v1572 = vadd.f32 %v1571, %v1561
    %v1573 = vadd.f32 %v1572, %v1564
    %v1574 = vadd.f32 %v1573, %v1567
    %v1575 = vrot.slane %v1574, 4
    %v1576 = vadd.f32 %v1574, %v1575
    %v1577 = vrot.slane %v1576, 2
    %v1578 = vadd.f32 %v1576, %v1577
    %v1579 = vrot.slane %v1578, 1
    %v1580 = vadd.f32 %v1578, %v1579
    %v1581 = vmul.f32 %v1580, 0.00012207031
    %v1582 = vadd.f32 %v1432, %v1581
    %1583 = vst [vmem:[#allocation2] sm:$0x1] %v1582
    // Predicated region
    $region26: #{lpips.7} parent=1 // pred_check
      _
    $region27: #{lpips.7} parent=1 // pred_check_branch
      %1585 = sbr.rel (0) target = $region29
    $region28: #{lpips.7} parent=1 // pred_region
      %s1587 = ssub.s32 16, 16
      %1588 = vsyncadd [#allocation3], %s1587
      %s1590 = sshll.u32 [#allocation2], 4
      %s1591 = int_to_ptr.vmem [resolvable:$true] %s1590
      %1593 = dma.vmem_to_hbm [thread:$0]  %s1591, 16, %s6, [#allocation3]
    $region29: #{lpips.7} parent=1 // pred_fallthru
      _
    // Predicated region
    $region30: #{lpips.7} parent=1 // pred_check
      _
    $region31: #{lpips.7} parent=1 // pred_check_branch
      %1595 = sbr.rel (0) target = $region33
    $region32: #{lpips.7} parent=1 // pred_region
      %1596 = dma.done [#allocation3], 16
    $region33: #{lpips.7} parent=1 // pred_fallthru
      _
    %1597 = vsyncpa [#allocation3], 1

</llo_original>
